<compile_context>
chip_gen: v7x
topology: tpu7x:2x2x1
jax: 0.10.0
libtpu: 0.0.40
codegen_flags: <defaults>
</compile_context>

<pallas_src>
import jax
import jax.numpy as jnp
from jax.experimental import pallas as pl
from jax.experimental.pallas import tpu as pltpu


# ---------------------------------------------------------------- kernel ---
def _diehl_fused_kernel(x_ref, t1_ref, p1_ref, u2_ref, p2_ref, v_ref, o_ref):
    tb = x_ref.shape[0]
    f32, bf16 = jnp.float32, jnp.bfloat16

    x = x_ref[...]                                         # (TB, 28, 28) bf16

    # conv1 (1->12, 5x5, valid): ONE Toeplitz matmul, K = 5*28 = 140.
    # Rows = (b, oh); columns of the result = ow*12 + oc.
    xs = jnp.concatenate([x[:, i:i + 24, :] for i in range(5)], axis=2)
    xs = xs.reshape(tb * 24, 5 * 28)
    y1 = jnp.dot(xs, t1_ref[...], preferred_element_type=f32)   # (TB*24, 288)
    y1 = jnp.maximum(y1, 0.0)                              # ReLU (IF surrogate)

    # pool1 = AvgPool2d(2): W direction via pooling matmul (carries the full
    # 0.25 factor), H direction via reshape + pair-sum.
    y1 = jnp.dot(y1.astype(bf16), p1_ref[...], preferred_element_type=f32)
    p1 = y1.reshape(tb, 12, 2, 12 * 12).sum(axis=2).astype(bf16)  # (TB,12,144)

    # conv2 (12->64, 5x5): ONE Toeplitz matmul, K = 5*144 = 720.
    ps = jnp.concatenate([p1[:, i:i + 8, :] for i in range(5)], axis=2)
    ps = ps.reshape(tb * 8, 5 * 144)
    y2 = jnp.dot(ps, u2_ref[...], preferred_element_type=f32)    # (TB*8, 512)
    y2 = jnp.maximum(y2, 0.0)

    # pool2 = AvgPool2d(2), same scheme.
    y2 = jnp.dot(y2.astype(bf16), p2_ref[...], preferred_element_type=f32)
    p2 = y2.reshape(tb, 4, 2, 4 * 64).sum(axis=2).astype(bf16)   # (TB, 4, 256)

    # flatten (torch NCHW order is folded into v_ref) + fc1 (1024 -> 10):
    # one K=1024 matmul into a lane-dense (TB, 128) output.
    o_ref[...] = jnp.dot(p2.reshape(tb, 4 * 256), v_ref[...],
                         preferred_element_type=f32)


# ------------------------------------------------- hoisted weight prep -----
def prepare_params(params):
    """One-time conversion of torch-layout weights into fused bf16 matrices."""
    w1, w2, wfc = params["conv1"], params["conv2"], params["fc1"]
    f32, bf16 = jnp.float32, jnp.bfloat16

    # conv1 Toeplitz, 5 taps fused along K:
    #   t1[i*28 + w_in, ow*12 + oc] = w1[oc, 0, i, w_in - ow] (0 <= w_in-ow < 5)
    w_in = jnp.arange(28)[:, None]
    ow = jnp.arange(24)[None, :]
    j = w_in - ow
    valid = (j >= 0) & (j < 5)
    w1_ijc = jnp.transpose(w1[:, 0], (1, 2, 0))              # (i, j, oc)
    t1 = jnp.where(valid[None, :, :, None],
                   w1_ijc[:, jnp.clip(j, 0, 4), :], 0.0)      # (5, 28, 24, 12)
    t1 = t1.reshape(5 * 28, 24 * 12).astype(bf16)             # (140, 288)

    # pool1, W direction: (w*12+c) x (wo*12+c'), carries the full 1/4 factor.
    w = jnp.arange(24); c = jnp.arange(12); wo = jnp.arange(12)
    p1 = ((w[:, None, None, None] // 2 == wo[None, None, :, None])
          & (c[None, :, None, None] == c[None, None, None, :]))
    p1 = (0.25 * p1.astype(f32)).reshape(24 * 12, 12 * 12).astype(bf16)

    # conv2 Toeplitz, 5 taps fused along K:
    #   u2[i*144 + win*12 + ic, ow*64 + oc] = w2[oc, ic, i, win - ow]
    win = jnp.arange(12)[:, None]
    ow2 = jnp.arange(8)[None, :]
    j2 = win - ow2
    valid2 = (j2 >= 0) & (j2 < 5)
    w2_ijco = jnp.transpose(w2, (2, 3, 1, 0))                 # (i, j, ic, oc)
    u2 = jnp.where(valid2[None, :, :, None, None],
                   w2_ijco[:, jnp.clip(j2, 0, 4), :, :], 0.0)  # (5,12,8,12,64)
    u2 = jnp.transpose(u2, (0, 1, 3, 2, 4)).reshape(5 * 144, 8 * 64)
    u2 = u2.astype(bf16)                                       # (720, 512)

    # pool2, W direction: (w*64+c) x (wo*64+c'), carries the full 1/4 factor.
    w = jnp.arange(8); c = jnp.arange(64); wo = jnp.arange(4)
    p2 = ((w[:, None, None, None] // 2 == wo[None, None, :, None])
          & (c[None, :, None, None] == c[None, None, None, :]))
    p2 = (0.25 * p2.astype(f32)).reshape(8 * 64, 4 * 64).astype(bf16)

    # fc1 with torch NCHW flatten (idx = c*16 + h*4 + w) folded in; rows are
    # reordered to the kernel's (h, w*64+c) activation layout and the 10
    # outputs are zero-padded to 128 lanes for dense stores.
    v = wfc.reshape(10, 64, 4, 4)                              # (n, c, h, w)
    v = jnp.transpose(v, (2, 3, 1, 0)).reshape(4 * 4 * 64, 10) # (h*256+w*64+c, n)
    v = jnp.pad(v, ((0, 0), (0, 118))).astype(bf16)            # (1024, 128)

    return {"t1": t1, "p1": p1, "u2": u2, "p2": p2, "v": v}


# ----------------------------------------------------------------- forward -
def diehl2015_forward(x_nchw, prep):
    """Eval-mode forward of the conv/pool/fc backbone. x_nchw: (B, 1, 28, 28)."""
    B = x_nchw.shape[0]
    x = x_nchw[:, 0, :, :]                                   # IC == 1 -> (B, 28, 28)

    # Batch tiling: large tiles (up to 128) for MXU occupancy, but keep >= 2
    # grid steps when the batch is big enough so v7x's 2 TensorCores both work.
    TB_MAX = 128
    if B <= 16:
        tb, bp = B, B                                        # tiny batch: one tile
    else:
        tb = min(TB_MAX, ((pl.cdiv(B, 2) + 7) // 8) * 8)
        bp = pl.cdiv(B, tb) * tb
    if bp != B:
        x = jnp.pad(x, ((0, bp - B), (0, 0), (0, 0)))
    x = x.astype(jnp.bfloat16)        # cast once: halves input DMA, matmuls are bf16

    out = pl.pallas_call(
        _diehl_fused_kernel,
        out_shape=jax.ShapeDtypeStruct((bp, 128), jnp.float32),
        grid=(bp // tb,),
        in_specs=[
            pl.BlockSpec((tb, 28, 28), lambda b: (b, 0, 0)),
            pl.BlockSpec((140, 288), lambda b: (0, 0)),      # t1 (resident)
            pl.BlockSpec((288, 144), lambda b: (0, 0)),      # p1
            pl.BlockSpec((720, 512), lambda b: (0, 0)),      # u2
            pl.BlockSpec((512, 256), lambda b: (0, 0)),      # p2
            pl.BlockSpec((1024, 128), lambda b: (0, 0)),     # v
        ],
        out_specs=pl.BlockSpec((tb, 128), lambda b: (b, 0)),
        compiler_params=pltpu.CompilerParams(
            dimension_semantics=("parallel",),
            vmem_limit_bytes=32 * 1024 * 1024,
        ),
    )(x, prep["t1"], prep["p1"], prep["u2"], prep["p2"], prep["v"])

    return out[:B, :10]


def init_params(key):
    k1, k2, k3 = jax.random.split(key, 3)

    def u(k, shape, fan_in):
        bound = 1.0 / (fan_in ** 0.5)
        return jax.random.uniform(k, shape, jnp.float32, -bound, bound)

    return {
        "conv1": u(k1, (12, 1, 5, 5), 1 * 5 * 5),
        "conv2": u(k2, (64, 12, 5, 5), 12 * 5 * 5),
        "fc1": u(k3, (10, 1024), 1024),     # torch Linear weight layout [out, in]
    }


if __name__ == "__main__":
    key = jax.random.PRNGKey(0)
    kx, kp = jax.random.split(key)
    # 28x28 input is implied by fc1(in_features=1024): 28 -> 24 -> 12 -> 8 -> 4.
    x = jax.random.uniform(kx, (2, 1, 28, 28), dtype=jnp.float32)
    params = init_params(kp)
    prep = prepare_params(params)            # hoisted: done once, not per call

    fwd = jax.jit(diehl2015_forward)
    out = fwd(x, prep)
    out = jax.block_until_ready(out)
    assert out.shape == (2, 10) and out.dtype == jnp.float32
    print("KERNEL_OK")
</pallas_src>

<mosaic_0001>
module attributes {stable_mosaic.version = 11 : i64} {
  func.func @_diehl_fused_kernel(%arg0: i32, %arg1: memref<2x28x28xbf16, #tpu.memory_space<vmem>>, %arg2: memref<140x288xbf16, #tpu.memory_space<vmem>>, %arg3: memref<288x144xbf16, #tpu.memory_space<vmem>>, %arg4: memref<720x512xbf16, #tpu.memory_space<vmem>>, %arg5: memref<512x256xbf16, #tpu.memory_space<vmem>>, %arg6: memref<1024x128xbf16, #tpu.memory_space<vmem>>, %arg7: memref<2x128xf32, #tpu.memory_space<vmem>>) attributes {dimension_semantics = [#tpu.dimension_semantics<parallel>], iteration_bounds = array<i64: 1>, scalar_prefetch = 0 : i64, scratch_operands = 0 : i64, tpu.core_type = #tpu.core_type<tc>, window_params = [{transform_indices = @transform_0, window_bounds = array<i64: 2, 28, 28>}, {pipeline_mode = #tpu.pipeline_mode<synchronous>, transform_indices = @transform_1, window_bounds = array<i64: 140, 288>}, {pipeline_mode = #tpu.pipeline_mode<synchronous>, transform_indices = @transform_2, window_bounds = array<i64: 288, 144>}, {pipeline_mode = #tpu.pipeline_mode<synchronous>, transform_indices = @transform_3, window_bounds = array<i64: 720, 512>}, {pipeline_mode = #tpu.pipeline_mode<synchronous>, transform_indices = @transform_4, window_bounds = array<i64: 512, 256>}, {pipeline_mode = #tpu.pipeline_mode<synchronous>, transform_indices = @transform_5, window_bounds = array<i64: 1024, 128>}, {transform_indices = @transform_6, window_bounds = array<i64: 2, 128>}]} {
    %c0 = arith.constant 0 : index
    %c0_0 = arith.constant 0 : index
    %c0_1 = arith.constant 0 : index
    %0 = vector.load %arg1[%c0, %c0_0, %c0_1] : memref<2x28x28xbf16, #tpu.memory_space<vmem>>, vector<2x28x28xbf16>
    %1 = vector.extract_strided_slice %0 {offsets = [0, 0, 0], sizes = [2, 24, 28], strides = [1, 1, 1]} : vector<2x28x28xbf16> to vector<2x24x28xbf16>
    %2 = vector.extract_strided_slice %0 {offsets = [0, 1, 0], sizes = [2, 24, 28], strides = [1, 1, 1]} : vector<2x28x28xbf16> to vector<2x24x28xbf16>
    %3 = vector.extract_strided_slice %0 {offsets = [0, 2, 0], sizes = [2, 24, 28], strides = [1, 1, 1]} : vector<2x28x28xbf16> to vector<2x24x28xbf16>
    %4 = vector.extract_strided_slice %0 {offsets = [0, 3, 0], sizes = [2, 24, 28], strides = [1, 1, 1]} : vector<2x28x28xbf16> to vector<2x24x28xbf16>
    %5 = vector.extract_strided_slice %0 {offsets = [0, 4, 0], sizes = [2, 24, 28], strides = [1, 1, 1]} : vector<2x28x28xbf16> to vector<2x24x28xbf16>
    %6 = tpu.concatenate %1, %2, %3, %4, %5 in 2 : vector<2x24x28xbf16>, vector<2x24x28xbf16>, vector<2x24x28xbf16>, vector<2x24x28xbf16>, vector<2x24x28xbf16> -> vector<2x24x140xbf16>
    %7 = vector.shape_cast %6 : vector<2x24x140xbf16> to vector<48x140xbf16>
    %c0_2 = arith.constant 0 : index
    %c0_3 = arith.constant 0 : index
    %8 = vector.load %arg2[%c0_2, %c0_3] : memref<140x288xbf16, #tpu.memory_space<vmem>>, vector<140x288xbf16>
    %cst = arith.constant dense<0.000000e+00> : vector<48x288xf32>
    %9 = tpu.matmul %7, %8, %cst {dimension_numbers = #tpu.dot_dimension_numbers<[1], [0], [0], [1], [0, 0, 1, 1], [], []>} : vector<48x140xbf16>, vector<140x288xbf16>, vector<48x288xf32> -> vector<48x288xf32>
    %cst_4 = arith.constant 0.000000e+00 : f32
    %10 = vector.broadcast %cst_4 : f32 to vector<48x288xf32>
    %11 = arith.maximumf %9, %10 : vector<48x288xf32>
    %12 = arith.truncf %11 : vector<48x288xf32> to vector<48x288xbf16>
    %c0_5 = arith.constant 0 : index
    %c0_6 = arith.constant 0 : index
    %13 = vector.load %arg3[%c0_5, %c0_6] : memref<288x144xbf16, #tpu.memory_space<vmem>>, vector<288x144xbf16>
    %cst_7 = arith.constant dense<0.000000e+00> : vector<48x144xf32>
    %14 = tpu.matmul %12, %13, %cst_7 {dimension_numbers = #tpu.dot_dimension_numbers<[1], [0], [0], [1], [0, 0, 1, 1], [], []>} : vector<48x288xbf16>, vector<288x144xbf16>, vector<48x144xf32> -> vector<48x144xf32>
    %15 = vector.shape_cast %14 : vector<48x144xf32> to vector<2x12x2x144xf32>
    %cst_8 = arith.constant dense<0.000000e+00> : vector<2x12x144xf32>
    %16 = vector.multi_reduction <add>, %15, %cst_8 [2] : vector<2x12x2x144xf32> to vector<2x12x144xf32>
    %17 = arith.truncf %16 : vector<2x12x144xf32> to vector<2x12x144xbf16>
    %18 = vector.extract_strided_slice %17 {offsets = [0, 0, 0], sizes = [2, 8, 144], strides = [1, 1, 1]} : vector<2x12x144xbf16> to vector<2x8x144xbf16>
    %19 = vector.extract_strided_slice %17 {offsets = [0, 1, 0], sizes = [2, 8, 144], strides = [1, 1, 1]} : vector<2x12x144xbf16> to vector<2x8x144xbf16>
    %20 = vector.extract_strided_slice %17 {offsets = [0, 2, 0], sizes = [2, 8, 144], strides = [1, 1, 1]} : vector<2x12x144xbf16> to vector<2x8x144xbf16>
    %21 = vector.extract_strided_slice %17 {offsets = [0, 3, 0], sizes = [2, 8, 144], strides = [1, 1, 1]} : vector<2x12x144xbf16> to vector<2x8x144xbf16>
    %22 = vector.extract_strided_slice %17 {offsets = [0, 4, 0], sizes = [2, 8, 144], strides = [1, 1, 1]} : vector<2x12x144xbf16> to vector<2x8x144xbf16>
    %23 = tpu.concatenate %18, %19, %20, %21, %22 in 2 : vector<2x8x144xbf16>, vector<2x8x144xbf16>, vector<2x8x144xbf16>, vector<2x8x144xbf16>, vector<2x8x144xbf16> -> vector<2x8x720xbf16>
    %24 = vector.shape_cast %23 : vector<2x8x720xbf16> to vector<16x720xbf16>
    %c0_9 = arith.constant 0 : index
    %c0_10 = arith.constant 0 : index
    %25 = vector.load %arg4[%c0_9, %c0_10] : memref<720x512xbf16, #tpu.memory_space<vmem>>, vector<720x512xbf16>
    %cst_11 = arith.constant dense<0.000000e+00> : vector<16x512xf32>
    %26 = tpu.matmul %24, %25, %cst_11 {dimension_numbers = #tpu.dot_dimension_numbers<[1], [0], [0], [1], [0, 0, 1, 1], [], []>} : vector<16x720xbf16>, vector<720x512xbf16>, vector<16x512xf32> -> vector<16x512xf32>
    %cst_12 = arith.constant 0.000000e+00 : f32
    %27 = vector.broadcast %cst_12 : f32 to vector<16x512xf32>
    %28 = arith.maximumf %26, %27 : vector<16x512xf32>
    %29 = arith.truncf %28 : vector<16x512xf32> to vector<16x512xbf16>
    %c0_13 = arith.constant 0 : index
    %c0_14 = arith.constant 0 : index
    %30 = vector.load %arg5[%c0_13, %c0_14] : memref<512x256xbf16, #tpu.memory_space<vmem>>, vector<512x256xbf16>
    %cst_15 = arith.constant dense<0.000000e+00> : vector<16x256xf32>
    %31 = tpu.matmul %29, %30, %cst_15 {dimension_numbers = #tpu.dot_dimension_numbers<[1], [0], [0], [1], [0, 0, 1, 1], [], []>} : vector<16x512xbf16>, vector<512x256xbf16>, vector<16x256xf32> -> vector<16x256xf32>
    %32 = vector.shape_cast %31 : vector<16x256xf32> to vector<2x4x2x256xf32>
    %cst_16 = arith.constant dense<0.000000e+00> : vector<2x4x256xf32>
    %33 = vector.multi_reduction <add>, %32, %cst_16 [2] : vector<2x4x2x256xf32> to vector<2x4x256xf32>
    %34 = arith.truncf %33 : vector<2x4x256xf32> to vector<2x4x256xbf16>
    %35 = vector.shape_cast %34 : vector<2x4x256xbf16> to vector<2x1024xbf16>
    %c0_17 = arith.constant 0 : index
    %c0_18 = arith.constant 0 : index
    %36 = vector.load %arg6[%c0_17, %c0_18] : memref<1024x128xbf16, #tpu.memory_space<vmem>>, vector<1024x128xbf16>
    %cst_19 = arith.constant dense<0.000000e+00> : vector<2x128xf32>
    %37 = tpu.matmul %35, %36, %cst_19 {dimension_numbers = #tpu.dot_dimension_numbers<[1], [0], [0], [1], [0, 0, 1, 1], [], []>} : vector<2x1024xbf16>, vector<1024x128xbf16>, vector<2x128xf32> -> vector<2x128xf32>
    %c0_20 = arith.constant 0 : index
    %c0_21 = arith.constant 0 : index
    %38 = vector.load %arg7[%c0_20, %c0_21] : memref<2x128xf32, #tpu.memory_space<vmem>>, vector<2x128xf32>
    tpu.vector_store %arg7[%c0_20, %c0_21], %37 {strides = array<i32>} : memref<2x128xf32, #tpu.memory_space<vmem>>, vector<2x128xf32>,
    return
  }
  func.func @transform_0(%arg0: i32) -> (i32, i32, i32) {
    %c0_i32 = arith.constant 0 : i32
    %c0_i32_0 = arith.constant 0 : i32
    %c0_i32_1 = arith.constant 0 : i32
    return %arg0, %c0_i32, %c0_i32_0 : i32, i32, i32
  }
  func.func @transform_1(%arg0: i32) -> (i32, i32) {
    %c0_i32 = arith.constant 0 : i32
    %c0_i32_0 = arith.constant 0 : i32
    %c0_i32_1 = arith.constant 0 : i32
    return %c0_i32, %c0_i32_0 : i32, i32
  }
  func.func @transform_2(%arg0: i32) -> (i32, i32) {
    %c0_i32 = arith.constant 0 : i32
    %c0_i32_0 = arith.constant 0 : i32
    %c0_i32_1 = arith.constant 0 : i32
    return %c0_i32, %c0_i32_0 : i32, i32
  }
  func.func @transform_3(%arg0: i32) -> (i32, i32) {
    %c0_i32 = arith.constant 0 : i32
    %c0_i32_0 = arith.constant 0 : i32
    %c0_i32_1 = arith.constant 0 : i32
    return %c0_i32, %c0_i32_0 : i32, i32
  }
  func.func @transform_4(%arg0: i32) -> (i32, i32) {
    %c0_i32 = arith.constant 0 : i32
    %c0_i32_0 = arith.constant 0 : i32
    %c0_i32_1 = arith.constant 0 : i32
    return %c0_i32, %c0_i32_0 : i32, i32
  }
  func.func @transform_5(%arg0: i32) -> (i32, i32) {
    %c0_i32 = arith.constant 0 : i32
    %c0_i32_0 = arith.constant 0 : i32
    %c0_i32_1 = arith.constant 0 : i32
    return %c0_i32, %c0_i32_0 : i32, i32
  }
  func.func @transform_6(%arg0: i32) -> (i32, i32) {
    %c0_i32 = arith.constant 0 : i32
    %c0_i32_0 = arith.constant 0 : i32
    return %arg0, %c0_i32 : i32, i32
  }
}

</mosaic_0001>

<llo_original>
// kernel: diehl2015_forward.1
$region0: #{diehl2015_forward.1}
  #allocation0 [shape = 'u32[]', space=smem, size = 0x4, offset = 0x4, fixed_abs, tag = 'smem constant byte address 0x4 - core index']
  #allocation1 [shape = 'u32[144,128]{1,0:T(1,128)}', space=vmem, size = 0x12000, scoped, tag = 'internal scratch']
  %s0 = inlined_call_operand.vmem [shape: bf16[2,28,28], index: 0, kind: input, shape index: {}]
  %s1 = inlined_call_operand.hbm [shape: bf16[140,288], index: 1, kind: input, shape index: {}]
  %s2 = inlined_call_operand.vmem [shape: bf16[288,144], index: 2, kind: input, shape index: {}]
  %s3 = inlined_call_operand.hbm [shape: bf16[720,512], index: 3, kind: input, shape index: {}]
  %s4 = inlined_call_operand.vmem [shape: bf16[512,256], index: 4, kind: input, shape index: {}]
  %s5 = inlined_call_operand.hbm [shape: bf16[1024,128], index: 5, kind: input, shape index: {}]
  %s6 = inlined_call_operand.hbm [shape: f32[2,128], index: 6, kind: output, shape index: {}]
  %s7 = sld [smem:[#allocation0]]
  $region46: #{diehl2015_forward.1} parent=0
    _
  %s9 = ssub.s32 1, %s7
  %s10 = scalar_select 0, %s9, %s7
  $region1: #{diehl2015_forward.1} parent=0
    #allocation2 [shape = 'u8[110592]{0}', space=vmem, size = 0x1b000, scoped, tag = 'input window, operand 1, single buffered']
    #allocation3 [shape = 's32[1]{0}', space=sflag, size = 0x4, scoped, tag = 'scoped memory for diehl2015_forward.1']
    #allocation4 [shape = 's32[1]{0}', space=sflag, size = 0x4, scoped, tag = 'scoped memory for diehl2015_forward.1']
    #allocation5 [shape = 'u8[737280]{0}', space=vmem, size = 0xb4000, scoped, tag = 'input window, operand 3, single buffered']
    #allocation6 [shape = 's32[1]{0}', space=sflag, size = 0x4, scoped, tag = 'scoped memory for diehl2015_forward.1']
    #allocation7 [shape = 'u8[262144]{0}', space=vmem, size = 0x40000, scoped, tag = 'input window, operand 5, single buffered']
    #allocation8 [shape = 'u8[1024]{0}', space=vmem, size = 0x400, scoped, tag = 'output window, operand 0, single buffered']
    %11 = vsyncpa [#allocation3], 0
    %12 = vsyncpa [#allocation6], 0
    %13 = vsyncpa [#allocation4], 0
    // Predicated region
    $region2: #{diehl2015_forward.1} parent=1 // pred_check
      _
    $region3: #{diehl2015_forward.1} parent=1 // pred_check_branch
      %15 = sbr.rel (0) target = $region5
    $region4: #{diehl2015_forward.1} parent=1 // pred_region
      _
    $region5: #{diehl2015_forward.1} parent=1 // pred_fallthru
      _
    // Predicated region
    $region6: #{diehl2015_forward.1} parent=1 // pred_check
      _
    $region7: #{diehl2015_forward.1} parent=1 // pred_check_branch
      %17 = sbr.rel (0) target = $region9
    $region8: #{diehl2015_forward.1} parent=1 // pred_region
      %s19 = ssub.s32 3456, 3456
      %20 = vsyncadd [#allocation3], %s19
      %s21 = sshll.u32 [#allocation2], 4
      %s22 = int_to_ptr.vmem [resolvable:$true] %s21
      %27 = dma.hbm_to_vmem [thread:$0]  %s1, 3456, %s22, [#allocation3], 192, 192, 12
    $region9: #{diehl2015_forward.1} parent=1 // pred_fallthru
      _
    // Predicated region
    $region10: #{diehl2015_forward.1} parent=1 // pred_check
      _
    $region11: #{diehl2015_forward.1} parent=1 // pred_check_branch
      %29 = sbr.rel (0) target = $region13
    $region12: #{diehl2015_forward.1} parent=1 // pred_region
      _
    $region13: #{diehl2015_forward.1} parent=1 // pred_fallthru
      _
    // Predicated region
    $region14: #{diehl2015_forward.1} parent=1 // pred_check
      _
    $region15: #{diehl2015_forward.1} parent=1 // pred_check_branch
      %31 = sbr.rel (0) target = $region17
    $region16: #{diehl2015_forward.1} parent=1 // pred_region
      %s33 = ssub.s32 23040, 23040
      %34 = vsyncadd [#allocation6], %s33
      %s35 = sshll.u32 [#allocation5], 4
      %s36 = int_to_ptr.vmem [resolvable:$true] %s35
      %41 = dma.hbm_to_vmem [thread:$0]  %s3, 23040, %s36, [#allocation6], 256, 256, 16
    $region17: #{diehl2015_forward.1} parent=1 // pred_fallthru
      _
    // Predicated region
    $region18: #{diehl2015_forward.1} parent=1 // pred_check
      _
    $region19: #{diehl2015_forward.1} parent=1 // pred_check_branch
      %43 = sbr.rel (0) target = $region21
    $region20: #{diehl2015_forward.1} parent=1 // pred_region
      _
    $region21: #{diehl2015_forward.1} parent=1 // pred_fallthru
      _
    // Predicated region
    $region22: #{diehl2015_forward.1} parent=1 // pred_check
      _
    $region23: #{diehl2015_forward.1} parent=1 // pred_check_branch
      %45 = sbr.rel (0) target = $region25
    $region24: #{diehl2015_forward.1} parent=1 // pred_region
      %s47 = ssub.s32 8192, 8192
      %48 = vsyncadd [#allocation6], %s47
      %s49 = sshll.u32 [#allocation7], 4
      %s50 = int_to_ptr.vmem [resolvable:$true] %s49
      %55 = dma.hbm_to_vmem [thread:$0]  %s5, 8192, %s50, [#allocation6], 64, 64, 4
    $region25: #{diehl2015_forward.1} parent=1 // pred_fallthru
      _
    // Predicated region
    $region26: #{diehl2015_forward.1} parent=1 // pred_check
      _
    $region27: #{diehl2015_forward.1} parent=1 // pred_check_branch
      %57 = sbr.rel (0) target = $region29
    $region28: #{diehl2015_forward.1} parent=1 // pred_region
      %58 = dma.done [#allocation3], 3456
    $region29: #{diehl2015_forward.1} parent=1 // pred_fallthru
      _
    // Predicated region
    $region30: #{diehl2015_forward.1} parent=1 // pred_check
      _
    $region31: #{diehl2015_forward.1} parent=1 // pred_check_branch
      %60 = sbr.rel (0) target = $region33
    $region32: #{diehl2015_forward.1} parent=1 // pred_region
      %61 = dma.done [#allocation6], 23040
    $region33: #{diehl2015_forward.1} parent=1 // pred_fallthru
      _
    // Predicated region
    $region34: #{diehl2015_forward.1} parent=1 // pred_check
      _
    $region35: #{diehl2015_forward.1} parent=1 // pred_check_branch
      %63 = sbr.rel (0) target = $region37
    $region36: #{diehl2015_forward.1} parent=1 // pred_region
      %64 = dma.done [#allocation6], 8192
    $region37: #{diehl2015_forward.1} parent=1 // pred_fallthru
      _
    %v66 = vld [vmem:[%s0] sm:$0xf]
    %v67 = vld [vmem:[%s0 + $0x4] sm:$0xf]
    %v68 = vld [vmem:[%s0 + $0x8] sm:$0xf]
    %v69 = vld [vmem:[%s0 + $0xc] sm:$0x3]
    %v70 = vld [vmem:[%s0 + $0x10] sm:$0xf]
    %v71 = vld [vmem:[%s0 + $0x14] sm:$0xf]
    %v72 = vld [vmem:[%s0 + $0x18] sm:$0xf]
    %v73 = vld [vmem:[%s0 + $0x1c] sm:$0x3]
    %v80 = vunpack.c.l.b16 %v66
    %v81 = vunpack.c.l.b16 %v67
    %v82 = vunpack.c.l.b16 %v68
    %v83 = vunpack.c.l.b16 %v70
    %v84 = vunpack.c.l.b16 %v71
    %v85 = vunpack.c.l.b16 %v72
    %v86 = vpack.c.b16 %v81, %v80
    %v87 = vpack.c.b16 %v82, %v82
    %v88 = vpack.c.b16 %v84, %v83
    %v89 = vpack.c.b16 %v85, %v85
    %v92 = vunpack.c.l.b16 %v69
    %v93 = vunpack.c.l.b16 %v73
    %v94 = vpack.c.b16 %v92, %v82
    %v95 = vpack.c.b16 %v93, %v85
    %vm96 = vsmask.f32 7424
    %v98 = vshrl.u32 %v86, 16
    %v100 = vshll.u32 %v86, 16
    %v102 = vrot.slane %v100, 1
    %v103 = vor.u32 %v98, %v102
    %v105 = vshll.u32 %v94, 16
    %v107 = vrot.slane %v105, 1
    %v108 = vsel %vm96, %v103, %v107
    %v109 = vshrl.u32 %v94, 16
    %v111 = vor.u32 %v109, %v107
    %v113 = vshrl.u32 %v88, 16
    %v115 = vshll.u32 %v88, 16
    %v117 = vrot.slane %v115, 1
    %v118 = vor.u32 %v113, %v117
    %v120 = vshll.u32 %v95, 16
    %v122 = vrot.slane %v120, 1
    %v123 = vsel %vm96, %v118, %v122
    %v124 = vshrl.u32 %v95, 16
    %v126 = vor.u32 %v124, %v122
    %127 = vrot.lane.b32.xlu0 %v108, 28
    %v128 = vpop.permute.xlu0 %127
    %129 = vrot.lane.b32.xlu0 %v111, 28
    %v130 = vpop.permute.xlu0 %129
    %131 = vrot.lane.b32.xlu0 %v123, 28
    %v132 = vpop.permute.xlu0 %131
    %133 = vrot.lane.b32.xlu0 %v126, 28
    %v134 = vpop.permute.xlu0 %133
    %vm135 = vcmask 1046528
    %v136 = vrot.slane %v86, 1
    %v137 = vrot.slane %v94, 1
    %v138 = vsel %vm135, %v136, %v137
    %v139 = vrot.slane %v88, 1
    %v140 = vrot.slane %v95, 1
    %v141 = vsel %vm135, %v139, %v140
    %142 = vrot.lane.b32.xlu0 %v138, 56
    %v143 = vpop.permute.xlu0 %142
    %144 = vrot.lane.b32.xlu0 %v137, 56
    %v145 = vpop.permute.xlu0 %144
    %146 = vrot.lane.b32.xlu0 %v141, 56
    %v147 = vpop.permute.xlu0 %146
    %148 = vrot.lane.b32.xlu0 %v140, 56
    %v149 = vpop.permute.xlu0 %148
    %vm150 = vsmask.f32 6400
    %v151 = vrot.slane %v98, 1
    %v152 = vrot.slane %v100, 2
    %v153 = vor.u32 %v151, %v152
    %v154 = vrot.slane %v109, 1
    %v155 = vrot.slane %v105, 2
    %v156 = vor.u32 %v154, %v155
    %v157 = vsel %vm150, %v153, %v156
    %v158 = vrot.slane %v113, 1
    %v159 = vrot.slane %v115, 2
    %v160 = vor.u32 %v158, %v159
    %v161 = vrot.slane %v124, 1
    %v162 = vrot.slane %v120, 2
    %v163 = vor.u32 %v161, %v162
    %v164 = vsel %vm150, %v160, %v163
    %165 = vrot.lane.b32.xlu0 %v157, 84
    %v166 = vpop.permute.xlu0 %165
    %167 = vrot.lane.b32.xlu0 %v156, 84
    %v168 = vpop.permute.xlu0 %167
    %169 = vrot.lane.b32.xlu0 %v164, 84
    %v170 = vpop.permute.xlu0 %169
    %171 = vrot.lane.b32.xlu0 %v163, 84
    %v172 = vpop.permute.xlu0 %171
    %vm173 = vcmask 1045504
    %v174 = vrot.slane %v86, 2
    %v175 = vrot.slane %v94, 2
    %v176 = vsel %vm173, %v174, %v175
    %v177 = vrot.slane %v88, 2
    %v178 = vrot.slane %v95, 2
    %v179 = vsel %vm173, %v177, %v178
    %180 = vrot.lane.b32.xlu0 %v176, 112
    %v181 = vpop.permute.xlu0 %180
    %182 = vrot.lane.b32.xlu0 %v175, 112
    %v183 = vpop.permute.xlu0 %182
    %184 = vrot.lane.b32.xlu0 %v179, 112
    %v185 = vpop.permute.xlu0 %184
    %186 = vrot.lane.b32.xlu0 %v178, 112
    %v187 = vpop.permute.xlu0 %186
    %vm188 = vcmask 228352
    %v190 = vsel %vm188, %v86, %v128
    %v193 = vsel %vm188, %v87, %v130
    %v195 = vsel %vm188, %v88, %v132
    %v198 = vsel %vm188, %v89, %v134
    %vm199 = vcmask 457728
    %v201 = vsel %vm199, %v190, %v143
    %v203 = vsel %vm199, %v193, %v145
    %v205 = vsel %vm199, %v195, %v147
    %v207 = vsel %vm199, %v198, %v149
    %vm208 = vcmask 687104
    %v210 = vsel %vm208, %v201, %v166
    %v212 = vsel %vm208, %v203, %v168
    %v214 = vsel %vm208, %v205, %v170
    %v216 = vsel %vm208, %v207, %v172
    %vm217 = vcmask 916480
    %v219 = vsel %vm217, %v210, %v181
    %v221 = vsel %vm217, %v212, %v183
    %v223 = vsel %vm217, %v214, %v185
    %v225 = vsel %vm217, %v216, %v187
    %v230 = vunpack.c.l.b16 %v219
    %v231 = vunpack.c.l.b16 %v181
    %v232 = vunpack.c.h.b16 %v219
    %v233 = vunpack.c.h.b16 %v181
    %v234 = vunpack.c.l.b16 %v221
    %v235 = vunpack.c.l.b16 %v183
    %v236 = vunpack.c.l.b16 %v223
    %v237 = vunpack.c.l.b16 %v185
    %v238 = vunpack.c.h.b16 %v223
    %v239 = vunpack.c.h.b16 %v185
    %v240 = vunpack.c.l.b16 %v225
    %v241 = vunpack.c.l.b16 %v187
    %v242 = vld [vmem:[#allocation2] sm:$0xff]
    %v243 = vld [vmem:[#allocation2 + $0x8] sm:$0xf]
    %v244 = vld [vmem:[#allocation2 + $0xc] sm:$0xff]
    %v245 = vld [vmem:[#allocation2 + $0x14] sm:$0xf]
    %v246 = vld [vmem:[#allocation2 + $0x18] sm:$0xff]
    %v247 = vld [vmem:[#allocation2 + $0x20] sm:$0xf]
    %v248 = vld [vmem:[#allocation2 + $0x24] sm:$0xff]
    %v249 = vld [vmem:[#allocation2 + $0x2c] sm:$0xf]
    %v250 = vld [vmem:[#allocation2 + $0x30] sm:$0xff]
    %v251 = vld [vmem:[#allocation2 + $0x38] sm:$0xf]
    %v252 = vld [vmem:[#allocation2 + $0x3c] sm:$0xff]
    %v253 = vld [vmem:[#allocation2 + $0x44] sm:$0xf]
    %v254 = vld [vmem:[#allocation2 + $0x48] sm:$0xff]
    %v255 = vld [vmem:[#allocation2 + $0x50] sm:$0xf]
    %v256 = vld [vmem:[#allocation2 + $0x54] sm:$0xff]
    %v257 = vld [vmem:[#allocation2 + $0x5c] sm:$0xf]
    %v258 = vld [vmem:[#allocation2 + $0x60] sm:$0xff]
    %v259 = vld [vmem:[#allocation2 + $0x68] sm:$0xf]
    %v260 = vld [vmem:[#allocation2 + $0x6c] sm:$0xff]
    %v261 = vld [vmem:[#allocation2 + $0x74] sm:$0xf]
    %v262 = vld [vmem:[#allocation2 + $0x78] sm:$0xff]
    %v263 = vld [vmem:[#allocation2 + $0x80] sm:$0xf]
    %v264 = vld [vmem:[#allocation2 + $0x84] sm:$0xff]
    %v265 = vld [vmem:[#allocation2 + $0x8c] sm:$0xf]
    %v266 = vld [vmem:[#allocation2 + $0x90] sm:$0xff]
    %v267 = vld [vmem:[#allocation2 + $0x98] sm:$0xf]
    %v268 = vld [vmem:[#allocation2 + $0x9c] sm:$0xff]
    %v269 = vld [vmem:[#allocation2 + $0xa4] sm:$0xf]
    %v270 = vld [vmem:[#allocation2 + $0xa8] sm:$0xff]
    %v271 = vld [vmem:[#allocation2 + $0xb0] sm:$0xf]
    %v272 = vld [vmem:[#allocation2 + $0xb4] sm:$0xff]
    %v273 = vld [vmem:[#allocation2 + $0xbc] sm:$0xf]
    %v274 = vld [vmem:[#allocation2 + $0xc0] sm:$0xff]
    %v275 = vld [vmem:[#allocation2 + $0xc8] sm:$0xf]
    %v276 = vld [vmem:[#allocation2 + $0xcc] sm:$0x33]
    %v277 = vld [vmem:[#allocation2 + $0xd4] sm:$0x3]
    %v278 = vpack.c.b16 %v232, %v230
    %v279 = vpack.c.b16 %v233, %v231
    %v280 = vpack.c.b16 %v236, %v234
    %v281 = vpack.c.b16 %v237, %v235
    %v282 = vpack.c.b16 %v240, %v238
    %v283 = vpack.c.b16 %v241, %v239
    %v323 = vunpack.c.l.b16 %v242
    %v324 = vunpack.c.h.b16 %v242
    %v325 = vunpack.c.l.b16 %v243
    %v326 = vunpack.c.l.b16 %v244
    %v327 = vunpack.c.h.b16 %v244
    %v328 = vunpack.c.l.b16 %v245
    %v329 = vunpack.c.l.b16 %v246
    %v330 = vunpack.c.h.b16 %v246
    %v331 = vunpack.c.l.b16 %v247
    %v332 = vunpack.c.l.b16 %v248
    %v333 = vunpack.c.h.b16 %v248
    %v334 = vunpack.c.l.b16 %v249
    %v335 = vunpack.c.l.b16 %v250
    %v336 = vunpack.c.h.b16 %v250
    %v337 = vunpack.c.l.b16 %v251
    %v338 = vunpack.c.l.b16 %v252
    %v339 = vunpack.c.h.b16 %v252
    %v340 = vunpack.c.l.b16 %v253
    %v341 = vunpack.c.l.b16 %v254
    %v342 = vunpack.c.h.b16 %v254
    %v343 = vunpack.c.l.b16 %v255
    %v344 = vunpack.c.l.b16 %v256
    %v345 = vunpack.c.h.b16 %v256
    %v346 = vunpack.c.l.b16 %v257
    %v347 = vunpack.c.l.b16 %v258
    %v348 = vunpack.c.h.b16 %v258
    %v349 = vunpack.c.l.b16 %v259
    %v350 = vunpack.c.l.b16 %v260
    %v351 = vunpack.c.h.b16 %v260
    %v352 = vunpack.c.l.b16 %v261
    %v353 = vunpack.c.l.b16 %v262
    %v354 = vunpack.c.h.b16 %v262
    %v355 = vunpack.c.l.b16 %v263
    %v356 = vunpack.c.l.b16 %v264
    %v357 = vunpack.c.h.b16 %v264
    %v358 = vunpack.c.l.b16 %v265
    %v359 = vunpack.c.l.b16 %v266
    %v360 = vunpack.c.h.b16 %v266
    %v361 = vunpack.c.l.b16 %v267
    %v362 = vunpack.c.l.b16 %v268
    %v363 = vunpack.c.h.b16 %v268
    %v364 = vunpack.c.l.b16 %v269
    %v365 = vunpack.c.l.b16 %v270
    %v366 = vunpack.c.h.b16 %v270
    %v367 = vunpack.c.l.b16 %v271
    %v368 = vunpack.c.l.b16 %v272
    %v369 = vunpack.c.h.b16 %v272
    %v370 = vunpack.c.l.b16 %v273
    %v371 = vunpack.c.l.b16 %v274
    %v372 = vunpack.c.h.b16 %v274
    %v373 = vunpack.c.l.b16 %v275
    %v374 = vunpack.c.l.b16 %v276
    %v375 = vunpack.c.h.b16 %v276
    %v376 = vunpack.c.l.b16 %v277
    %v377 = vpack.c.b16 %v326, %v323
    %v378 = vpack.c.b16 %v327, %v324
    %v379 = vpack.c.b16 %v328, %v325
    %v380 = vpack.c.b16 %v332, %v329
    %v381 = vpack.c.b16 %v333, %v330
    %v382 = vpack.c.b16 %v334, %v331
    %v383 = vpack.c.b16 %v338, %v335
    %v384 = vpack.c.b16 %v339, %v336
    %v385 = vpack.c.b16 %v340, %v337
    %v386 = vpack.c.b16 %v344, %v341
    %v387 = vpack.c.b16 %v345, %v342
    %v388 = vpack.c.b16 %v346, %v343
    %v389 = vpack.c.b16 %v350, %v347
    %v390 = vpack.c.b16 %v351, %v348
    %v391 = vpack.c.b16 %v352, %v349
    %v392 = vpack.c.b16 %v356, %v353
    %v393 = vpack.c.b16 %v357, %v354
    %v394 = vpack.c.b16 %v358, %v355
    %v395 = vpack.c.b16 %v362, %v359
    %v396 = vpack.c.b16 %v363, %v360
    %v397 = vpack.c.b16 %v364, %v361
    %v398 = vpack.c.b16 %v368, %v365
    %v399 = vpack.c.b16 %v369, %v366
    %v400 = vpack.c.b16 %v370, %v367
    %v401 = vpack.c.b16 %v374, %v371
    %v402 = vpack.c.b16 %v375, %v372
    %v403 = vpack.c.b16 %v376, %v373
    %vm428 = vcmask 97280
    %v430 = vsel %vm428, %v279, 0
    %v433 = vsel %vm428, %v281, 0
    %v436 = vsel %vm428, %v283, 0
    %vm438 = vcmask 1045504
    %v440 = vsel %vm438, %v401, 0
    %v443 = vsel %vm438, %v402, 0
    %v446 = vsel %vm438, %v403, 0
    %448 = vmatprep.subr.bf16.mxu0 %v378
    %449 = vmatpush1.bf16.msra.mxu0 %v377
    %450 = vmatprep.subr.bf16.mxu0 %v381
    %451 = vmatpush1.bf16.msra.mxu0 %v380
    %452 = vmatprep.subr.bf16.mxu0 %v384
    %453 = vmatpush1.bf16.msra.mxu0 %v383
    %454 = vmatprep.subr.bf16.mxu0 %v387
    %455 = vmatpush1.bf16.msra.mxu0 %v386
    %456 = vmatprep.subr.bf16.mxu0 %v390
    %457 = vmatpush1.bf16.msra.mxu0 %v389
    %458 = vmatprep.subr.bf16.mxu0 %v393
    %459 = vmatpush1.bf16.msra.mxu0 %v392
    %460 = vmatprep.subr.bf16.mxu0 %v396
    %461 = vmatpush1.bf16.msra.mxu0 %v395
    %462 = vmatprep.subr.bf16.mxu0 %v399
    %463 = vmatpush1.bf16.msra.mxu0 %v398
    %464 = vmatprep.subr.bf16.mxu0 %v443
    %465 = vmatpush1.bf16.msra.mxu0 %v440
    %466 = vmatprep.subr.bf16.mxu0 0
    %467 = vmatpush1.bf16.msra.mxu0 0
    %468 = vmatprep.subr.bf16.mxu0 0
    %469 = vmatpush1.bf16.msra.mxu0 0
    %470 = vmatprep.subr.bf16.mxu0 0
    %471 = vmatpush1.bf16.msra.mxu0 0
    %472 = vmatprep.subr.bf16.mxu0 0
    %473 = vmatpush1.bf16.msra.mxu0 0
    %474 = vmatprep.subr.bf16.mxu0 0
    %475 = vmatpush1.bf16.msra.mxu0 0
    %476 = vmatprep.subr.bf16.mxu0 0
    %477 = vmatpush1.bf16.msra.mxu0 0
    %478 = vmatprep.subr.bf16.mxu0 0
    %479 = vmatpush1.bf16.msra.mxu0 0
    %480 = vmatprep.mubr.bf16.mxu0 %v430
    %481 = vmatmul.mubr.bf16.gmra.mrb[0].mxu0 %v278
    %v482 = vpop.f32.mrb[0].mxu0
    %v483 = vadd.f32 0.0, %v482
    %v484 = vpop.f32.mrb[0].mxu0
    %v485 = vadd.f32 0.0, %v484
    %v486 = vpop.f32.mrb[0].mxu0
    %v487 = vadd.f32 0.0, %v486
    %v488 = vpop.f32.mrb[0].mxu0
    %v489 = vadd.f32 0.0, %v488
    %490 = vmatprep.mubr.bf16.mxu0 %v433
    %491 = vmatmul.mubr.bf16.gmra.mrb[0].mxu0 %v280
    %v492 = vpop.f32.mrb[0].mxu0
    %v493 = vadd.f32 0.0, %v492
    %v494 = vpop.f32.mrb[0].mxu0
    %v495 = vadd.f32 0.0, %v494
    %v496 = vpop.f32.mrb[0].mxu0
    %v497 = vadd.f32 0.0, %v496
    %v498 = vpop.f32.mrb[0].mxu0
    %v499 = vadd.f32 0.0, %v498
    %500 = vmatprep.mubr.bf16.mxu0 %v436
    %501 = vmatmul.mubr.bf16.gmra.mrb[0].mxu0 %v282
    %v502 = vpop.f32.mrb[0].mxu0
    %v503 = vadd.f32 0.0, %v502
    %v504 = vpop.f32.mrb[0].mxu0
    %v505 = vadd.f32 0.0, %v504
    %v506 = vpop.f32.mrb[0].mxu0
    %v507 = vadd.f32 0.0, %v506
    %v508 = vpop.f32.mrb[0].mxu0
    %v509 = vadd.f32 0.0, %v508
    %510 = vdwg.mxu0
    %511 = vmatprep.subr.bf16.mxu0 0
    %512 = vmatpush1.bf16.msra.mxu0 %v379
    %513 = vmatprep.subr.bf16.mxu0 0
    %514 = vmatpush1.bf16.msra.mxu0 %v382
    %515 = vmatprep.subr.bf16.mxu0 0
    %516 = vmatpush1.bf16.msra.mxu0 %v385
    %517 = vmatprep.subr.bf16.mxu0 0
    %518 = vmatpush1.bf16.msra.mxu0 %v388
    %519 = vmatprep.subr.bf16.mxu0 0
    %520 = vmatpush1.bf16.msra.mxu0 %v391
    %521 = vmatprep.subr.bf16.mxu0 0
    %522 = vmatpush1.bf16.msra.mxu0 %v394
    %523 = vmatprep.subr.bf16.mxu0 0
    %524 = vmatpush1.bf16.msra.mxu0 %v397
    %525 = vmatprep.subr.bf16.mxu0 0
    %526 = vmatpush1.bf16.msra.mxu0 %v400
    %527 = vmatprep.subr.bf16.mxu0 0
    %528 = vmatpush1.bf16.msra.mxu0 %v446
    %529 = vmatprep.subr.bf16.mxu0 0
    %530 = vmatpush1.bf16.msra.mxu0 0
    %531 = vmatprep.subr.bf16.mxu0 0
    %532 = vmatpush1.bf16.msra.mxu0 0
    %533 = vmatprep.subr.bf16.mxu0 0
    %534 = vmatpush1.bf16.msra.mxu0 0
    %535 = vmatprep.subr.bf16.mxu0 0
    %536 = vmatpush1.bf16.msra.mxu0 0
    %537 = vmatprep.subr.bf16.mxu0 0
    %538 = vmatpush1.bf16.msra.mxu0 0
    %539 = vmatprep.subr.bf16.mxu0 0
    %540 = vmatpush1.bf16.msra.mxu0 0
    %541 = vmatprep.subr.bf16.mxu0 0
    %542 = vmatpush1.bf16.msra.mxu0 0
    %543 = vmatprep.mubr.bf16.mxu0 %v430
    %544 = vmatmul.mubr.bf16.gmra.mrb[0].mxu0 %v278
    %v545 = vpop.f32.mrb[0].mxu0
    %v546 = vadd.f32 0.0, %v545
    %v547 = vpop.f32.mrb[0].mxu0
    %v548 = vpop.f32.mrb[0].mxu0
    %v549 = vadd.f32 0.0, %v548
    %v550 = vpop.f32.mrb[0].mxu0
    %551 = vmatprep.mubr.bf16.mxu0 %v433
    %552 = vmatmul.mubr.bf16.gmra.mrb[0].mxu0 %v280
    %v553 = vpop.f32.mrb[0].mxu0
    %v554 = vadd.f32 0.0, %v553
    %v555 = vpop.f32.mrb[0].mxu0
    %v556 = vpop.f32.mrb[0].mxu0
    %v557 = vadd.f32 0.0, %v556
    %v558 = vpop.f32.mrb[0].mxu0
    %559 = vmatprep.mubr.bf16.mxu0 %v436
    %560 = vmatmul.mubr.bf16.gmra.mrb[0].mxu0 %v282
    %v561 = vpop.f32.mrb[0].mxu0
    %v562 = vadd.f32 0.0, %v561
    %v563 = vpop.f32.mrb[0].mxu0
    %v564 = vpop.f32.mrb[0].mxu0
    %v565 = vadd.f32 0.0, %v564
    %v566 = vpop.f32.mrb[0].mxu0
    %567 = vdwg.mxu0
    %v568 = vmax.f32 %v483, 0.0
    %v569 = vmax.f32 %v485, 0.0
    %v570 = vmax.f32 %v546, 0.0
    %v571 = vmax.f32 %v487, 0.0
    %v572 = vmax.f32 %v489, 0.0
    %v573 = vmax.f32 %v549, 0.0
    %v574 = vmax.f32 %v493, 0.0
    %v575 = vmax.f32 %v495, 0.0
    %v576 = vmax.f32 %v554, 0.0
    %v577 = vmax.f32 %v497, 0.0
    %v578 = vmax.f32 %v499, 0.0
    %v579 = vmax.f32 %v557, 0.0
    %v580 = vmax.f32 %v503, 0.0
    %v581 = vmax.f32 %v505, 0.0
    %v582 = vmax.f32 %v562, 0.0
    %v583 = vmax.f32 %v507, 0.0
    %v584 = vmax.f32 %v509, 0.0
    %v585 = vmax.f32 %v565, 0.0
    %v586 = vpack.c.bf16 %v571, %v568
    %v587 = vpack.c.bf16 %v572, %v569
    %v588 = vpack.c.bf16 %v573, %v570
    %v589 = vpack.c.bf16 %v577, %v574
    %v590 = vpack.c.bf16 %v578, %v575
    %v591 = vpack.c.bf16 %v579, %v576
    %v592 = vpack.c.bf16 %v583, %v580
    %v593 = vpack.c.bf16 %v584, %v581
    %v594 = vpack.c.bf16 %v585, %v582
    %v595 = vld [vmem:[%s2] sm:$0xff]
    %v596 = vld [vmem:[%s2 + $0x8] sm:$0xff]
    %v597 = vld [vmem:[%s2 + $0x10] sm:$0xff]
    %v598 = vld [vmem:[%s2 + $0x18] sm:$0xff]
    %v599 = vld [vmem:[%s2 + $0x20] sm:$0xff]
    %v600 = vld [vmem:[%s2 + $0x28] sm:$0xff]
    %v601 = vld [vmem:[%s2 + $0x30] sm:$0xff]
    %v602 = vld [vmem:[%s2 + $0x38] sm:$0xff]
    %v603 = vld [vmem:[%s2 + $0x40] sm:$0xff]
    %v604 = vld [vmem:[%s2 + $0x48] sm:$0xff]
    %v605 = vld [vmem:[%s2 + $0x50] sm:$0xff]
    %v606 = vld [vmem:[%s2 + $0x58] sm:$0xff]
    %v607 = vld [vmem:[%s2 + $0x60] sm:$0xff]
    %v608 = vld [vmem:[%s2 + $0x68] sm:$0xff]
    %v609 = vld [vmem:[%s2 + $0x70] sm:$0xff]
    %v610 = vld [vmem:[%s2 + $0x78] sm:$0xff]
    %v611 = vld [vmem:[%s2 + $0x80] sm:$0xff]
    %v612 = vld [vmem:[%s2 + $0x88] sm:$0xff]
    %v613 = vld [vmem:[%s2 + $0x90] sm:$0xff]
    %v614 = vld [vmem:[%s2 + $0x98] sm:$0xff]
    %v615 = vld [vmem:[%s2 + $0xa0] sm:$0xff]
    %v616 = vld [vmem:[%s2 + $0xa8] sm:$0xff]
    %v617 = vld [vmem:[%s2 + $0xb0] sm:$0xff]
    %v618 = vld [vmem:[%s2 + $0xb8] sm:$0xff]
    %v619 = vld [vmem:[%s2 + $0xc0] sm:$0xff]
    %v620 = vld [vmem:[%s2 + $0xc8] sm:$0xff]
    %v621 = vld [vmem:[%s2 + $0xd0] sm:$0xff]
    %v622 = vld [vmem:[%s2 + $0xd8] sm:$0xff]
    %v623 = vld [vmem:[%s2 + $0xe0] sm:$0xff]
    %v624 = vld [vmem:[%s2 + $0xe8] sm:$0xff]
    %v625 = vld [vmem:[%s2 + $0xf0] sm:$0xff]
    %v626 = vld [vmem:[%s2 + $0xf8] sm:$0xff]
    %v627 = vld [vmem:[%s2 + $0x100] sm:$0xff]
    %v628 = vld [vmem:[%s2 + $0x108] sm:$0xff]
    %v629 = vld [vmem:[%s2 + $0x110] sm:$0xff]
    %v630 = vld [vmem:[%s2 + $0x118] sm:$0xff]
    %v667 = vunpack.c.l.b16 %v595
    %v668 = vunpack.c.h.b16 %v595
    %v669 = vunpack.c.l.b16 %v596
    %v670 = vunpack.c.h.b16 %v596
    %v671 = vunpack.c.l.b16 %v597
    %v672 = vunpack.c.h.b16 %v597
    %v673 = vunpack.c.l.b16 %v598
    %v674 = vunpack.c.h.b16 %v598
    %v675 = vunpack.c.l.b16 %v599
    %v676 = vunpack.c.h.b16 %v599
    %v677 = vunpack.c.l.b16 %v600
    %v678 = vunpack.c.h.b16 %v600
    %v679 = vunpack.c.l.b16 %v601
    %v680 = vunpack.c.h.b16 %v601
    %v681 = vunpack.c.l.b16 %v602
    %v682 = vunpack.c.h.b16 %v602
    %v683 = vunpack.c.l.b16 %v603
    %v684 = vunpack.c.h.b16 %v603
    %v685 = vunpack.c.l.b16 %v604
    %v686 = vunpack.c.h.b16 %v604
    %v687 = vunpack.c.l.b16 %v605
    %v688 = vunpack.c.h.b16 %v605
    %v689 = vunpack.c.l.b16 %v606
    %v690 = vunpack.c.h.b16 %v606
    %v691 = vunpack.c.l.b16 %v607
    %v692 = vunpack.c.h.b16 %v607
    %v693 = vunpack.c.l.b16 %v608
    %v694 = vunpack.c.h.b16 %v608
    %v695 = vunpack.c.l.b16 %v609
    %v696 = vunpack.c.h.b16 %v609
    %v697 = vunpack.c.l.b16 %v610
    %v698 = vunpack.c.h.b16 %v610
    %v699 = vunpack.c.l.b16 %v611
    %v700 = vunpack.c.h.b16 %v611
    %v701 = vunpack.c.l.b16 %v612
    %v702 = vunpack.c.h.b16 %v612
    %v703 = vunpack.c.l.b16 %v613
    %v704 = vunpack.c.h.b16 %v613
    %v705 = vunpack.c.l.b16 %v614
    %v706 = vunpack.c.h.b16 %v614
    %v707 = vunpack.c.l.b16 %v615
    %v708 = vunpack.c.h.b16 %v615
    %v709 = vunpack.c.l.b16 %v616
    %v710 = vunpack.c.h.b16 %v616
    %v711 = vunpack.c.l.b16 %v617
    %v712 = vunpack.c.h.b16 %v617
    %v713 = vunpack.c.l.b16 %v618
    %v714 = vunpack.c.h.b16 %v618
    %v715 = vunpack.c.l.b16 %v619
    %v716 = vunpack.c.h.b16 %v619
    %v717 = vunpack.c.l.b16 %v620
    %v718 = vunpack.c.h.b16 %v620
    %v719 = vunpack.c.l.b16 %v621
    %v720 = vunpack.c.h.b16 %v621
    %v721 = vunpack.c.l.b16 %v622
    %v722 = vunpack.c.h.b16 %v622
    %v723 = vunpack.c.l.b16 %v623
    %v724 = vunpack.c.h.b16 %v623
    %v725 = vunpack.c.l.b16 %v624
    %v726 = vunpack.c.h.b16 %v624
    %v727 = vunpack.c.l.b16 %v625
    %v728 = vunpack.c.h.b16 %v625
    %v729 = vunpack.c.l.b16 %v626
    %v730 = vunpack.c.h.b16 %v626
    %v731 = vunpack.c.l.b16 %v627
    %v732 = vunpack.c.h.b16 %v627
    %v733 = vunpack.c.l.b16 %v628
    %v734 = vunpack.c.h.b16 %v628
    %v735 = vunpack.c.l.b16 %v629
    %v736 = vunpack.c.h.b16 %v629
    %v737 = vunpack.c.l.b16 %v630
    %v738 = vunpack.c.h.b16 %v630
    %v739 = vpack.c.b16 %v669, %v667
    %v740 = vpack.c.b16 %v670, %v668
    %v741 = vpack.c.b16 %v673, %v671
    %v742 = vpack.c.b16 %v674, %v672
    %v743 = vpack.c.b16 %v677, %v675
    %v744 = vpack.c.b16 %v678, %v676
    %v745 = vpack.c.b16 %v681, %v679
    %v746 = vpack.c.b16 %v682, %v680
    %v747 = vpack.c.b16 %v685, %v683
    %v748 = vpack.c.b16 %v686, %v684
    %v749 = vpack.c.b16 %v689, %v687
    %v750 = vpack.c.b16 %v690, %v688
    %v751 = vpack.c.b16 %v693, %v691
    %v752 = vpack.c.b16 %v694, %v692
    %v753 = vpack.c.b16 %v697, %v695
    %v754 = vpack.c.b16 %v698, %v696
    %v755 = vpack.c.b16 %v701, %v699
    %v756 = vpack.c.b16 %v702, %v700
    %v757 = vpack.c.b16 %v705, %v703
    %v758 = vpack.c.b16 %v706, %v704
    %v759 = vpack.c.b16 %v709, %v707
    %v760 = vpack.c.b16 %v710, %v708
    %v761 = vpack.c.b16 %v713, %v711
    %v762 = vpack.c.b16 %v714, %v712
    %v763 = vpack.c.b16 %v717, %v715
    %v764 = vpack.c.b16 %v718, %v716
    %v765 = vpack.c.b16 %v721, %v719
    %v766 = vpack.c.b16 %v722, %v720
    %v767 = vpack.c.b16 %v725, %v723
    %v768 = vpack.c.b16 %v726, %v724
    %v769 = vpack.c.b16 %v729, %v727
    %v770 = vpack.c.b16 %v730, %v728
    %v771 = vpack.c.b16 %v733, %v731
    %v772 = vpack.c.b16 %v734, %v732
    %v773 = vpack.c.b16 %v737, %v735
    %v774 = vpack.c.b16 %v738, %v736
    %vm811 = vcmask 261120
    %v813 = vsel %vm811, %v588, 0
    %v816 = vsel %vm811, %v591, 0
    %v819 = vsel %vm811, %v594, 0
    %821 = vmatprep.subr.bf16.mxu0 %v740
    %822 = vmatpush1.bf16.msra.mxu0 %v739
    %823 = vmatprep.subr.bf16.mxu0 %v742
    %824 = vmatpush1.bf16.msra.mxu0 %v741
    %825 = vmatprep.subr.bf16.mxu0 %v744
    %826 = vmatpush1.bf16.msra.mxu0 %v743
    %827 = vmatprep.subr.bf16.mxu0 %v746
    %828 = vmatpush1.bf16.msra.mxu0 %v745
    %829 = vmatprep.subr.bf16.mxu0 %v748
    %830 = vmatpush1.bf16.msra.mxu0 %v747
    %831 = vmatprep.subr.bf16.mxu0 %v750
    %832 = vmatpush1.bf16.msra.mxu0 %v749
    %833 = vmatprep.subr.bf16.mxu0 %v752
    %834 = vmatpush1.bf16.msra.mxu0 %v751
    %835 = vmatprep.subr.bf16.mxu0 %v754
    %836 = vmatpush1.bf16.msra.mxu0 %v753
    %837 = vmatprep.subr.bf16.mxu0 %v756
    %838 = vmatpush1.bf16.msra.mxu0 %v755
    %839 = vmatprep.subr.bf16.mxu0 %v758
    %840 = vmatpush1.bf16.msra.mxu0 %v757
    %841 = vmatprep.subr.bf16.mxu0 %v760
    %842 = vmatpush1.bf16.msra.mxu0 %v759
    %843 = vmatprep.subr.bf16.mxu0 %v762
    %844 = vmatpush1.bf16.msra.mxu0 %v761
    %845 = vmatprep.subr.bf16.mxu0 %v764
    %846 = vmatpush1.bf16.msra.mxu0 %v763
    %847 = vmatprep.subr.bf16.mxu0 %v766
    %848 = vmatpush1.bf16.msra.mxu0 %v765
    %849 = vmatprep.subr.bf16.mxu0 %v768
    %850 = vmatpush1.bf16.msra.mxu0 %v767
    %851 = vmatprep.subr.bf16.mxu0 %v770
    %852 = vmatpush1.bf16.msra.mxu0 %v769
    %853 = vmatprep.mubr.bf16.mxu0 %v587
    %854 = vmatmul.mubr.bf16.gmra.mrb[0].mxu0 %v586
    %v855 = vpop.f32.mrb[0].mxu0
    %v856 = vadd.f32 0.0, %v855
    %v857 = vpop.f32.mrb[0].mxu0
    %v858 = vadd.f32 0.0, %v857
    %v859 = vpop.f32.mrb[0].mxu0
    %v860 = vadd.f32 0.0, %v859
    %v861 = vpop.f32.mrb[0].mxu0
    %v862 = vadd.f32 0.0, %v861
    %863 = vmatprep.mubr.bf16.mxu0 %v590
    %864 = vmatmul.mubr.bf16.gmra.mrb[0].mxu0 %v589
    %v865 = vpop.f32.mrb[0].mxu0
    %v866 = vadd.f32 0.0, %v865
    %v867 = vpop.f32.mrb[0].mxu0
    %v868 = vadd.f32 0.0, %v867
    %v869 = vpop.f32.mrb[0].mxu0
    %v870 = vadd.f32 0.0, %v869
    %v871 = vpop.f32.mrb[0].mxu0
    %v872 = vadd.f32 0.0, %v871
    %873 = vmatprep.mubr.bf16.mxu0 %v593
    %874 = vmatmul.mubr.bf16.gmra.mrb[0].mxu0 %v592
    %v875 = vpop.f32.mrb[0].mxu0
    %v876 = vadd.f32 0.0, %v875
    %v877 = vpop.f32.mrb[0].mxu0
    %v878 = vadd.f32 0.0, %v877
    %v879 = vpop.f32.mrb[0].mxu0
    %v880 = vadd.f32 0.0, %v879
    %v881 = vpop.f32.mrb[0].mxu0
    %v882 = vadd.f32 0.0, %v881
    %883 = vdwg.mxu0
    %884 = vmatprep.subr.bf16.mxu0 %v772
    %885 = vmatpush1.bf16.msra.mxu0 %v771
    %886 = vmatprep.subr.bf16.mxu0 %v774
    %887 = vmatpush1.bf16.msra.mxu0 %v773
    %888 = vmatprep.subr.bf16.mxu0 0
    %889 = vmatpush1.bf16.msra.mxu0 0
    %890 = vmatprep.subr.bf16.mxu0 0
    %891 = vmatpush1.bf16.msra.mxu0 0
    %892 = vmatprep.subr.bf16.mxu0 0
    %893 = vmatpush1.bf16.msra.mxu0 0
    %894 = vmatprep.subr.bf16.mxu0 0
    %895 = vmatpush1.bf16.msra.mxu0 0
    %896 = vmatprep.subr.bf16.mxu0 0
    %897 = vmatpush1.bf16.msra.mxu0 0
    %898 = vmatprep.subr.bf16.mxu0 0
    %899 = vmatpush1.bf16.msra.mxu0 0
    %900 = vmatprep.subr.bf16.mxu0 0
    %901 = vmatpush1.bf16.msra.mxu0 0
    %902 = vmatprep.subr.bf16.mxu0 0
    %903 = vmatpush1.bf16.msra.mxu0 0
    %904 = vmatprep.subr.bf16.mxu0 0
    %905 = vmatpush1.bf16.msra.mxu0 0
    %906 = vmatprep.subr.bf16.mxu0 0
    %907 = vmatpush1.bf16.msra.mxu0 0
    %908 = vmatprep.subr.bf16.mxu0 0
    %909 = vmatpush1.bf16.msra.mxu0 0
    %910 = vmatprep.subr.bf16.mxu0 0
    %911 = vmatpush1.bf16.msra.mxu0 0
    %912 = vmatprep.subr.bf16.mxu0 0
    %913 = vmatpush1.bf16.msra.mxu0 0
    %914 = vmatprep.subr.bf16.mxu0 0
    %915 = vmatpush1.bf16.msra.mxu0 0
    %916 = vmatprep.mubr.bf16.mxu0 0
    %917 = vmatmul.mubr.bf16.gmra.mrb[0].mxu0 %v813
    %v918 = vpop.f32.mrb[0].mxu0
    %v919 = vadd.f32 %v856, %v918
    %v920 = vpop.f32.mrb[0].mxu0
    %v921 = vadd.f32 %v858, %v920
    %v922 = vpop.f32.mrb[0].mxu0
    %v923 = vadd.f32 %v860, %v922
    %v924 = vpop.f32.mrb[0].mxu0
    %v925 = vadd.f32 %v862, %v924
    %926 = vmatprep.mubr.bf16.mxu0 0
    %927 = vmatmul.mubr.bf16.gmra.mrb[0].mxu0 %v816
    %v928 = vpop.f32.mrb[0].mxu0
    %v929 = vadd.f32 %v866, %v928
    %v930 = vpop.f32.mrb[0].mxu0
    %v931 = vadd.f32 %v868, %v930
    %v932 = vpop.f32.mrb[0].mxu0
    %v933 = vadd.f32 %v870, %v932
    %v934 = vpop.f32.mrb[0].mxu0
    %v935 = vadd.f32 %v872, %v934
    %936 = vmatprep.mubr.bf16.mxu0 0
    %937 = vmatmul.mubr.bf16.gmra.mrb[0].mxu0 %v819
    %v938 = vpop.f32.mrb[0].mxu0
    %v939 = vadd.f32 %v876, %v938
    %v940 = vpop.f32.mrb[0].mxu0
    %v941 = vadd.f32 %v878, %v940
    %v942 = vpop.f32.mrb[0].mxu0
    %v943 = vadd.f32 %v880, %v942
    %v944 = vpop.f32.mrb[0].mxu0
    %v945 = vadd.f32 %v882, %v944
    %946 = vdwg.mxu0
    %v959 = vcombine.low %v919, %v921
    %v960 = vcombine.high %v919, %v921
    %v962 = vunpack.c.l.s4 1983009808
    %v963 = vunpack.c.0.s8 %v962
    %v964 = vlaneseq
    %v965 = vshrl.u32 %v964, 7
    %v966 = vsub.s32 %v963, %v965
    %v967 = vrot.slane %v959, %v966
    %v969 = vunpack.c.l.s4 1983009808
    %v970 = vunpack.c.0.s8 %v969
    %v971 = vlaneseq
    %v972 = vshrl.u32 %v971, 7
    %v973 = vsub.s32 %v970, %v972
    %v974 = vrot.slane %v960, %v973
    %v975 = vcombine.high %v967, %v967
    %v976 = vcombine.high %v974, %v974
    %v977 = vcombine.low %v923, %v925
    %v978 = vcombine.high %v923, %v925
    %v980 = vunpack.c.l.s4 1983009808
    %v981 = vunpack.c.0.s8 %v980
    %v982 = vlaneseq
    %v983 = vshrl.u32 %v982, 7
    %v984 = vsub.s32 %v981, %v983
    %v985 = vrot.slane %v977, %v984
    %v987 = vunpack.c.l.s4 1983009808
    %v988 = vunpack.c.0.s8 %v987
    %v989 = vlaneseq
    %v990 = vshrl.u32 %v989, 7
    %v991 = vsub.s32 %v988, %v990
    %v992 = vrot.slane %v978, %v991
    %v993 = vcombine.high %v985, %v985
    %v994 = vcombine.high %v992, %v992
    %v995 = vcombine.low %v929, %v931
    %v996 = vcombine.high %v929, %v931
    %v998 = vunpack.c.l.s4 1983009808
    %v999 = vunpack.c.0.s8 %v998
    %v1000 = vlaneseq
    %v1001 = vshrl.u32 %v1000, 7
    %v1002 = vsub.s32 %v999, %v1001
    %v1003 = vrot.slane %v995, %v1002
    %v1005 = vunpack.c.l.s4 1983009808
    %v1006 = vunpack.c.0.s8 %v1005
    %v1007 = vlaneseq
    %v1008 = vshrl.u32 %v1007, 7
    %v1009 = vsub.s32 %v1006, %v1008
    %v1010 = vrot.slane %v996, %v1009
    %v1011 = vcombine.high %v1003, %v1003
    %v1012 = vcombine.high %v1010, %v1010
    %v1013 = vcombine.low %v933, %v935
    %v1014 = vcombine.high %v933, %v935
    %v1016 = vunpack.c.l.s4 1983009808
    %v1017 = vunpack.c.0.s8 %v1016
    %v1018 = vlaneseq
    %v1019 = vshrl.u32 %v1018, 7
    %v1020 = vsub.s32 %v1017, %v1019
    %v1021 = vrot.slane %v1013, %v1020
    %v1023 = vunpack.c.l.s4 1983009808
    %v1024 = vunpack.c.0.s8 %v1023
    %v1025 = vlaneseq
    %v1026 = vshrl.u32 %v1025, 7
    %v1027 = vsub.s32 %v1024, %v1026
    %v1028 = vrot.slane %v1014, %v1027
    %v1029 = vcombine.high %v1021, %v1021
    %v1030 = vcombine.high %v1028, %v1028
    %v1031 = vcombine.low %v939, %v941
    %v1032 = vcombine.high %v939, %v941
    %v1034 = vunpack.c.l.s4 1983009808
    %v1035 = vunpack.c.0.s8 %v1034
    %v1036 = vlaneseq
    %v1037 = vshrl.u32 %v1036, 7
    %v1038 = vsub.s32 %v1035, %v1037
    %v1039 = vrot.slane %v1031, %v1038
    %v1041 = vunpack.c.l.s4 1983009808
    %v1042 = vunpack.c.0.s8 %v1041
    %v1043 = vlaneseq
    %v1044 = vshrl.u32 %v1043, 7
    %v1045 = vsub.s32 %v1042, %v1044
    %v1046 = vrot.slane %v1032, %v1045
    %v1047 = vcombine.high %v1039, %v1039
    %v1048 = vcombine.high %v1046, %v1046
    %v1049 = vcombine.low %v943, %v945
    %v1050 = vcombine.high %v943, %v945
    %v1052 = vunpack.c.l.s4 1983009808
    %v1053 = vunpack.c.0.s8 %v1052
    %v1054 = vlaneseq
    %v1055 = vshrl.u32 %v1054, 7
    %v1056 = vsub.s32 %v1053, %v1055
    %v1057 = vrot.slane %v1049, %v1056
    %v1059 = vunpack.c.l.s4 1983009808
    %v1060 = vunpack.c.0.s8 %v1059
    %v1061 = vlaneseq
    %v1062 = vshrl.u32 %v1061, 7
    %v1063 = vsub.s32 %v1060, %v1062
    %v1064 = vrot.slane %v1050, %v1063
    %v1065 = vcombine.high %v1057, %v1057
    %v1066 = vcombine.high %v1064, %v1064
    %v1068 = vunpack.c.l.s4 1983009808
    %v1069 = vunpack.c.0.s8 %v1068
    %v1070 = vlaneseq
    %v1071 = vshrl.u32 %v1070, 7
    %v1072 = vsub.s32 %v1069, %v1071
    %v1073 = vrot.slane %v967, %v1072
    %v1074 = vcombine.high %v1073, %v1073
    %v1076 = vunpack.c.l.s4 1983009808
    %v1077 = vunpack.c.0.s8 %v1076
    %v1078 = vlaneseq
    %v1079 = vshrl.u32 %v1078, 7
    %v1080 = vsub.s32 %v1077, %v1079
    %v1081 = vrot.slane %v975, %v1080
    %v1082 = vcombine.high %v1081, %v1081
    %v1084 = vunpack.c.l.s4 1983009808
    %v1085 = vunpack.c.0.s8 %v1084
    %v1086 = vlaneseq
    %v1087 = vshrl.u32 %v1086, 7
    %v1088 = vsub.s32 %v1085, %v1087
    %v1089 = vrot.slane %v974, %v1088
    %v1090 = vcombine.high %v1089, %v1089
    %v1092 = vunpack.c.l.s4 1983009808
    %v1093 = vunpack.c.0.s8 %v1092
    %v1094 = vlaneseq
    %v1095 = vshrl.u32 %v1094, 7
    %v1096 = vsub.s32 %v1093, %v1095
    %v1097 = vrot.slane %v976, %v1096
    %v1098 = vcombine.high %v1097, %v1097
    %v1100 = vunpack.c.l.s4 1983009808
    %v1101 = vunpack.c.0.s8 %v1100
    %v1102 = vlaneseq
    %v1103 = vshrl.u32 %v1102, 7
    %v1104 = vsub.s32 %v1101, %v1103
    %v1105 = vrot.slane %v985, %v1104
    %v1106 = vcombine.high %v1105, %v1105
    %v1108 = vunpack.c.l.s4 1983009808
    %v1109 = vunpack.c.0.s8 %v1108
    %v1110 = vlaneseq
    %v1111 = vshrl.u32 %v1110, 7
    %v1112 = vsub.s32 %v1109, %v1111
    %v1113 = vrot.slane %v993, %v1112
    %v1114 = vcombine.high %v1113, %v1113
    %v1116 = vunpack.c.l.s4 1983009808
    %v1117 = vunpack.c.0.s8 %v1116
    %v1118 = vlaneseq
    %v1119 = vshrl.u32 %v1118, 7
    %v1120 = vsub.s32 %v1117, %v1119
    %v1121 = vrot.slane %v992, %v1120
    %v1122 = vcombine.high %v1121, %v1121
    %v1124 = vunpack.c.l.s4 1983009808
    %v1125 = vunpack.c.0.s8 %v1124
    %v1126 = vlaneseq
    %v1127 = vshrl.u32 %v1126, 7
    %v1128 = vsub.s32 %v1125, %v1127
    %v1129 = vrot.slane %v994, %v1128
    %v1130 = vcombine.high %v1129, %v1129
    %v1132 = vunpack.c.l.s4 1983009808
    %v1133 = vunpack.c.0.s8 %v1132
    %v1134 = vlaneseq
    %v1135 = vshrl.u32 %v1134, 7
    %v1136 = vsub.s32 %v1133, %v1135
    %v1137 = vrot.slane %v1003, %v1136
    %v1138 = vcombine.high %v1137, %v1137
    %v1140 = vunpack.c.l.s4 1983009808
    %v1141 = vunpack.c.0.s8 %v1140
    %v1142 = vlaneseq
    %v1143 = vshrl.u32 %v1142, 7
    %v1144 = vsub.s32 %v1141, %v1143
    %v1145 = vrot.slane %v1011, %v1144
    %v1146 = vcombine.high %v1145, %v1145
    %v1148 = vunpack.c.l.s4 1983009808
    %v1149 = vunpack.c.0.s8 %v1148
    %v1150 = vlaneseq
    %v1151 = vshrl.u32 %v1150, 7
    %v1152 = vsub.s32 %v1149, %v1151
    %v1153 = vrot.slane %v1010, %v1152
    %v1154 = vcombine.high %v1153, %v1153
    %v1156 = vunpack.c.l.s4 1983009808
    %v1157 = vunpack.c.0.s8 %v1156
    %v1158 = vlaneseq
    %v1159 = vshrl.u32 %v1158, 7
    %v1160 = vsub.s32 %v1157, %v1159
    %v1161 = vrot.slane %v1012, %v1160
    %v1162 = vcombine.high %v1161, %v1161
    %v1164 = vunpack.c.l.s4 1983009808
    %v1165 = vunpack.c.0.s8 %v1164
    %v1166 = vlaneseq
    %v1167 = vshrl.u32 %v1166, 7
    %v1168 = vsub.s32 %v1165, %v1167
    %v1169 = vrot.slane %v1021, %v1168
    %v1170 = vcombine.high %v1169, %v1169
    %v1172 = vunpack.c.l.s4 1983009808
    %v1173 = vunpack.c.0.s8 %v1172
    %v1174 = vlaneseq
    %v1175 = vshrl.u32 %v1174, 7
    %v1176 = vsub.s32 %v1173, %v1175
    %v1177 = vrot.slane %v1029, %v1176
    %v1178 = vcombine.high %v1177, %v1177
    %v1180 = vunpack.c.l.s4 1983009808
    %v1181 = vunpack.c.0.s8 %v1180
    %v1182 = vlaneseq
    %v1183 = vshrl.u32 %v1182, 7
    %v1184 = vsub.s32 %v1181, %v1183
    %v1185 = vrot.slane %v1028, %v1184
    %v1186 = vcombine.high %v1185, %v1185
    %v1188 = vunpack.c.l.s4 1983009808
    %v1189 = vunpack.c.0.s8 %v1188
    %v1190 = vlaneseq
    %v1191 = vshrl.u32 %v1190, 7
    %v1192 = vsub.s32 %v1189, %v1191
    %v1193 = vrot.slane %v1030, %v1192
    %v1194 = vcombine.high %v1193, %v1193
    %v1196 = vunpack.c.l.s4 1983009808
    %v1197 = vunpack.c.0.s8 %v1196
    %v1198 = vlaneseq
    %v1199 = vshrl.u32 %v1198, 7
    %v1200 = vsub.s32 %v1197, %v1199
    %v1201 = vrot.slane %v1039, %v1200
    %v1202 = vcombine.high %v1201, %v1201
    %v1204 = vunpack.c.l.s4 1983009808
    %v1205 = vunpack.c.0.s8 %v1204
    %v1206 = vlaneseq
    %v1207 = vshrl.u32 %v1206, 7
    %v1208 = vsub.s32 %v1205, %v1207
    %v1209 = vrot.slane %v1047, %v1208
    %v1210 = vcombine.high %v1209, %v1209
    %v1212 = vunpack.c.l.s4 1983009808
    %v1213 = vunpack.c.0.s8 %v1212
    %v1214 = vlaneseq
    %v1215 = vshrl.u32 %v1214, 7
    %v1216 = vsub.s32 %v1213, %v1215
    %v1217 = vrot.slane %v1046, %v1216
    %v1218 = vcombine.high %v1217, %v1217
    %v1220 = vunpack.c.l.s4 1983009808
    %v1221 = vunpack.c.0.s8 %v1220
    %v1222 = vlaneseq
    %v1223 = vshrl.u32 %v1222, 7
    %v1224 = vsub.s32 %v1221, %v1223
    %v1225 = vrot.slane %v1048, %v1224
    %v1226 = vcombine.high %v1225, %v1225
    %v1228 = vunpack.c.l.s4 1983009808
    %v1229 = vunpack.c.0.s8 %v1228
    %v1230 = vlaneseq
    %v1231 = vshrl.u32 %v1230, 7
    %v1232 = vsub.s32 %v1229, %v1231
    %v1233 = vrot.slane %v1057, %v1232
    %v1234 = vcombine.high %v1233, %v1233
    %v1236 = vunpack.c.l.s4 1983009808
    %v1237 = vunpack.c.0.s8 %v1236
    %v1238 = vlaneseq
    %v1239 = vshrl.u32 %v1238, 7
    %v1240 = vsub.s32 %v1237, %v1239
    %v1241 = vrot.slane %v1065, %v1240
    %v1242 = vcombine.high %v1241, %v1241
    %v1244 = vunpack.c.l.s4 1983009808
    %v1245 = vunpack.c.0.s8 %v1244
    %v1246 = vlaneseq
    %v1247 = vshrl.u32 %v1246, 7
    %v1248 = vsub.s32 %v1245, %v1247
    %v1249 = vrot.slane %v1064, %v1248
    %v1250 = vcombine.high %v1249, %v1249
    %v1252 = vunpack.c.l.s4 1983009808
    %v1253 = vunpack.c.0.s8 %v1252
    %v1254 = vlaneseq
    %v1255 = vshrl.u32 %v1254, 7
    %v1256 = vsub.s32 %v1253, %v1255
    %v1257 = vrot.slane %v1066, %v1256
    %v1258 = vcombine.high %v1257, %v1257
    %vm1307 = vcmask 1041408
    %v1308 = vsel %vm1307, %v1073, 0.0
    %v1309 = vrot.slane %v1308, 4
    %v1310 = vadd.f32 %v1308, %v1309
    %v1311 = vrot.slane %v1310, 2
    %v1312 = vadd.f32 %v1310, %v1311
    %v1313 = vrot.slane %v1312, 1
    %v1314 = vadd.f32 %v1312, %v1313
    %vm1315 = vcmask 123904
    %v1316 = vsel %vm1315, %v1074, 0.0
    %v1317 = vrot.slane %v1316, 4
    %v1318 = vadd.f32 %v1316, %v1317
    %v1319 = vrot.slane %v1318, 2
    %v1320 = vadd.f32 %v1318, %v1319
    %v1321 = vrot.slane %v1320, 1
    %v1322 = vadd.f32 %v1320, %v1321
    %v1323 = vsel %vm1307, %v1081, 0.0
    %v1324 = vrot.slane %v1323, 4
    %v1325 = vadd.f32 %v1323, %v1324
    %v1326 = vrot.slane %v1325, 2
    %v1327 = vadd.f32 %v1325, %v1326
    %v1328 = vrot.slane %v1327, 1
    %v1329 = vadd.f32 %v1327, %v1328
    %v1330 = vsel %vm1315, %v1082, 0.0
    %v1331 = vrot.slane %v1330, 4
    %v1332 = vadd.f32 %v1330, %v1331
    %v1333 = vrot.slane %v1332, 2
    %v1334 = vadd.f32 %v1332, %v1333
    %v1335 = vrot.slane %v1334, 1
    %v1336 = vadd.f32 %v1334, %v1335
    %v1337 = vsel %vm1307, %v1089, 0.0
    %v1338 = vrot.slane %v1337, 4
    %v1339 = vadd.f32 %v1337, %v1338
    %v1340 = vrot.slane %v1339, 2
    %v1341 = vadd.f32 %v1339, %v1340
    %v1342 = vrot.slane %v1341, 1
    %v1343 = vadd.f32 %v1341, %v1342
    %v1344 = vsel %vm1315, %v1090, 0.0
    %v1345 = vrot.slane %v1344, 4
    %v1346 = vadd.f32 %v1344, %v1345
    %v1347 = vrot.slane %v1346, 2
    %v1348 = vadd.f32 %v1346, %v1347
    %v1349 = vrot.slane %v1348, 1
    %v1350 = vadd.f32 %v1348, %v1349
    %v1351 = vsel %vm1307, %v1097, 0.0
    %v1352 = vrot.slane %v1351, 4
    %v1353 = vadd.f32 %v1351, %v1352
    %v1354 = vrot.slane %v1353, 2
    %v1355 = vadd.f32 %v1353, %v1354
    %v1356 = vrot.slane %v1355, 1
    %v1357 = vadd.f32 %v1355, %v1356
    %v1358 = vsel %vm1315, %v1098, 0.0
    %v1359 = vrot.slane %v1358, 4
    %v1360 = vadd.f32 %v1358, %v1359
    %v1361 = vrot.slane %v1360, 2
    %v1362 = vadd.f32 %v1360, %v1361
    %v1363 = vrot.slane %v1362, 1
    %v1364 = vadd.f32 %v1362, %v1363
    %v1365 = vsel %vm1307, %v1105, 0.0
    %v1366 = vrot.slane %v1365, 4
    %v1367 = vadd.f32 %v1365, %v1366
    %v1368 = vrot.slane %v1367, 2
    %v1369 = vadd.f32 %v1367, %v1368
    %v1370 = vrot.slane %v1369, 1
    %v1371 = vadd.f32 %v1369, %v1370
    %v1372 = vsel %vm1315, %v1106, 0.0
    %v1373 = vrot.slane %v1372, 4
    %v1374 = vadd.f32 %v1372, %v1373
    %v1375 = vrot.slane %v1374, 2
    %v1376 = vadd.f32 %v1374, %v1375
    %v1377 = vrot.slane %v1376, 1
    %v1378 = vadd.f32 %v1376, %v1377
    %v1379 = vsel %vm1307, %v1113, 0.0
    %v1380 = vrot.slane %v1379, 4
    %v1381 = vadd.f32 %v1379, %v1380
    %v1382 = vrot.slane %v1381, 2
    %v1383 = vadd.f32 %v1381, %v1382
    %v1384 = vrot.slane %v1383, 1
    %v1385 = vadd.f32 %v1383, %v1384
    %v1386 = vsel %vm1315, %v1114, 0.0
    %v1387 = vrot.slane %v1386, 4
    %v1388 = vadd.f32 %v1386, %v1387
    %v1389 = vrot.slane %v1388, 2
    %v1390 = vadd.f32 %v1388, %v1389
    %v1391 = vrot.slane %v1390, 1
    %v1392 = vadd.f32 %v1390, %v1391
    %v1393 = vsel %vm1307, %v1121, 0.0
    %v1394 = vrot.slane %v1393, 4
    %v1395 = vadd.f32 %v1393, %v1394
    %v1396 = vrot.slane %v1395, 2
    %v1397 = vadd.f32 %v1395, %v1396
    %v1398 = vrot.slane %v1397, 1
    %v1399 = vadd.f32 %v1397, %v1398
    %v1400 = vsel %vm1315, %v1122, 0.0
    %v1401 = vrot.slane %v1400, 4
    %v1402 = vadd.f32 %v1400, %v1401
    %v1403 = vrot.slane %v1402, 2
    %v1404 = vadd.f32 %v1402, %v1403
    %v1405 = vrot.slane %v1404, 1
    %v1406 = vadd.f32 %v1404, %v1405
    %v1407 = vsel %vm1307, %v1129, 0.0
    %v1408 = vrot.slane %v1407, 4
    %v1409 = vadd.f32 %v1407, %v1408
    %v1410 = vrot.slane %v1409, 2
    %v1411 = vadd.f32 %v1409, %v1410
    %v1412 = vrot.slane %v1411, 1
    %v1413 = vadd.f32 %v1411, %v1412
    %v1414 = vsel %vm1315, %v1130, 0.0
    %v1415 = vrot.slane %v1414, 4
    %v1416 = vadd.f32 %v1414, %v1415
    %v1417 = vrot.slane %v1416, 2
    %v1418 = vadd.f32 %v1416, %v1417
    %v1419 = vrot.slane %v1418, 1
    %v1420 = vadd.f32 %v1418, %v1419
    %v1421 = vsel %vm1307, %v1137, 0.0
    %v1422 = vrot.slane %v1421, 4
    %v1423 = vadd.f32 %v1421, %v1422
    %v1424 = vrot.slane %v1423, 2
    %v1425 = vadd.f32 %v1423, %v1424
    %v1426 = vrot.slane %v1425, 1
    %v1427 = vadd.f32 %v1425, %v1426
    %v1428 = vsel %vm1315, %v1138, 0.0
    %v1429 = vrot.slane %v1428, 4
    %v1430 = vadd.f32 %v1428, %v1429
    %v1431 = vrot.slane %v1430, 2
    %v1432 = vadd.f32 %v1430, %v1431
    %v1433 = vrot.slane %v1432, 1
    %v1434 = vadd.f32 %v1432, %v1433
    %v1435 = vsel %vm1307, %v1145, 0.0
    %v1436 = vrot.slane %v1435, 4
    %v1437 = vadd.f32 %v1435, %v1436
    %v1438 = vrot.slane %v1437, 2
    %v1439 = vadd.f32 %v1437, %v1438
    %v1440 = vrot.slane %v1439, 1
    %v1441 = vadd.f32 %v1439, %v1440
    %v1442 = vsel %vm1315, %v1146, 0.0
    %v1443 = vrot.slane %v1442, 4
    %v1444 = vadd.f32 %v1442, %v1443
    %v1445 = vrot.slane %v1444, 2
    %v1446 = vadd.f32 %v1444, %v1445
    %v1447 = vrot.slane %v1446, 1
    %v1448 = vadd.f32 %v1446, %v1447
    %v1449 = vsel %vm1307, %v1153, 0.0
    %v1450 = vrot.slane %v1449, 4
    %v1451 = vadd.f32 %v1449, %v1450
    %v1452 = vrot.slane %v1451, 2
    %v1453 = vadd.f32 %v1451, %v1452
    %v1454 = vrot.slane %v1453, 1
    %v1455 = vadd.f32 %v1453, %v1454
    %v1456 = vsel %vm1315, %v1154, 0.0
    %v1457 = vrot.slane %v1456, 4
    %v1458 = vadd.f32 %v1456, %v1457
    %v1459 = vrot.slane %v1458, 2
    %v1460 = vadd.f32 %v1458, %v1459
    %v1461 = vrot.slane %v1460, 1
    %v1462 = vadd.f32 %v1460, %v1461
    %v1463 = vsel %vm1307, %v1161, 0.0
    %v1464 = vrot.slane %v1463, 4
    %v1465 = vadd.f32 %v1463, %v1464
    %v1466 = vrot.slane %v1465, 2
    %v1467 = vadd.f32 %v1465, %v1466
    %v1468 = vrot.slane %v1467, 1
    %v1469 = vadd.f32 %v1467, %v1468
    %v1470 = vsel %vm1315, %v1162, 0.0
    %v1471 = vrot.slane %v1470, 4
    %v1472 = vadd.f32 %v1470, %v1471
    %v1473 = vrot.slane %v1472, 2
    %v1474 = vadd.f32 %v1472, %v1473
    %v1475 = vrot.slane %v1474, 1
    %v1476 = vadd.f32 %v1474, %v1475
    %v1477 = vsel %vm1307, %v1169, 0.0
    %v1478 = vrot.slane %v1477, 4
    %v1479 = vadd.f32 %v1477, %v1478
    %v1480 = vrot.slane %v1479, 2
    %v1481 = vadd.f32 %v1479, %v1480
    %v1482 = vrot.slane %v1481, 1
    %v1483 = vadd.f32 %v1481, %v1482
    %v1484 = vsel %vm1315, %v1170, 0.0
    %v1485 = vrot.slane %v1484, 4
    %v1486 = vadd.f32 %v1484, %v1485
    %v1487 = vrot.slane %v1486, 2
    %v1488 = vadd.f32 %v1486, %v1487
    %v1489 = vrot.slane %v1488, 1
    %v1490 = vadd.f32 %v1488, %v1489
    %v1491 = vsel %vm1307, %v1177, 0.0
    %v1492 = vrot.slane %v1491, 4
    %v1493 = vadd.f32 %v1491, %v1492
    %v1494 = vrot.slane %v1493, 2
    %v1495 = vadd.f32 %v1493, %v1494
    %v1496 = vrot.slane %v1495, 1
    %v1497 = vadd.f32 %v1495, %v1496
    %v1498 = vsel %vm1315, %v1178, 0.0
    %v1499 = vrot.slane %v1498, 4
    %v1500 = vadd.f32 %v1498, %v1499
    %v1501 = vrot.slane %v1500, 2
    %v1502 = vadd.f32 %v1500, %v1501
    %v1503 = vrot.slane %v1502, 1
    %v1504 = vadd.f32 %v1502, %v1503
    %v1505 = vsel %vm1307, %v1185, 0.0
    %v1506 = vrot.slane %v1505, 4
    %v1507 = vadd.f32 %v1505, %v1506
    %v1508 = vrot.slane %v1507, 2
    %v1509 = vadd.f32 %v1507, %v1508
    %v1510 = vrot.slane %v1509, 1
    %v1511 = vadd.f32 %v1509, %v1510
    %v1512 = vsel %vm1315, %v1186, 0.0
    %v1513 = vrot.slane %v1512, 4
    %v1514 = vadd.f32 %v1512, %v1513
    %v1515 = vrot.slane %v1514, 2
    %v1516 = vadd.f32 %v1514, %v1515
    %v1517 = vrot.slane %v1516, 1
    %v1518 = vadd.f32 %v1516, %v1517
    %v1519 = vsel %vm1307, %v1193, 0.0
    %v1520 = vrot.slane %v1519, 4
    %v1521 = vadd.f32 %v1519, %v1520
    %v1522 = vrot.slane %v1521, 2
    %v1523 = vadd.f32 %v1521, %v1522
    %v1524 = vrot.slane %v1523, 1
    %v1525 = vadd.f32 %v1523, %v1524
    %v1526 = vsel %vm1315, %v1194, 0.0
    %v1527 = vrot.slane %v1526, 4
    %v1528 = vadd.f32 %v1526, %v1527
    %v1529 = vrot.slane %v1528, 2
    %v1530 = vadd.f32 %v1528, %v1529
    %v1531 = vrot.slane %v1530, 1
    %v1532 = vadd.f32 %v1530, %v1531
    %v1533 = vsel %vm1307, %v1201, 0.0
    %v1534 = vrot.slane %v1533, 4
    %v1535 = vadd.f32 %v1533, %v1534
    %v1536 = vrot.slane %v1535, 2
    %v1537 = vadd.f32 %v1535, %v1536
    %v1538 = vrot.slane %v1537, 1
    %v1539 = vadd.f32 %v1537, %v1538
    %v1540 = vsel %vm1315, %v1202, 0.0
    %v1541 = vrot.slane %v1540, 4
    %v1542 = vadd.f32 %v1540, %v1541
    %v1543 = vrot.slane %v1542, 2
    %v1544 = vadd.f32 %v1542, %v1543
    %v1545 = vrot.slane %v1544, 1
    %v1546 = vadd.f32 %v1544, %v1545
    %v1547 = vsel %vm1307, %v1209, 0.0
    %v1548 = vrot.slane %v1547, 4
    %v1549 = vadd.f32 %v1547, %v1548
    %v1550 = vrot.slane %v1549, 2
    %v1551 = vadd.f32 %v1549, %v1550
    %v1552 = vrot.slane %v1551, 1
    %v1553 = vadd.f32 %v1551, %v1552
    %v1554 = vsel %vm1315, %v1210, 0.0
    %v1555 = vrot.slane %v1554, 4
    %v1556 = vadd.f32 %v1554, %v1555
    %v1557 = vrot.slane %v1556, 2
    %v1558 = vadd.f32 %v1556, %v1557
    %v1559 = vrot.slane %v1558, 1
    %v1560 = vadd.f32 %v1558, %v1559
    %v1561 = vsel %vm1307, %v1217, 0.0
    %v1562 = vrot.slane %v1561, 4
    %v1563 = vadd.f32 %v1561, %v1562
    %v1564 = vrot.slane %v1563, 2
    %v1565 = vadd.f32 %v1563, %v1564
    %v1566 = vrot.slane %v1565, 1
    %v1567 = vadd.f32 %v1565, %v1566
    %v1568 = vsel %vm1315, %v1218, 0.0
    %v1569 = vrot.slane %v1568, 4
    %v1570 = vadd.f32 %v1568, %v1569
    %v1571 = vrot.slane %v1570, 2
    %v1572 = vadd.f32 %v1570, %v1571
    %v1573 = vrot.slane %v1572, 1
    %v1574 = vadd.f32 %v1572, %v1573
    %v1575 = vsel %vm1307, %v1225, 0.0
    %v1576 = vrot.slane %v1575, 4
    %v1577 = vadd.f32 %v1575, %v1576
    %v1578 = vrot.slane %v1577, 2
    %v1579 = vadd.f32 %v1577, %v1578
    %v1580 = vrot.slane %v1579, 1
    %v1581 = vadd.f32 %v1579, %v1580
    %v1582 = vsel %vm1315, %v1226, 0.0
    %v1583 = vrot.slane %v1582, 4
    %v1584 = vadd.f32 %v1582, %v1583
    %v1585 = vrot.slane %v1584, 2
    %v1586 = vadd.f32 %v1584, %v1585
    %v1587 = vrot.slane %v1586, 1
    %v1588 = vadd.f32 %v1586, %v1587
    %v1589 = vsel %vm1307, %v1233, 0.0
    %v1590 = vrot.slane %v1589, 4
    %v1591 = vadd.f32 %v1589, %v1590
    %v1592 = vrot.slane %v1591, 2
    %v1593 = vadd.f32 %v1591, %v1592
    %v1594 = vrot.slane %v1593, 1
    %v1595 = vadd.f32 %v1593, %v1594
    %v1596 = vsel %vm1315, %v1234, 0.0
    %v1597 = vrot.slane %v1596, 4
    %v1598 = vadd.f32 %v1596, %v1597
    %v1599 = vrot.slane %v1598, 2
    %v1600 = vadd.f32 %v1598, %v1599
    %v1601 = vrot.slane %v1600, 1
    %v1602 = vadd.f32 %v1600, %v1601
    %v1603 = vsel %vm1307, %v1241, 0.0
    %v1604 = vrot.slane %v1603, 4
    %v1605 = vadd.f32 %v1603, %v1604
    %v1606 = vrot.slane %v1605, 2
    %v1607 = vadd.f32 %v1605, %v1606
    %v1608 = vrot.slane %v1607, 1
    %v1609 = vadd.f32 %v1607, %v1608
    %v1610 = vsel %vm1315, %v1242, 0.0
    %v1611 = vrot.slane %v1610, 4
    %v1612 = vadd.f32 %v1610, %v1611
    %v1613 = vrot.slane %v1612, 2
    %v1614 = vadd.f32 %v1612, %v1613
    %v1615 = vrot.slane %v1614, 1
    %v1616 = vadd.f32 %v1614, %v1615
    %v1617 = vsel %vm1307, %v1249, 0.0
    %v1618 = vrot.slane %v1617, 4
    %v1619 = vadd.f32 %v1617, %v1618
    %v1620 = vrot.slane %v1619, 2
    %v1621 = vadd.f32 %v1619, %v1620
    %v1622 = vrot.slane %v1621, 1
    %v1623 = vadd.f32 %v1621, %v1622
    %v1624 = vsel %vm1315, %v1250, 0.0
    %v1625 = vrot.slane %v1624, 4
    %v1626 = vadd.f32 %v1624, %v1625
    %v1627 = vrot.slane %v1626, 2
    %v1628 = vadd.f32 %v1626, %v1627
    %v1629 = vrot.slane %v1628, 1
    %v1630 = vadd.f32 %v1628, %v1629
    %v1631 = vsel %vm1307, %v1257, 0.0
    %v1632 = vrot.slane %v1631, 4
    %v1633 = vadd.f32 %v1631, %v1632
    %v1634 = vrot.slane %v1633, 2
    %v1635 = vadd.f32 %v1633, %v1634
    %v1636 = vrot.slane %v1635, 1
    %v1637 = vadd.f32 %v1635, %v1636
    %v1638 = vsel %vm1315, %v1258, 0.0
    %v1639 = vrot.slane %v1638, 4
    %v1640 = vadd.f32 %v1638, %v1639
    %v1641 = vrot.slane %v1640, 2
    %v1642 = vadd.f32 %v1640, %v1641
    %v1643 = vrot.slane %v1642, 1
    %v1644 = vadd.f32 %v1642, %v1643
    %v1645 = vpack.c.bf16 %v1314, %v1314
    %v1646 = vpack.c.bf16 %v1322, %v1322
    %v1647 = vpack.c.bf16 %v1329, %v1329
    %v1648 = vpack.c.bf16 %v1336, %v1336
    %v1649 = vpack.c.bf16 %v1343, %v1343
    %v1650 = vpack.c.bf16 %v1350, %v1350
    %v1651 = vpack.c.bf16 %v1357, %v1357
    %v1652 = vpack.c.bf16 %v1364, %v1364
    %v1653 = vpack.c.bf16 %v1371, %v1371
    %v1654 = vpack.c.bf16 %v1378, %v1378
    %v1655 = vpack.c.bf16 %v1385, %v1385
    %v1656 = vpack.c.bf16 %v1392, %v1392
    %v1657 = vpack.c.bf16 %v1399, %v1399
    %v1658 = vpack.c.bf16 %v1406, %v1406
    %v1659 = vpack.c.bf16 %v1413, %v1413
    %v1660 = vpack.c.bf16 %v1420, %v1420
    %v1661 = vpack.c.bf16 %v1427, %v1427
    %v1662 = vpack.c.bf16 %v1434, %v1434
    %v1663 = vpack.c.bf16 %v1441, %v1441
    %v1664 = vpack.c.bf16 %v1448, %v1448
    %v1665 = vpack.c.bf16 %v1455, %v1455
    %v1666 = vpack.c.bf16 %v1462, %v1462
    %v1667 = vpack.c.bf16 %v1469, %v1469
    %v1668 = vpack.c.bf16 %v1476, %v1476
    %v1669 = vpack.c.bf16 %v1483, %v1483
    %v1670 = vpack.c.bf16 %v1490, %v1490
    %v1671 = vpack.c.bf16 %v1497, %v1497
    %v1672 = vpack.c.bf16 %v1504, %v1504
    %v1673 = vpack.c.bf16 %v1511, %v1511
    %v1674 = vpack.c.bf16 %v1518, %v1518
    %v1675 = vpack.c.bf16 %v1525, %v1525
    %v1676 = vpack.c.bf16 %v1532, %v1532
    %v1677 = vpack.c.bf16 %v1539, %v1539
    %v1678 = vpack.c.bf16 %v1546, %v1546
    %v1679 = vpack.c.bf16 %v1553, %v1553
    %v1680 = vpack.c.bf16 %v1560, %v1560
    %v1681 = vpack.c.bf16 %v1567, %v1567
    %v1682 = vpack.c.bf16 %v1574, %v1574
    %v1683 = vpack.c.bf16 %v1581, %v1581
    %v1684 = vpack.c.bf16 %v1588, %v1588
    %v1685 = vpack.c.bf16 %v1595, %v1595
    %v1686 = vpack.c.bf16 %v1602, %v1602
    %v1687 = vpack.c.bf16 %v1609, %v1609
    %v1688 = vpack.c.bf16 %v1616, %v1616
    %v1689 = vpack.c.bf16 %v1623, %v1623
    %v1690 = vpack.c.bf16 %v1630, %v1630
    %v1691 = vpack.c.bf16 %v1637, %v1637
    %v1692 = vpack.c.bf16 %v1644, %v1644
    %v1725 = vunpack.c.l.b16 %v1645
    %v1726 = vunpack.c.l.b16 %v1646
    %v1727 = vunpack.c.l.b16 %v1647
    %v1728 = vunpack.c.l.b16 %v1648
    %v1729 = vunpack.c.l.b16 %v1649
    %v1730 = vunpack.c.l.b16 %v1650
    %v1731 = vunpack.c.l.b16 %v1651
    %v1732 = vunpack.c.l.b16 %v1652
    %v1733 = vunpack.c.l.b16 %v1653
    %v1734 = vunpack.c.l.b16 %v1654
    %v1735 = vunpack.c.l.b16 %v1655
    %v1736 = vunpack.c.l.b16 %v1656
    %v1737 = vunpack.c.l.b16 %v1657
    %v1738 = vunpack.c.l.b16 %v1658
    %v1739 = vunpack.c.l.b16 %v1659
    %v1740 = vunpack.c.l.b16 %v1660
    %v1741 = vunpack.c.l.b16 %v1669
    %v1742 = vunpack.c.l.b16 %v1670
    %v1743 = vunpack.c.l.b16 %v1671
    %v1744 = vunpack.c.l.b16 %v1672
    %v1745 = vunpack.c.l.b16 %v1673
    %v1746 = vunpack.c.l.b16 %v1674
    %v1747 = vunpack.c.l.b16 %v1675
    %v1748 = vunpack.c.l.b16 %v1676
    %v1749 = vunpack.c.l.b16 %v1677
    %v1750 = vunpack.c.l.b16 %v1678
    %v1751 = vunpack.c.l.b16 %v1679
    %v1752 = vunpack.c.l.b16 %v1680
    %v1753 = vunpack.c.l.b16 %v1681
    %v1754 = vunpack.c.l.b16 %v1682
    %v1755 = vunpack.c.l.b16 %v1683
    %v1756 = vunpack.c.l.b16 %v1684
    %vm1757 = vcmask 1041409
    %v1758 = vsel %vm1757, %v1727, %v1725
    %vm1759 = vcmask 1042434
    %v1760 = vsel %vm1759, %v1729, %v1758
    %vm1761 = vcmask 1043459
    %v1762 = vsel %vm1761, %v1731, %v1760
    %vm1763 = vcmask 1044484
    %v1764 = vsel %vm1763, %v1733, %v1762
    %vm1765 = vcmask 1045509
    %v1766 = vsel %vm1765, %v1735, %v1764
    %vm1767 = vcmask 1046534
    %v1768 = vsel %vm1767, %v1737, %v1766
    %vm1769 = vcmask 1047559
    %v1770 = vsel %vm1769, %v1739, %v1768
    %v1771 = vsel %vm1757, %v1728, %v1726
    %v1772 = vsel %vm1759, %v1730, %v1771
    %v1773 = vsel %vm1761, %v1732, %v1772
    %v1774 = vsel %vm1763, %v1734, %v1773
    %v1775 = vsel %vm1765, %v1736, %v1774
    %v1776 = vsel %vm1767, %v1738, %v1775
    %v1777 = vsel %vm1769, %v1740, %v1776
    %v1778 = vsel %vm1757, %v1743, %v1741
    %v1779 = vsel %vm1759, %v1745, %v1778
    %v1780 = vsel %vm1761, %v1747, %v1779
    %v1781 = vsel %vm1763, %v1749, %v1780
    %v1782 = vsel %vm1765, %v1751, %v1781
    %v1783 = vsel %vm1767, %v1753, %v1782
    %v1784 = vsel %vm1769, %v1755, %v1783
    %v1785 = vsel %vm1757, %v1744, %v1742
    %v1786 = vsel %vm1759, %v1746, %v1785
    %v1787 = vsel %vm1761, %v1748, %v1786
    %v1788 = vsel %vm1763, %v1750, %v1787
    %v1789 = vsel %vm1765, %v1752, %v1788
    %v1790 = vsel %vm1767, %v1754, %v1789
    %v1791 = vsel %vm1769, %v1756, %v1790
    %v1792 = vpack.c.b16 %v1777, %v1777
    %v1793 = vpack.c.b16 %v1791, %v1791
    %v1798 = vunpack.c.l.b16 %v1661
    %v1799 = vunpack.c.l.b16 %v1662
    %v1800 = vunpack.c.l.b16 %v1685
    %v1801 = vunpack.c.l.b16 %v1686
    %v1802 = vsel %vm1757, %v1729, %v1727
    %v1803 = vsel %vm1759, %v1731, %v1802
    %v1804 = vsel %vm1761, %v1733, %v1803
    %v1805 = vsel %vm1763, %v1735, %v1804
    %v1806 = vsel %vm1765, %v1737, %v1805
    %v1807 = vsel %vm1767, %v1739, %v1806
    %v1808 = vsel %vm1769, %v1798, %v1807
    %v1809 = vsel %vm1757, %v1730, %v1728
    %v1810 = vsel %vm1759, %v1732, %v1809
    %v1811 = vsel %vm1761, %v1734, %v1810
    %v1812 = vsel %vm1763, %v1736, %v1811
    %v1813 = vsel %vm1765, %v1738, %v1812
    %v1814 = vsel %vm1767, %v1740, %v1813
    %v1815 = vsel %vm1769, %v1799, %v1814
    %v1816 = vsel %vm1757, %v1745, %v1743
    %v1817 = vsel %vm1759, %v1747, %v1816
    %v1818 = vsel %vm1761, %v1749, %v1817
    %v1819 = vsel %vm1763, %v1751, %v1818
    %v1820 = vsel %vm1765, %v1753, %v1819
    %v1821 = vsel %vm1767, %v1755, %v1820
    %v1822 = vsel %vm1769, %v1800, %v1821
    %v1823 = vsel %vm1757, %v1746, %v1744
    %v1824 = vsel %vm1759, %v1748, %v1823
    %v1825 = vsel %vm1761, %v1750, %v1824
    %v1826 = vsel %vm1763, %v1752, %v1825
    %v1827 = vsel %vm1765, %v1754, %v1826
    %v1828 = vsel %vm1767, %v1756, %v1827
    %v1829 = vsel %vm1769, %v1801, %v1828
    %v1830 = vpack.c.b16 %v1808, %v1808
    %v1831 = vpack.c.b16 %v1815, %v1815
    %v1832 = vpack.c.b16 %v1822, %v1822
    %v1833 = vpack.c.b16 %v1829, %v1829
    %1834 = vrot.lane.b32.xlu0 %v1830, 16
    %v1835 = vpop.permute.xlu0 %1834
    %1836 = vrot.lane.b32.xlu0 %v1831, 16
    %v1837 = vpop.permute.xlu0 %1836
    %1838 = vrot.lane.b32.xlu0 %v1832, 16
    %v1839 = vpop.permute.xlu0 %1838
    %1840 = vrot.lane.b32.xlu0 %v1833, 16
    %v1841 = vpop.permute.xlu0 %1840
    %vm1842 = vcmask 130048
    %v1843 = vsel %vm1842, %v1835, %v1837
    %v1844 = vsel %vm1842, %v1839, %v1841
    %v1849 = vunpack.c.l.b16 %v1663
    %v1850 = vunpack.c.l.b16 %v1664
    %v1851 = vunpack.c.l.b16 %v1687
    %v1852 = vunpack.c.l.b16 %v1688
    %v1853 = vsel %vm1757, %v1731, %v1729
    %v1854 = vsel %vm1759, %v1733, %v1853
    %v1855 = vsel %vm1761, %v1735, %v1854
    %v1856 = vsel %vm1763, %v1737, %v1855
    %v1857 = vsel %vm1765, %v1739, %v1856
    %v1858 = vsel %vm1767, %v1798, %v1857
    %v1859 = vsel %vm1769, %v1849, %v1858
    %v1860 = vsel %vm1757, %v1732, %v1730
    %v1861 = vsel %vm1759, %v1734, %v1860
    %v1862 = vsel %vm1761, %v1736, %v1861
    %v1863 = vsel %vm1763, %v1738, %v1862
    %v1864 = vsel %vm1765, %v1740, %v1863
    %v1865 = vsel %vm1767, %v1799, %v1864
    %v1866 = vsel %vm1769, %v1850, %v1865
    %v1867 = vsel %vm1757, %v1747, %v1745
    %v1868 = vsel %vm1759, %v1749, %v1867
    %v1869 = vsel %vm1761, %v1751, %v1868
    %v1870 = vsel %vm1763, %v1753, %v1869
    %v1871 = vsel %vm1765, %v1755, %v1870
    %v1872 = vsel %vm1767, %v1800, %v1871
    %v1873 = vsel %vm1769, %v1851, %v1872
    %v1874 = vsel %vm1757, %v1748, %v1746
    %v1875 = vsel %vm1759, %v1750, %v1874
    %v1876 = vsel %vm1761, %v1752, %v1875
    %v1877 = vsel %vm1763, %v1754, %v1876
    %v1878 = vsel %vm1765, %v1756, %v1877
    %v1879 = vsel %vm1767, %v1801, %v1878
    %v1880 = vsel %vm1769, %v1852, %v1879
    %v1881 = vpack.c.b16 %v1859, %v1859
    %v1882 = vpack.c.b16 %v1866, %v1866
    %v1883 = vpack.c.b16 %v1873, %v1873
    %v1884 = vpack.c.b16 %v1880, %v1880
    %1885 = vrot.lane.b32.xlu0 %v1881, 32
    %v1886 = vpop.permute.xlu0 %1885
    %1887 = vrot.lane.b32.xlu0 %v1882, 32
    %v1888 = vpop.permute.xlu0 %1887
    %1889 = vrot.lane.b32.xlu0 %v1883, 32
    %v1890 = vpop.permute.xlu0 %1889
    %1891 = vrot.lane.b32.xlu0 %v1884, 32
    %v1892 = vpop.permute.xlu0 %1891
    %vm1893 = vcmask 261120
    %v1894 = vsel %vm1893, %v1886, %v1888
    %v1895 = vsel %vm1893, %v1890, %v1892
    %v1900 = vunpack.c.l.b16 %v1665
    %v1901 = vunpack.c.l.b16 %v1666
    %v1902 = vunpack.c.l.b16 %v1689
    %v1903 = vunpack.c.l.b16 %v1690
    %v1904 = vsel %vm1757, %v1733, %v1731
    %v1905 = vsel %vm1759, %v1735, %v1904
    %v1906 = vsel %vm1761, %v1737, %v1905
    %v1907 = vsel %vm1763, %v1739, %v1906
    %v1908 = vsel %vm1765, %v1798, %v1907
    %v1909 = vsel %vm1767, %v1849, %v1908
    %v1910 = vsel %vm1769, %v1900, %v1909
    %v1911 = vsel %vm1757, %v1734, %v1732
    %v1912 = vsel %vm1759, %v1736, %v1911
    %v1913 = vsel %vm1761, %v1738, %v1912
    %v1914 = vsel %vm1763, %v1740, %v1913
    %v1915 = vsel %vm1765, %v1799, %v1914
    %v1916 = vsel %vm1767, %v1850, %v1915
    %v1917 = vsel %vm1769, %v1901, %v1916
    %v1918 = vsel %vm1757, %v1749, %v1747
    %v1919 = vsel %vm1759, %v1751, %v1918
    %v1920 = vsel %vm1761, %v1753, %v1919
    %v1921 = vsel %vm1763, %v1755, %v1920
    %v1922 = vsel %vm1765, %v1800, %v1921
    %v1923 = vsel %vm1767, %v1851, %v1922
    %v1924 = vsel %vm1769, %v1902, %v1923
    %v1925 = vsel %vm1757, %v1750, %v1748
    %v1926 = vsel %vm1759, %v1752, %v1925
    %v1927 = vsel %vm1761, %v1754, %v1926
    %v1928 = vsel %vm1763, %v1756, %v1927
    %v1929 = vsel %vm1765, %v1801, %v1928
    %v1930 = vsel %vm1767, %v1852, %v1929
    %v1931 = vsel %vm1769, %v1903, %v1930
    %v1932 = vpack.c.b16 %v1910, %v1910
    %v1933 = vpack.c.b16 %v1917, %v1917
    %v1934 = vpack.c.b16 %v1924, %v1924
    %v1935 = vpack.c.b16 %v1931, %v1931
    %1936 = vrot.lane.b32.xlu0 %v1932, 48
    %v1937 = vpop.permute.xlu0 %1936
    %1938 = vrot.lane.b32.xlu0 %v1933, 48
    %v1939 = vpop.permute.xlu0 %1938
    %1940 = vrot.lane.b32.xlu0 %v1934, 48
    %v1941 = vpop.permute.xlu0 %1940
    %1942 = vrot.lane.b32.xlu0 %v1935, 48
    %v1943 = vpop.permute.xlu0 %1942
    %vm1944 = vcmask 392192
    %v1945 = vsel %vm1944, %v1937, %v1939
    %v1946 = vsel %vm1944, %v1941, %v1943
    %v1951 = vunpack.c.l.b16 %v1667
    %v1952 = vunpack.c.l.b16 %v1668
    %v1953 = vunpack.c.l.b16 %v1691
    %v1954 = vunpack.c.l.b16 %v1692
    %v1955 = vsel %vm1757, %v1735, %v1733
    %v1956 = vsel %vm1759, %v1737, %v1955
    %v1957 = vsel %vm1761, %v1739, %v1956
    %v1958 = vsel %vm1763, %v1798, %v1957
    %v1959 = vsel %vm1765, %v1849, %v1958
    %v1960 = vsel %vm1767, %v1900, %v1959
    %v1961 = vsel %vm1769, %v1951, %v1960
    %v1962 = vsel %vm1757, %v1736, %v1734
    %v1963 = vsel %vm1759, %v1738, %v1962
    %v1964 = vsel %vm1761, %v1740, %v1963
    %v1965 = vsel %vm1763, %v1799, %v1964
    %v1966 = vsel %vm1765, %v1850, %v1965
    %v1967 = vsel %vm1767, %v1901, %v1966
    %v1968 = vsel %vm1769, %v1952, %v1967
    %v1969 = vsel %vm1757, %v1751, %v1749
    %v1970 = vsel %vm1759, %v1753, %v1969
    %v1971 = vsel %vm1761, %v1755, %v1970
    %v1972 = vsel %vm1763, %v1800, %v1971
    %v1973 = vsel %vm1765, %v1851, %v1972
    %v1974 = vsel %vm1767, %v1902, %v1973
    %v1975 = vsel %vm1769, %v1953, %v1974
    %v1976 = vsel %vm1757, %v1752, %v1750
    %v1977 = vsel %vm1759, %v1754, %v1976
    %v1978 = vsel %vm1761, %v1756, %v1977
    %v1979 = vsel %vm1763, %v1801, %v1978
    %v1980 = vsel %vm1765, %v1852, %v1979
    %v1981 = vsel %vm1767, %v1903, %v1980
    %v1982 = vsel %vm1769, %v1954, %v1981
    %v1983 = vpack.c.b16 %v1961, %v1961
    %v1984 = vpack.c.b16 %v1968, %v1968
    %v1985 = vpack.c.b16 %v1975, %v1975
    %v1986 = vpack.c.b16 %v1982, %v1982
    %1987 = vrot.lane.b32.xlu0 %v1983, 64
    %v1988 = vpop.permute.xlu0 %1987
    %1989 = vrot.lane.b32.xlu0 %v1984, 64
    %v1990 = vpop.permute.xlu0 %1989
    %1991 = vrot.lane.b32.xlu0 %v1985, 64
    %v1992 = vpop.permute.xlu0 %1991
    %1993 = vrot.lane.b32.xlu0 %v1986, 64
    %v1994 = vpop.permute.xlu0 %1993
    %vm1995 = vcmask 523264
    %v1996 = vsel %vm1995, %v1988, %v1990
    %v1997 = vsel %vm1995, %v1992, %v1994
    %vm1998 = vcmask 130048
    %v2001 = vsel %vm1998, %v1792, %v1835
    %v2004 = vsel %vm1998, %v1793, %v1839
    %v2007 = vsel %vm811, %v1843, %v1886
    %v2010 = vsel %vm811, %v1844, %v1890
    %vm2011 = vcmask 392192
    %v2014 = vsel %vm2011, %v1894, %v1937
    %v2017 = vsel %vm2011, %v1895, %v1941
    %vm2018 = vcmask 523264
    %v2021 = vsel %vm2018, %v1945, %v1988
    %v2024 = vsel %vm2018, %v1946, %v1992
    %v2033 = vunpack.c.l.b16 %v2001
    %v2034 = vunpack.c.l.b16 %v2007
    %v2035 = vunpack.c.l.b16 %v2014
    %v2036 = vunpack.c.l.b16 %v2021
    %v2037 = vunpack.c.l.b16 %v1996
    %v2038 = vunpack.c.l.b16 %v2004
    %v2039 = vunpack.c.l.b16 %v2010
    %v2040 = vunpack.c.l.b16 %v2017
    %v2041 = vunpack.c.l.b16 %v2024
    %v2042 = vunpack.c.l.b16 %v1997
    %v2043 = vld [vmem:[#allocation5] sm:$0xff]
    %v2044 = vld [vmem:[#allocation5 + $0x8] sm:$0xff]
    %v2045 = vld [vmem:[#allocation5 + $0x10] sm:$0xff]
    %v2046 = vld [vmem:[#allocation5 + $0x18] sm:$0xff]
    %v2047 = vld [vmem:[#allocation5 + $0x20] sm:$0xff]
    %v2048 = vld [vmem:[#allocation5 + $0x28] sm:$0xff]
    %v2049 = vld [vmem:[#allocation5 + $0x30] sm:$0xff]
    %v2050 = vld [vmem:[#allocation5 + $0x38] sm:$0xff]
    %v2051 = vld [vmem:[#allocation5 + $0x40] sm:$0xff]
    %v2052 = vld [vmem:[#allocation5 + $0x48] sm:$0xff]
    %v2053 = vld [vmem:[#allocation5 + $0x50] sm:$0xff]
    %v2054 = vld [vmem:[#allocation5 + $0x58] sm:$0xff]
    %v2055 = vld [vmem:[#allocation5 + $0x60] sm:$0xff]
    %v2056 = vld [vmem:[#allocation5 + $0x68] sm:$0xff]
    %v2057 = vld [vmem:[#allocation5 + $0x70] sm:$0xff]
    %v2058 = vld [vmem:[#allocation5 + $0x78] sm:$0xff]
    %v2059 = vld [vmem:[#allocation5 + $0x80] sm:$0xff]
    %v2060 = vld [vmem:[#allocation5 + $0x88] sm:$0xff]
    %v2061 = vld [vmem:[#allocation5 + $0x90] sm:$0xff]
    %v2062 = vld [vmem:[#allocation5 + $0x98] sm:$0xff]
    %v2063 = vld [vmem:[#allocation5 + $0xa0] sm:$0xff]
    %v2064 = vld [vmem:[#allocation5 + $0xa8] sm:$0xff]
    %v2065 = vld [vmem:[#allocation5 + $0xb0] sm:$0xff]
    %v2066 = vld [vmem:[#allocation5 + $0xb8] sm:$0xff]
    %v2067 = vld [vmem:[#allocation5 + $0xc0] sm:$0xff]
    %v2068 = vld [vmem:[#allocation5 + $0xc8] sm:$0xff]
    %v2069 = vld [vmem:[#allocation5 + $0xd0] sm:$0xff]
    %v2070 = vld [vmem:[#allocation5 + $0xd8] sm:$0xff]
    %v2071 = vld [vmem:[#allocation5 + $0xe0] sm:$0xff]
    %v2072 = vld [vmem:[#allocation5 + $0xe8] sm:$0xff]
    %v2073 = vld [vmem:[#allocation5 + $0xf0] sm:$0xff]
    %v2074 = vld [vmem:[#allocation5 + $0xf8] sm:$0xff]
    %v2075 = vld [vmem:[#allocation5 + $0x100] sm:$0xff]
    %v2076 = vld [vmem:[#allocation5 + $0x108] sm:$0xff]
    %v2077 = vld [vmem:[#allocation5 + $0x110] sm:$0xff]
    %v2078 = vld [vmem:[#allocation5 + $0x118] sm:$0xff]
    %v2079 = vld [vmem:[#allocation5 + $0x120] sm:$0xff]
    %v2080 = vld [vmem:[#allocation5 + $0x128] sm:$0xff]
    %v2081 = vld [vmem:[#allocation5 + $0x130] sm:$0xff]
    %v2082 = vld [vmem:[#allocation5 + $0x138] sm:$0xff]
    %v2083 = vld [vmem:[#allocation5 + $0x140] sm:$0xff]
    %v2084 = vld [vmem:[#allocation5 + $0x148] sm:$0xff]
    %v2085 = vld [vmem:[#allocation5 + $0x150] sm:$0xff]
    %v2086 = vld [vmem:[#allocation5 + $0x158] sm:$0xff]
    %v2087 = vld [vmem:[#allocation5 + $0x160] sm:$0xff]
    %v2088 = vld [vmem:[#allocation5 + $0x168] sm:$0xff]
    %v2089 = vld [vmem:[#allocation5 + $0x170] sm:$0xff]
    %v2090 = vld [vmem:[#allocation5 + $0x178] sm:$0xff]
    %v2091 = vld [vmem:[#allocation5 + $0x180] sm:$0xff]
    %v2092 = vld [vmem:[#allocation5 + $0x188] sm:$0xff]
    %v2093 = vld [vmem:[#allocation5 + $0x190] sm:$0xff]
    %v2094 = vld [vmem:[#allocation5 + $0x198] sm:$0xff]
    %v2095 = vld [vmem:[#allocation5 + $0x1a0] sm:$0xff]
    %v2096 = vld [vmem:[#allocation5 + $0x1a8] sm:$0xff]
    %v2097 = vld [vmem:[#allocation5 + $0x1b0] sm:$0xff]
    %v2098 = vld [vmem:[#allocation5 + $0x1b8] sm:$0xff]
    %v2099 = vld [vmem:[#allocation5 + $0x1c0] sm:$0xff]
    %v2100 = vld [vmem:[#allocation5 + $0x1c8] sm:$0xff]
    %v2101 = vld [vmem:[#allocation5 + $0x1d0] sm:$0xff]
    %v2102 = vld [vmem:[#allocation5 + $0x1d8] sm:$0xff]
    %v2103 = vld [vmem:[#allocation5 + $0x1e0] sm:$0xff]
    %v2104 = vld [vmem:[#allocation5 + $0x1e8] sm:$0xff]
    %v2105 = vld [vmem:[#allocation5 + $0x1f0] sm:$0xff]
    %v2106 = vld [vmem:[#allocation5 + $0x1f8] sm:$0xff]
    %v2107 = vld [vmem:[#allocation5 + $0x200] sm:$0xff]
    %v2108 = vld [vmem:[#allocation5 + $0x208] sm:$0xff]
    %v2109 = vld [vmem:[#allocation5 + $0x210] sm:$0xff]
    %v2110 = vld [vmem:[#allocation5 + $0x218] sm:$0xff]
    %v2111 = vld [vmem:[#allocation5 + $0x220] sm:$0xff]
    %v2112 = vld [vmem:[#allocation5 + $0x228] sm:$0xff]
    %v2113 = vld [vmem:[#allocation5 + $0x230] sm:$0xff]
    %v2114 = vld [vmem:[#allocation5 + $0x238] sm:$0xff]
    %v2115 = vld [vmem:[#allocation5 + $0x240] sm:$0xff]
    %v2116 = vld [vmem:[#allocation5 + $0x248] sm:$0xff]
    %v2117 = vld [vmem:[#allocation5 + $0x250] sm:$0xff]
    %v2118 = vld [vmem:[#allocation5 + $0x258] sm:$0xff]
    %v2119 = vld [vmem:[#allocation5 + $0x260] sm:$0xff]
    %v2120 = vld [vmem:[#allocation5 + $0x268] sm:$0xff]
    %v2121 = vld [vmem:[#allocation5 + $0x270] sm:$0xff]
    %v2122 = vld [vmem:[#allocation5 + $0x278] sm:$0xff]
    %v2123 = vld [vmem:[#allocation5 + $0x280] sm:$0xff]
    %v2124 = vld [vmem:[#allocation5 + $0x288] sm:$0xff]
    %v2125 = vld [vmem:[#allocation5 + $0x290] sm:$0xff]
    %v2126 = vld [vmem:[#allocation5 + $0x298] sm:$0xff]
    %v2127 = vld [vmem:[#allocation5 + $0x2a0] sm:$0xff]
    %v2128 = vld [vmem:[#allocation5 + $0x2a8] sm:$0xff]
    %v2129 = vld [vmem:[#allocation5 + $0x2b0] sm:$0xff]
    %v2130 = vld [vmem:[#allocation5 + $0x2b8] sm:$0xff]
    %v2131 = vld [vmem:[#allocation5 + $0x2c0] sm:$0xff]
    %v2132 = vld [vmem:[#allocation5 + $0x2c8] sm:$0xff]
    %v2133 = vld [vmem:[#allocation5 + $0x2d0] sm:$0xff]
    %v2134 = vld [vmem:[#allocation5 + $0x2d8] sm:$0xff]
    %v2135 = vld [vmem:[#allocation5 + $0x2e0] sm:$0xff]
    %v2136 = vld [vmem:[#allocation5 + $0x2e8] sm:$0xff]
    %v2137 = vld [vmem:[#allocation5 + $0x2f0] sm:$0xff]
    %v2138 = vld [vmem:[#allocation5 + $0x2f8] sm:$0xff]
    %v2139 = vld [vmem:[#allocation5 + $0x300] sm:$0xff]
    %v2140 = vld [vmem:[#allocation5 + $0x308] sm:$0xff]
    %v2141 = vld [vmem:[#allocation5 + $0x310] sm:$0xff]
    %v2142 = vld [vmem:[#allocation5 + $0x318] sm:$0xff]
    %v2143 = vld [vmem:[#allocation5 + $0x320] sm:$0xff]
    %v2144 = vld [vmem:[#allocation5 + $0x328] sm:$0xff]
    %v2145 = vld [vmem:[#allocation5 + $0x330] sm:$0xff]
    %v2146 = vld [vmem:[#allocation5 + $0x338] sm:$0xff]
    %v2147 = vld [vmem:[#allocation5 + $0x340] sm:$0xff]
    %v2148 = vld [vmem:[#allocation5 + $0x348] sm:$0xff]
    %v2149 = vld [vmem:[#allocation5 + $0x350] sm:$0xff]
    %v2150 = vld [vmem:[#allocation5 + $0x358] sm:$0xff]
    %v2151 = vld [vmem:[#allocation5 + $0x360] sm:$0xff]
    %v2152 = vld [vmem:[#allocation5 + $0x368] sm:$0xff]
    %v2153 = vld [vmem:[#allocation5 + $0x370] sm:$0xff]
    %v2154 = vld [vmem:[#allocation5 + $0x378] sm:$0xff]
    %v2155 = vld [vmem:[#allocation5 + $0x380] sm:$0xff]
    %v2156 = vld [vmem:[#allocation5 + $0x388] sm:$0xff]
    %v2157 = vld [vmem:[#allocation5 + $0x390] sm:$0xff]
    %v2158 = vld [vmem:[#allocation5 + $0x398] sm:$0xff]
    %v2159 = vld [vmem:[#allocation5 + $0x3a0] sm:$0xff]
    %v2160 = vld [vmem:[#allocation5 + $0x3a8] sm:$0xff]
    %v2161 = vld [vmem:[#allocation5 + $0x3b0] sm:$0xff]
    %v2162 = vld [vmem:[#allocation5 + $0x3b8] sm:$0xff]
    %v2163 = vld [vmem:[#allocation5 + $0x3c0] sm:$0xff]
    %v2164 = vld [vmem:[#allocation5 + $0x3c8] sm:$0xff]
    %v2165 = vld [vmem:[#allocation5 + $0x3d0] sm:$0xff]
    %v2166 = vld [vmem:[#allocation5 + $0x3d8] sm:$0xff]
    %v2167 = vld [vmem:[#allocation5 + $0x3e0] sm:$0xff]
    %v2168 = vld [vmem:[#allocation5 + $0x3e8] sm:$0xff]
    %v2169 = vld [vmem:[#allocation5 + $0x3f0] sm:$0xff]
    %v2170 = vld [vmem:[#allocation5 + $0x3f8] sm:$0xff]
    %v2171 = vld [vmem:[#allocation5 + $0x400] sm:$0xff]
    %v2172 = vld [vmem:[#allocation5 + $0x408] sm:$0xff]
    %v2173 = vld [vmem:[#allocation5 + $0x410] sm:$0xff]
    %v2174 = vld [vmem:[#allocation5 + $0x418] sm:$0xff]
    %v2175 = vld [vmem:[#allocation5 + $0x420] sm:$0xff]
    %v2176 = vld [vmem:[#allocation5 + $0x428] sm:$0xff]
    %v2177 = vld [vmem:[#allocation5 + $0x430] sm:$0xff]
    %v2178 = vld [vmem:[#allocation5 + $0x438] sm:$0xff]
    %v2179 = vld [vmem:[#allocation5 + $0x440] sm:$0xff]
    %v2180 = vld [vmem:[#allocation5 + $0x448] sm:$0xff]
    %v2181 = vld [vmem:[#allocation5 + $0x450] sm:$0xff]
    %v2182 = vld [vmem:[#allocation5 + $0x458] sm:$0xff]
    %v2183 = vld [vmem:[#allocation5 + $0x460] sm:$0xff]
    %v2184 = vld [vmem:[#allocation5 + $0x468] sm:$0xff]
    %v2185 = vld [vmem:[#allocation5 + $0x470] sm:$0xff]
    %v2186 = vld [vmem:[#allocation5 + $0x478] sm:$0xff]
    %v2187 = vld [vmem:[#allocation5 + $0x480] sm:$0xff]
    %v2188 = vld [vmem:[#allocation5 + $0x488] sm:$0xff]
    %v2189 = vld [vmem:[#allocation5 + $0x490] sm:$0xff]
    %v2190 = vld [vmem:[#allocation5 + $0x498] sm:$0xff]
    %v2191 = vld [vmem:[#allocation5 + $0x4a0] sm:$0xff]
    %v2192 = vld [vmem:[#allocation5 + $0x4a8] sm:$0xff]
    %v2193 = vld [vmem:[#allocation5 + $0x4b0] sm:$0xff]
    %v2194 = vld [vmem:[#allocation5 + $0x4b8] sm:$0xff]
    %v2195 = vld [vmem:[#allocation5 + $0x4c0] sm:$0xff]
    %v2196 = vld [vmem:[#allocation5 + $0x4c8] sm:$0xff]
    %v2197 = vld [vmem:[#allocation5 + $0x4d0] sm:$0xff]
    %v2198 = vld [vmem:[#allocation5 + $0x4d8] sm:$0xff]
    %v2199 = vld [vmem:[#allocation5 + $0x4e0] sm:$0xff]
    %v2200 = vld [vmem:[#allocation5 + $0x4e8] sm:$0xff]
    %v2201 = vld [vmem:[#allocation5 + $0x4f0] sm:$0xff]
    %v2202 = vld [vmem:[#allocation5 + $0x4f8] sm:$0xff]
    %v2203 = vld [vmem:[#allocation5 + $0x500] sm:$0xff]
    %v2204 = vld [vmem:[#allocation5 + $0x508] sm:$0xff]
    %v2205 = vld [vmem:[#allocation5 + $0x510] sm:$0xff]
    %v2206 = vld [vmem:[#allocation5 + $0x518] sm:$0xff]
    %v2207 = vld [vmem:[#allocation5 + $0x520] sm:$0xff]
    %v2208 = vld [vmem:[#allocation5 + $0x528] sm:$0xff]
    %v2209 = vld [vmem:[#allocation5 + $0x530] sm:$0xff]
    %v2210 = vld [vmem:[#allocation5 + $0x538] sm:$0xff]
    %v2211 = vld [vmem:[#allocation5 + $0x540] sm:$0xff]
    %v2212 = vld [vmem:[#allocation5 + $0x548] sm:$0xff]
    %v2213 = vld [vmem:[#allocation5 + $0x550] sm:$0xff]
    %v2214 = vld [vmem:[#allocation5 + $0x558] sm:$0xff]
    %v2215 = vld [vmem:[#allocation5 + $0x560] sm:$0xff]
    %v2216 = vld [vmem:[#allocation5 + $0x568] sm:$0xff]
    %v2217 = vld [vmem:[#allocation5 + $0x570] sm:$0xff]
    %v2218 = vld [vmem:[#allocation5 + $0x578] sm:$0xff]
    %v2219 = vld [vmem:[#allocation5 + $0x580] sm:$0xff]
    %v2220 = vld [vmem:[#allocation5 + $0x588] sm:$0xff]
    %v2221 = vld [vmem:[#allocation5 + $0x590] sm:$0xff]
    %v2222 = vld [vmem:[#allocation5 + $0x598] sm:$0xff]
    %v2223 = vpack.c.b16 %v1784, %v1770
    %v2224 = vpack.c.b16 %v2038, %v2033
    %v2225 = vpack.c.b16 %v2039, %v2034
    %v2226 = vpack.c.b16 %v2040, %v2035
    %v2227 = vpack.c.b16 %v2041, %v2036
    %v2228 = vpack.c.b16 %v2042, %v2037
    %v2414 = vunpack.c.l.b16 %v2043
    %v2415 = vunpack.c.h.b16 %v2043
    %v2416 = vunpack.c.l.b16 %v2044
    %v2417 = vunpack.c.h.b16 %v2044
    %v2418 = vunpack.c.l.b16 %v2045
    %v2419 = vunpack.c.h.b16 %v2045
    %v2420 = vunpack.c.l.b16 %v2046
    %v2421 = vunpack.c.h.b16 %v2046
    %v2422 = vunpack.c.l.b16 %v2047
    %v2423 = vunpack.c.h.b16 %v2047
    %v2424 = vunpack.c.l.b16 %v2048
    %v2425 = vunpack.c.h.b16 %v2048
    %v2426 = vunpack.c.l.b16 %v2049
    %v2427 = vunpack.c.h.b16 %v2049
    %v2428 = vunpack.c.l.b16 %v2050
    %v2429 = vunpack.c.h.b16 %v2050
    %v2430 = vunpack.c.l.b16 %v2051
    %v2431 = vunpack.c.h.b16 %v2051
    %v2432 = vunpack.c.l.b16 %v2052
    %v2433 = vunpack.c.h.b16 %v2052
    %v2434 = vunpack.c.l.b16 %v2053
    %v2435 = vunpack.c.h.b16 %v2053
    %v2436 = vunpack.c.l.b16 %v2054
    %v2437 = vunpack.c.h.b16 %v2054
    %v2438 = vunpack.c.l.b16 %v2055
    %v2439 = vunpack.c.h.b16 %v2055
    %v2440 = vunpack.c.l.b16 %v2056
    %v2441 = vunpack.c.h.b16 %v2056
    %v2442 = vunpack.c.l.b16 %v2057
    %v2443 = vunpack.c.h.b16 %v2057
    %v2444 = vunpack.c.l.b16 %v2058
    %v2445 = vunpack.c.h.b16 %v2058
    %v2446 = vunpack.c.l.b16 %v2059
    %v2447 = vunpack.c.h.b16 %v2059
    %v2448 = vunpack.c.l.b16 %v2060
    %v2449 = vunpack.c.h.b16 %v2060
    %v2450 = vunpack.c.l.b16 %v2061
    %v2451 = vunpack.c.h.b16 %v2061
    %v2452 = vunpack.c.l.b16 %v2062
    %v2453 = vunpack.c.h.b16 %v2062
    %v2454 = vunpack.c.l.b16 %v2063
    %v2455 = vunpack.c.h.b16 %v2063
    %v2456 = vunpack.c.l.b16 %v2064
    %v2457 = vunpack.c.h.b16 %v2064
    %v2458 = vunpack.c.l.b16 %v2065
    %v2459 = vunpack.c.h.b16 %v2065
    %v2460 = vunpack.c.l.b16 %v2066
    %v2461 = vunpack.c.h.b16 %v2066
    %v2462 = vunpack.c.l.b16 %v2067
    %v2463 = vunpack.c.h.b16 %v2067
    %v2464 = vunpack.c.l.b16 %v2068
    %v2465 = vunpack.c.h.b16 %v2068
    %v2466 = vunpack.c.l.b16 %v2069
    %v2467 = vunpack.c.h.b16 %v2069
    %v2468 = vunpack.c.l.b16 %v2070
    %v2469 = vunpack.c.h.b16 %v2070
    %v2470 = vunpack.c.l.b16 %v2071
    %v2471 = vunpack.c.h.b16 %v2071
    %v2472 = vunpack.c.l.b16 %v2072
    %v2473 = vunpack.c.h.b16 %v2072
    %v2474 = vunpack.c.l.b16 %v2073
    %v2475 = vunpack.c.h.b16 %v2073
    %v2476 = vunpack.c.l.b16 %v2074
    %v2477 = vunpack.c.h.b16 %v2074
    %v2478 = vunpack.c.l.b16 %v2075
    %v2479 = vunpack.c.h.b16 %v2075
    %v2480 = vunpack.c.l.b16 %v2076
    %v2481 = vunpack.c.h.b16 %v2076
    %v2482 = vunpack.c.l.b16 %v2077
    %v2483 = vunpack.c.h.b16 %v2077
    %v2484 = vunpack.c.l.b16 %v2078
    %v2485 = vunpack.c.h.b16 %v2078
    %v2486 = vunpack.c.l.b16 %v2079
    %v2487 = vunpack.c.h.b16 %v2079
    %v2488 = vunpack.c.l.b16 %v2080
    %v2489 = vunpack.c.h.b16 %v2080
    %v2490 = vunpack.c.l.b16 %v2081
    %v2491 = vunpack.c.h.b16 %v2081
    %v2492 = vunpack.c.l.b16 %v2082
    %v2493 = vunpack.c.h.b16 %v2082
    %v2494 = vunpack.c.l.b16 %v2083
    %v2495 = vunpack.c.h.b16 %v2083
    %v2496 = vunpack.c.l.b16 %v2084
    %v2497 = vunpack.c.h.b16 %v2084
    %v2498 = vunpack.c.l.b16 %v2085
    %v2499 = vunpack.c.h.b16 %v2085
    %v2500 = vunpack.c.l.b16 %v2086
    %v2501 = vunpack.c.h.b16 %v2086
    %v2502 = vunpack.c.l.b16 %v2087
    %v2503 = vunpack.c.h.b16 %v2087
    %v2504 = vunpack.c.l.b16 %v2088
    %v2505 = vunpack.c.h.b16 %v2088
    %v2506 = vunpack.c.l.b16 %v2089
    %v2507 = vunpack.c.h.b16 %v2089
    %v2508 = vunpack.c.l.b16 %v2090
    %v2509 = vunpack.c.h.b16 %v2090
    %v2510 = vunpack.c.l.b16 %v2091
    %v2511 = vunpack.c.h.b16 %v2091
    %v2512 = vunpack.c.l.b16 %v2092
    %v2513 = vunpack.c.h.b16 %v2092
    %v2514 = vunpack.c.l.b16 %v2093
    %v2515 = vunpack.c.h.b16 %v2093
    %v2516 = vunpack.c.l.b16 %v2094
    %v2517 = vunpack.c.h.b16 %v2094
    %v2518 = vunpack.c.l.b16 %v2095
    %v2519 = vunpack.c.h.b16 %v2095
    %v2520 = vunpack.c.l.b16 %v2096
    %v2521 = vunpack.c.h.b16 %v2096
    %v2522 = vunpack.c.l.b16 %v2097
    %v2523 = vunpack.c.h.b16 %v2097
    %v2524 = vunpack.c.l.b16 %v2098
    %v2525 = vunpack.c.h.b16 %v2098
    %v2526 = vunpack.c.l.b16 %v2099
    %v2527 = vunpack.c.h.b16 %v2099
    %v2528 = vunpack.c.l.b16 %v2100
    %v2529 = vunpack.c.h.b16 %v2100
    %v2530 = vunpack.c.l.b16 %v2101
    %v2531 = vunpack.c.h.b16 %v2101
    %v2532 = vunpack.c.l.b16 %v2102
    %v2533 = vunpack.c.h.b16 %v2102
    %v2534 = vunpack.c.l.b16 %v2103
    %v2535 = vunpack.c.h.b16 %v2103
    %v2536 = vunpack.c.l.b16 %v2104
    %v2537 = vunpack.c.h.b16 %v2104
    %v2538 = vunpack.c.l.b16 %v2105
    %v2539 = vunpack.c.h.b16 %v2105
    %v2540 = vunpack.c.l.b16 %v2106
    %v2541 = vunpack.c.h.b16 %v2106
    %v2542 = vunpack.c.l.b16 %v2107
    %v2543 = vunpack.c.h.b16 %v2107
    %v2544 = vunpack.c.l.b16 %v2108
    %v2545 = vunpack.c.h.b16 %v2108
    %v2546 = vunpack.c.l.b16 %v2109
    %v2547 = vunpack.c.h.b16 %v2109
    %v2548 = vunpack.c.l.b16 %v2110
    %v2549 = vunpack.c.h.b16 %v2110
    %v2550 = vunpack.c.l.b16 %v2111
    %v2551 = vunpack.c.h.b16 %v2111
    %v2552 = vunpack.c.l.b16 %v2112
    %v2553 = vunpack.c.h.b16 %v2112
    %v2554 = vunpack.c.l.b16 %v2113
    %v2555 = vunpack.c.h.b16 %v2113
    %v2556 = vunpack.c.l.b16 %v2114
    %v2557 = vunpack.c.h.b16 %v2114
    %v2558 = vunpack.c.l.b16 %v2115
    %v2559 = vunpack.c.h.b16 %v2115
    %v2560 = vunpack.c.l.b16 %v2116
    %v2561 = vunpack.c.h.b16 %v2116
    %v2562 = vunpack.c.l.b16 %v2117
    %v2563 = vunpack.c.h.b16 %v2117
    %v2564 = vunpack.c.l.b16 %v2118
    %v2565 = vunpack.c.h.b16 %v2118
    %v2566 = vunpack.c.l.b16 %v2119
    %v2567 = vunpack.c.h.b16 %v2119
    %v2568 = vunpack.c.l.b16 %v2120
    %v2569 = vunpack.c.h.b16 %v2120
    %v2570 = vunpack.c.l.b16 %v2121
    %v2571 = vunpack.c.h.b16 %v2121
    %v2572 = vunpack.c.l.b16 %v2122
    %v2573 = vunpack.c.h.b16 %v2122
    %v2574 = vunpack.c.l.b16 %v2123
    %v2575 = vunpack.c.h.b16 %v2123
    %v2576 = vunpack.c.l.b16 %v2124
    %v2577 = vunpack.c.h.b16 %v2124
    %v2578 = vunpack.c.l.b16 %v2125
    %v2579 = vunpack.c.h.b16 %v2125
    %v2580 = vunpack.c.l.b16 %v2126
    %v2581 = vunpack.c.h.b16 %v2126
    %v2582 = vunpack.c.l.b16 %v2127
    %v2583 = vunpack.c.h.b16 %v2127
    %v2584 = vunpack.c.l.b16 %v2128
    %v2585 = vunpack.c.h.b16 %v2128
    %v2586 = vunpack.c.l.b16 %v2129
    %v2587 = vunpack.c.h.b16 %v2129
    %v2588 = vunpack.c.l.b16 %v2130
    %v2589 = vunpack.c.h.b16 %v2130
    %v2590 = vunpack.c.l.b16 %v2131
    %v2591 = vunpack.c.h.b16 %v2131
    %v2592 = vunpack.c.l.b16 %v2132
    %v2593 = vunpack.c.h.b16 %v2132
    %v2594 = vunpack.c.l.b16 %v2133
    %v2595 = vunpack.c.h.b16 %v2133
    %v2596 = vunpack.c.l.b16 %v2134
    %v2597 = vunpack.c.h.b16 %v2134
    %v2598 = vunpack.c.l.b16 %v2135
    %v2599 = vunpack.c.h.b16 %v2135
    %v2600 = vunpack.c.l.b16 %v2136
    %v2601 = vunpack.c.h.b16 %v2136
    %v2602 = vunpack.c.l.b16 %v2137
    %v2603 = vunpack.c.h.b16 %v2137
    %v2604 = vunpack.c.l.b16 %v2138
    %v2605 = vunpack.c.h.b16 %v2138
    %v2606 = vunpack.c.l.b16 %v2139
    %v2607 = vunpack.c.h.b16 %v2139
    %v2608 = vunpack.c.l.b16 %v2140
    %v2609 = vunpack.c.h.b16 %v2140
    %v2610 = vunpack.c.l.b16 %v2141
    %v2611 = vunpack.c.h.b16 %v2141
    %v2612 = vunpack.c.l.b16 %v2142
    %v2613 = vunpack.c.h.b16 %v2142
    %v2614 = vunpack.c.l.b16 %v2143
    %v2615 = vunpack.c.h.b16 %v2143
    %v2616 = vunpack.c.l.b16 %v2144
    %v2617 = vunpack.c.h.b16 %v2144
    %v2618 = vunpack.c.l.b16 %v2145
    %v2619 = vunpack.c.h.b16 %v2145
    %v2620 = vunpack.c.l.b16 %v2146
    %v2621 = vunpack.c.h.b16 %v2146
    %v2622 = vunpack.c.l.b16 %v2147
    %v2623 = vunpack.c.h.b16 %v2147
    %v2624 = vunpack.c.l.b16 %v2148
    %v2625 = vunpack.c.h.b16 %v2148
    %v2626 = vunpack.c.l.b16 %v2149
    %v2627 = vunpack.c.h.b16 %v2149
    %v2628 = vunpack.c.l.b16 %v2150
    %v2629 = vunpack.c.h.b16 %v2150
    %v2630 = vunpack.c.l.b16 %v2151
    %v2631 = vunpack.c.h.b16 %v2151
    %v2632 = vunpack.c.l.b16 %v2152
    %v2633 = vunpack.c.h.b16 %v2152
    %v2634 = vunpack.c.l.b16 %v2153
    %v2635 = vunpack.c.h.b16 %v2153
    %v2636 = vunpack.c.l.b16 %v2154
    %v2637 = vunpack.c.h.b16 %v2154
    %v2638 = vunpack.c.l.b16 %v2155
    %v2639 = vunpack.c.h.b16 %v2155
    %v2640 = vunpack.c.l.b16 %v2156
    %v2641 = vunpack.c.h.b16 %v2156
    %v2642 = vunpack.c.l.b16 %v2157
    %v2643 = vunpack.c.h.b16 %v2157
    %v2644 = vunpack.c.l.b16 %v2158
    %v2645 = vunpack.c.h.b16 %v2158
    %v2646 = vunpack.c.l.b16 %v2159
    %v2647 = vunpack.c.h.b16 %v2159
    %v2648 = vunpack.c.l.b16 %v2160
    %v2649 = vunpack.c.h.b16 %v2160
    %v2650 = vunpack.c.l.b16 %v2161
    %v2651 = vunpack.c.h.b16 %v2161
    %v2652 = vunpack.c.l.b16 %v2162
    %v2653 = vunpack.c.h.b16 %v2162
    %v2654 = vunpack.c.l.b16 %v2163
    %v2655 = vunpack.c.h.b16 %v2163
    %v2656 = vunpack.c.l.b16 %v2164
    %v2657 = vunpack.c.h.b16 %v2164
    %v2658 = vunpack.c.l.b16 %v2165
    %v2659 = vunpack.c.h.b16 %v2165
    %v2660 = vunpack.c.l.b16 %v2166
    %v2661 = vunpack.c.h.b16 %v2166
    %v2662 = vunpack.c.l.b16 %v2167
    %v2663 = vunpack.c.h.b16 %v2167
    %v2664 = vunpack.c.l.b16 %v2168
    %v2665 = vunpack.c.h.b16 %v2168
    %v2666 = vunpack.c.l.b16 %v2169
    %v2667 = vunpack.c.h.b16 %v2169
    %v2668 = vunpack.c.l.b16 %v2170
    %v2669 = vunpack.c.h.b16 %v2170
    %v2670 = vunpack.c.l.b16 %v2171
    %v2671 = vunpack.c.h.b16 %v2171
    %v2672 = vunpack.c.l.b16 %v2172
    %v2673 = vunpack.c.h.b16 %v2172
    %v2674 = vunpack.c.l.b16 %v2173
    %v2675 = vunpack.c.h.b16 %v2173
    %v2676 = vunpack.c.l.b16 %v2174
    %v2677 = vunpack.c.h.b16 %v2174
    %v2678 = vunpack.c.l.b16 %v2175
    %v2679 = vunpack.c.h.b16 %v2175
    %v2680 = vunpack.c.l.b16 %v2176
    %v2681 = vunpack.c.h.b16 %v2176
    %v2682 = vunpack.c.l.b16 %v2177
    %v2683 = vunpack.c.h.b16 %v2177
    %v2684 = vunpack.c.l.b16 %v2178
    %v2685 = vunpack.c.h.b16 %v2178
    %v2686 = vunpack.c.l.b16 %v2179
    %v2687 = vunpack.c.h.b16 %v2179
    %v2688 = vunpack.c.l.b16 %v2180
    %v2689 = vunpack.c.h.b16 %v2180
    %v2690 = vunpack.c.l.b16 %v2181
    %v2691 = vunpack.c.h.b16 %v2181
    %v2692 = vunpack.c.l.b16 %v2182
    %v2693 = vunpack.c.h.b16 %v2182
    %v2694 = vunpack.c.l.b16 %v2183
    %v2695 = vunpack.c.h.b16 %v2183
    %v2696 = vunpack.c.l.b16 %v2184
    %v2697 = vunpack.c.h.b16 %v2184
    %v2698 = vunpack.c.l.b16 %v2185
    %v2699 = vunpack.c.h.b16 %v2185
    %v2700 = vunpack.c.l.b16 %v2186
    %v2701 = vunpack.c.h.b16 %v2186
    %v2702 = vunpack.c.l.b16 %v2187
    %v2703 = vunpack.c.h.b16 %v2187
    %v2704 = vunpack.c.l.b16 %v2188
    %v2705 = vunpack.c.h.b16 %v2188
    %v2706 = vunpack.c.l.b16 %v2189
    %v2707 = vunpack.c.h.b16 %v2189
    %v2708 = vunpack.c.l.b16 %v2190
    %v2709 = vunpack.c.h.b16 %v2190
    %v2710 = vunpack.c.l.b16 %v2191
    %v2711 = vunpack.c.h.b16 %v2191
    %v2712 = vunpack.c.l.b16 %v2192
    %v2713 = vunpack.c.h.b16 %v2192
    %v2714 = vunpack.c.l.b16 %v2193
    %v2715 = vunpack.c.h.b16 %v2193
    %v2716 = vunpack.c.l.b16 %v2194
    %v2717 = vunpack.c.h.b16 %v2194
    %v2718 = vunpack.c.l.b16 %v2195
    %v2719 = vunpack.c.h.b16 %v2195
    %v2720 = vunpack.c.l.b16 %v2196
    %v2721 = vunpack.c.h.b16 %v2196
    %v2722 = vunpack.c.l.b16 %v2197
    %v2723 = vunpack.c.h.b16 %v2197
    %v2724 = vunpack.c.l.b16 %v2198
    %v2725 = vunpack.c.h.b16 %v2198
    %v2726 = vunpack.c.l.b16 %v2199
    %v2727 = vunpack.c.h.b16 %v2199
    %v2728 = vunpack.c.l.b16 %v2200
    %v2729 = vunpack.c.h.b16 %v2200
    %v2730 = vunpack.c.l.b16 %v2201
    %v2731 = vunpack.c.h.b16 %v2201
    %v2732 = vunpack.c.l.b16 %v2202
    %v2733 = vunpack.c.h.b16 %v2202
    %v2734 = vunpack.c.l.b16 %v2203
    %v2735 = vunpack.c.h.b16 %v2203
    %v2736 = vunpack.c.l.b16 %v2204
    %v2737 = vunpack.c.h.b16 %v2204
    %v2738 = vunpack.c.l.b16 %v2205
    %v2739 = vunpack.c.h.b16 %v2205
    %v2740 = vunpack.c.l.b16 %v2206
    %v2741 = vunpack.c.h.b16 %v2206
    %v2742 = vunpack.c.l.b16 %v2207
    %v2743 = vunpack.c.h.b16 %v2207
    %v2744 = vunpack.c.l.b16 %v2208
    %v2745 = vunpack.c.h.b16 %v2208
    %v2746 = vunpack.c.l.b16 %v2209
    %v2747 = vunpack.c.h.b16 %v2209
    %v2748 = vunpack.c.l.b16 %v2210
    %v2749 = vunpack.c.h.b16 %v2210
    %v2750 = vunpack.c.l.b16 %v2211
    %v2751 = vunpack.c.h.b16 %v2211
    %v2752 = vunpack.c.l.b16 %v2212
    %v2753 = vunpack.c.h.b16 %v2212
    %v2754 = vunpack.c.l.b16 %v2213
    %v2755 = vunpack.c.h.b16 %v2213
    %v2756 = vunpack.c.l.b16 %v2214
    %v2757 = vunpack.c.h.b16 %v2214
    %v2758 = vunpack.c.l.b16 %v2215
    %v2759 = vunpack.c.h.b16 %v2215
    %v2760 = vunpack.c.l.b16 %v2216
    %v2761 = vunpack.c.h.b16 %v2216
    %v2762 = vunpack.c.l.b16 %v2217
    %v2763 = vunpack.c.h.b16 %v2217
    %v2764 = vunpack.c.l.b16 %v2218
    %v2765 = vunpack.c.h.b16 %v2218
    %v2766 = vunpack.c.l.b16 %v2219
    %v2767 = vunpack.c.h.b16 %v2219
    %v2768 = vunpack.c.l.b16 %v2220
    %v2769 = vunpack.c.h.b16 %v2220
    %v2770 = vunpack.c.l.b16 %v2221
    %v2771 = vunpack.c.h.b16 %v2221
    %v2772 = vunpack.c.l.b16 %v2222
    %v2773 = vunpack.c.h.b16 %v2222
    %v2774 = vpack.c.b16 %v2418, %v2414
    %v2775 = vpack.c.b16 %v2419, %v2415
    %v2776 = vpack.c.b16 %v2420, %v2416
    %v2777 = vpack.c.b16 %v2421, %v2417
    %v2778 = vpack.c.b16 %v2426, %v2422
    %v2779 = vpack.c.b16 %v2427, %v2423
    %v2780 = vpack.c.b16 %v2428, %v2424
    %v2781 = vpack.c.b16 %v2429, %v2425
    %v2782 = vpack.c.b16 %v2434, %v2430
    %v2783 = vpack.c.b16 %v2435, %v2431
    %v2784 = vpack.c.b16 %v2436, %v2432
    %v2785 = vpack.c.b16 %v2437, %v2433
    %v2786 = vpack.c.b16 %v2442, %v2438
    %v2787 = vpack.c.b16 %v2443, %v2439
    %v2788 = vpack.c.b16 %v2444, %v2440
    %v2789 = vpack.c.b16 %v2445, %v2441
    %v2790 = vpack.c.b16 %v2450, %v2446
    %v2791 = vpack.c.b16 %v2451, %v2447
    %v2792 = vpack.c.b16 %v2452, %v2448
    %v2793 = vpack.c.b16 %v2453, %v2449
    %v2794 = vpack.c.b16 %v2458, %v2454
    %v2795 = vpack.c.b16 %v2459, %v2455
    %v2796 = vpack.c.b16 %v2460, %v2456
    %v2797 = vpack.c.b16 %v2461, %v2457
    %v2798 = vpack.c.b16 %v2466, %v2462
    %v2799 = vpack.c.b16 %v2467, %v2463
    %v2800 = vpack.c.b16 %v2468, %v2464
    %v2801 = vpack.c.b16 %v2469, %v2465
    %v2802 = vpack.c.b16 %v2474, %v2470
    %v2803 = vpack.c.b16 %v2475, %v2471
    %v2804 = vpack.c.b16 %v2476, %v2472
    %v2805 = vpack.c.b16 %v2477, %v2473
    %v2806 = vpack.c.b16 %v2482, %v2478
    %v2807 = vpack.c.b16 %v2483, %v2479
    %v2808 = vpack.c.b16 %v2484, %v2480
    %v2809 = vpack.c.b16 %v2485, %v2481
    %v2810 = vpack.c.b16 %v2490, %v2486
    %v2811 = vpack.c.b16 %v2491, %v2487
    %v2812 = vpack.c.b16 %v2492, %v2488
    %v2813 = vpack.c.b16 %v2493, %v2489
    %v2814 = vpack.c.b16 %v2498, %v2494
    %v2815 = vpack.c.b16 %v2499, %v2495
    %v2816 = vpack.c.b16 %v2500, %v2496
    %v2817 = vpack.c.b16 %v2501, %v2497
    %v2818 = vpack.c.b16 %v2506, %v2502
    %v2819 = vpack.c.b16 %v2507, %v2503
    %v2820 = vpack.c.b16 %v2508, %v2504
    %v2821 = vpack.c.b16 %v2509, %v2505
    %v2822 = vpack.c.b16 %v2514, %v2510
    %v2823 = vpack.c.b16 %v2515, %v2511
    %v2824 = vpack.c.b16 %v2516, %v2512
    %v2825 = vpack.c.b16 %v2517, %v2513
    %v2826 = vpack.c.b16 %v2522, %v2518
    %v2827 = vpack.c.b16 %v2523, %v2519
    %v2828 = vpack.c.b16 %v2524, %v2520
    %v2829 = vpack.c.b16 %v2525, %v2521
    %v2830 = vpack.c.b16 %v2530, %v2526
    %v2831 = vpack.c.b16 %v2531, %v2527
    %v2832 = vpack.c.b16 %v2532, %v2528
    %v2833 = vpack.c.b16 %v2533, %v2529
    %v2834 = vpack.c.b16 %v2538, %v2534
    %v2835 = vpack.c.b16 %v2539, %v2535
    %v2836 = vpack.c.b16 %v2540, %v2536
    %v2837 = vpack.c.b16 %v2541, %v2537
    %v2838 = vpack.c.b16 %v2546, %v2542
    %v2839 = vpack.c.b16 %v2547, %v2543
    %v2840 = vpack.c.b16 %v2548, %v2544
    %v2841 = vpack.c.b16 %v2549, %v2545
    %v2842 = vpack.c.b16 %v2554, %v2550
    %v2843 = vpack.c.b16 %v2555, %v2551
    %v2844 = vpack.c.b16 %v2556, %v2552
    %v2845 = vpack.c.b16 %v2557, %v2553
    %v2846 = vpack.c.b16 %v2562, %v2558
    %v2847 = vpack.c.b16 %v2563, %v2559
    %v2848 = vpack.c.b16 %v2564, %v2560
    %v2849 = vpack.c.b16 %v2565, %v2561
    %v2850 = vpack.c.b16 %v2570, %v2566
    %v2851 = vpack.c.b16 %v2571, %v2567
    %v2852 = vpack.c.b16 %v2572, %v2568
    %v2853 = vpack.c.b16 %v2573, %v2569
    %v2854 = vpack.c.b16 %v2578, %v2574
    %v2855 = vpack.c.b16 %v2579, %v2575
    %v2856 = vpack.c.b16 %v2580, %v2576
    %v2857 = vpack.c.b16 %v2581, %v2577
    %v2858 = vpack.c.b16 %v2586, %v2582
    %v2859 = vpack.c.b16 %v2587, %v2583
    %v2860 = vpack.c.b16 %v2588, %v2584
    %v2861 = vpack.c.b16 %v2589, %v2585
    %v2862 = vpack.c.b16 %v2594, %v2590
    %v2863 = vpack.c.b16 %v2595, %v2591
    %v2864 = vpack.c.b16 %v2596, %v2592
    %v2865 = vpack.c.b16 %v2597, %v2593
    %v2866 = vpack.c.b16 %v2602, %v2598
    %v2867 = vpack.c.b16 %v2603, %v2599
    %v2868 = vpack.c.b16 %v2604, %v2600
    %v2869 = vpack.c.b16 %v2605, %v2601
    %v2870 = vpack.c.b16 %v2610, %v2606
    %v2871 = vpack.c.b16 %v2611, %v2607
    %v2872 = vpack.c.b16 %v2612, %v2608
    %v2873 = vpack.c.b16 %v2613, %v2609
    %v2874 = vpack.c.b16 %v2618, %v2614
    %v2875 = vpack.c.b16 %v2619, %v2615
    %v2876 = vpack.c.b16 %v2620, %v2616
    %v2877 = vpack.c.b16 %v2621, %v2617
    %v2878 = vpack.c.b16 %v2626, %v2622
    %v2879 = vpack.c.b16 %v2627, %v2623
    %v2880 = vpack.c.b16 %v2628, %v2624
    %v2881 = vpack.c.b16 %v2629, %v2625
    %v2882 = vpack.c.b16 %v2634, %v2630
    %v2883 = vpack.c.b16 %v2635, %v2631
    %v2884 = vpack.c.b16 %v2636, %v2632
    %v2885 = vpack.c.b16 %v2637, %v2633
    %v2886 = vpack.c.b16 %v2642, %v2638
    %v2887 = vpack.c.b16 %v2643, %v2639
    %v2888 = vpack.c.b16 %v2644, %v2640
    %v2889 = vpack.c.b16 %v2645, %v2641
    %v2890 = vpack.c.b16 %v2650, %v2646
    %v2891 = vpack.c.b16 %v2651, %v2647
    %v2892 = vpack.c.b16 %v2652, %v2648
    %v2893 = vpack.c.b16 %v2653, %v2649
    %v2894 = vpack.c.b16 %v2658, %v2654
    %v2895 = vpack.c.b16 %v2659, %v2655
    %v2896 = vpack.c.b16 %v2660, %v2656
    %v2897 = vpack.c.b16 %v2661, %v2657
    %v2898 = vpack.c.b16 %v2666, %v2662
    %v2899 = vpack.c.b16 %v2667, %v2663
    %v2900 = vpack.c.b16 %v2668, %v2664
    %v2901 = vpack.c.b16 %v2669, %v2665
    %v2902 = vpack.c.b16 %v2674, %v2670
    %v2903 = vpack.c.b16 %v2675, %v2671
    %v2904 = vpack.c.b16 %v2676, %v2672
    %v2905 = vpack.c.b16 %v2677, %v2673
    %v2906 = vpack.c.b16 %v2682, %v2678
    %v2907 = vpack.c.b16 %v2683, %v2679
    %v2908 = vpack.c.b16 %v2684, %v2680
    %v2909 = vpack.c.b16 %v2685, %v2681
    %v2910 = vpack.c.b16 %v2690, %v2686
    %v2911 = vpack.c.b16 %v2691, %v2687
    %v2912 = vpack.c.b16 %v2692, %v2688
    %v2913 = vpack.c.b16 %v2693, %v2689
    %v2914 = vpack.c.b16 %v2698, %v2694
    %v2915 = vpack.c.b16 %v2699, %v2695
    %v2916 = vpack.c.b16 %v2700, %v2696
    %v2917 = vpack.c.b16 %v2701, %v2697
    %v2918 = vpack.c.b16 %v2706, %v2702
    %v2919 = vpack.c.b16 %v2707, %v2703
    %v2920 = vpack.c.b16 %v2708, %v2704
    %v2921 = vpack.c.b16 %v2709, %v2705
    %v2922 = vpack.c.b16 %v2714, %v2710
    %v2923 = vpack.c.b16 %v2715, %v2711
    %v2924 = vpack.c.b16 %v2716, %v2712
    %v2925 = vpack.c.b16 %v2717, %v2713
    %v2926 = vpack.c.b16 %v2722, %v2718
    %v2927 = vpack.c.b16 %v2723, %v2719
    %v2928 = vpack.c.b16 %v2724, %v2720
    %v2929 = vpack.c.b16 %v2725, %v2721
    %v2930 = vpack.c.b16 %v2730, %v2726
    %v2931 = vpack.c.b16 %v2731, %v2727
    %v2932 = vpack.c.b16 %v2732, %v2728
    %v2933 = vpack.c.b16 %v2733, %v2729
    %v2934 = vpack.c.b16 %v2738, %v2734
    %v2935 = vpack.c.b16 %v2739, %v2735
    %v2936 = vpack.c.b16 %v2740, %v2736
    %v2937 = vpack.c.b16 %v2741, %v2737
    %v2938 = vpack.c.b16 %v2746, %v2742
    %v2939 = vpack.c.b16 %v2747, %v2743
    %v2940 = vpack.c.b16 %v2748, %v2744
    %v2941 = vpack.c.b16 %v2749, %v2745
    %v2942 = vpack.c.b16 %v2754, %v2750
    %v2943 = vpack.c.b16 %v2755, %v2751
    %v2944 = vpack.c.b16 %v2756, %v2752
    %v2945 = vpack.c.b16 %v2757, %v2753
    %v2946 = vpack.c.b16 %v2762, %v2758
    %v2947 = vpack.c.b16 %v2763, %v2759
    %v2948 = vpack.c.b16 %v2764, %v2760
    %v2949 = vpack.c.b16 %v2765, %v2761
    %v2950 = vpack.c.b16 %v2770, %v2766
    %v2951 = vpack.c.b16 %v2771, %v2767
    %v2952 = vpack.c.b16 %v2772, %v2768
    %v2953 = vpack.c.b16 %v2773, %v2769
    %vm3134 = vcmask 654336
    %v3136 = vsel %vm3134, %v2228, 0
    %3138 = vmatprep.subr.bf16.mxu0 %v2775
    %3139 = vmatpush1.bf16.msra.mxu0 %v2774
    %3140 = vmatprep.subr.bf16.mxu0 %v2779
    %3141 = vmatpush1.bf16.msra.mxu0 %v2778
    %3142 = vmatprep.subr.bf16.mxu0 %v2783
    %3143 = vmatpush1.bf16.msra.mxu0 %v2782
    %3144 = vmatprep.subr.bf16.mxu0 %v2787
    %3145 = vmatpush1.bf16.msra.mxu0 %v2786
    %3146 = vmatprep.subr.bf16.mxu0 %v2791
    %3147 = vmatpush1.bf16.msra.mxu0 %v2790
    %3148 = vmatprep.subr.bf16.mxu0 %v2795
    %3149 = vmatpush1.bf16.msra.mxu0 %v2794
    %3150 = vmatprep.subr.bf16.mxu0 %v2799
    %3151 = vmatpush1.bf16.msra.mxu0 %v2798
    %3152 = vmatprep.subr.bf16.mxu0 %v2803
    %3153 = vmatpush1.bf16.msra.mxu0 %v2802
    %3154 = vmatprep.subr.bf16.mxu0 %v2807
    %3155 = vmatpush1.bf16.msra.mxu0 %v2806
    %3156 = vmatprep.subr.bf16.mxu0 %v2811
    %3157 = vmatpush1.bf16.msra.mxu0 %v2810
    %3158 = vmatprep.subr.bf16.mxu0 %v2815
    %3159 = vmatpush1.bf16.msra.mxu0 %v2814
    %3160 = vmatprep.subr.bf16.mxu0 %v2819
    %3161 = vmatpush1.bf16.msra.mxu0 %v2818
    %3162 = vmatprep.subr.bf16.mxu0 %v2823
    %3163 = vmatpush1.bf16.msra.mxu0 %v2822
    %3164 = vmatprep.subr.bf16.mxu0 %v2827
    %3165 = vmatpush1.bf16.msra.mxu0 %v2826
    %3166 = vmatprep.subr.bf16.mxu0 %v2831
    %3167 = vmatpush1.bf16.msra.mxu0 %v2830
    %3168 = vmatprep.subr.bf16.mxu0 %v2835
    %3169 = vmatpush1.bf16.msra.mxu0 %v2834
    %3170 = vmatprep.mubr.bf16.mxu0 %v2224
    %3171 = vmatmul.mubr.bf16.gmra.mrb[0].mxu0 %v2223
    %v3172 = vpop.f32.mrb[0].mxu0
    %v3173 = vadd.f32 0.0, %v3172
    %v3174 = vpop.f32.mrb[0].mxu0
    %v3175 = vadd.f32 0.0, %v3174
    %v3176 = vpop.f32.mrb[0].mxu0
    %v3177 = vadd.f32 0.0, %v3176
    %v3178 = vpop.f32.mrb[0].mxu0
    %v3179 = vadd.f32 0.0, %v3178
    %3180 = vdwg.mxu0
    %3181 = vmatprep.subr.bf16.mxu0 %v2839
    %3182 = vmatpush1.bf16.msra.mxu0 %v2838
    %3183 = vmatprep.subr.bf16.mxu0 %v2843
    %3184 = vmatpush1.bf16.msra.mxu0 %v2842
    %3185 = vmatprep.subr.bf16.mxu0 %v2847
    %3186 = vmatpush1.bf16.msra.mxu0 %v2846
    %3187 = vmatprep.subr.bf16.mxu0 %v2851
    %3188 = vmatpush1.bf16.msra.mxu0 %v2850
    %3189 = vmatprep.subr.bf16.mxu0 %v2855
    %3190 = vmatpush1.bf16.msra.mxu0 %v2854
    %3191 = vmatprep.subr.bf16.mxu0 %v2859
    %3192 = vmatpush1.bf16.msra.mxu0 %v2858
    %3193 = vmatprep.subr.bf16.mxu0 %v2863
    %3194 = vmatpush1.bf16.msra.mxu0 %v2862
    %3195 = vmatprep.subr.bf16.mxu0 %v2867
    %3196 = vmatpush1.bf16.msra.mxu0 %v2866
    %3197 = vmatprep.subr.bf16.mxu0 %v2871
    %3198 = vmatpush1.bf16.msra.mxu0 %v2870
    %3199 = vmatprep.subr.bf16.mxu0 %v2875
    %3200 = vmatpush1.bf16.msra.mxu0 %v2874
    %3201 = vmatprep.subr.bf16.mxu0 %v2879
    %3202 = vmatpush1.bf16.msra.mxu0 %v2878
    %3203 = vmatprep.subr.bf16.mxu0 %v2883
    %3204 = vmatpush1.bf16.msra.mxu0 %v2882
    %3205 = vmatprep.subr.bf16.mxu0 %v2887
    %3206 = vmatpush1.bf16.msra.mxu0 %v2886
    %3207 = vmatprep.subr.bf16.mxu0 %v2891
    %3208 = vmatpush1.bf16.msra.mxu0 %v2890
    %3209 = vmatprep.subr.bf16.mxu0 %v2895
    %3210 = vmatpush1.bf16.msra.mxu0 %v2894
    %3211 = vmatprep.subr.bf16.mxu0 %v2899
    %3212 = vmatpush1.bf16.msra.mxu0 %v2898
    %3213 = vmatprep.mubr.bf16.mxu0 %v2226
    %3214 = vmatmul.mubr.bf16.gmra.mrb[0].mxu0 %v2225
    %v3215 = vpop.f32.mrb[0].mxu0
    %v3216 = vadd.f32 %v3173, %v3215
    %v3217 = vpop.f32.mrb[0].mxu0
    %v3218 = vadd.f32 %v3175, %v3217
    %v3219 = vpop.f32.mrb[0].mxu0
    %v3220 = vadd.f32 %v3177, %v3219
    %v3221 = vpop.f32.mrb[0].mxu0
    %v3222 = vadd.f32 %v3179, %v3221
    %3223 = vdwg.mxu0
    %3224 = vmatprep.subr.bf16.mxu0 %v2903
    %3225 = vmatpush1.bf16.msra.mxu0 %v2902
    %3226 = vmatprep.subr.bf16.mxu0 %v2907
    %3227 = vmatpush1.bf16.msra.mxu0 %v2906
    %3228 = vmatprep.subr.bf16.mxu0 %v2911
    %3229 = vmatpush1.bf16.msra.mxu0 %v2910
    %3230 = vmatprep.subr.bf16.mxu0 %v2915
    %3231 = vmatpush1.bf16.msra.mxu0 %v2914
    %3232 = vmatprep.subr.bf16.mxu0 %v2919
    %3233 = vmatpush1.bf16.msra.mxu0 %v2918
    %3234 = vmatprep.subr.bf16.mxu0 %v2923
    %3235 = vmatpush1.bf16.msra.mxu0 %v2922
    %3236 = vmatprep.subr.bf16.mxu0 %v2927
    %3237 = vmatpush1.bf16.msra.mxu0 %v2926
    %3238 = vmatprep.subr.bf16.mxu0 %v2931
    %3239 = vmatpush1.bf16.msra.mxu0 %v2930
    %3240 = vmatprep.subr.bf16.mxu0 %v2935
    %3241 = vmatpush1.bf16.msra.mxu0 %v2934
    %3242 = vmatprep.subr.bf16.mxu0 %v2939
    %3243 = vmatpush1.bf16.msra.mxu0 %v2938
    %3244 = vmatprep.subr.bf16.mxu0 %v2943
    %3245 = vmatpush1.bf16.msra.mxu0 %v2942
    %3246 = vmatprep.subr.bf16.mxu0 %v2947
    %3247 = vmatpush1.bf16.msra.mxu0 %v2946
    %3248 = vmatprep.subr.bf16.mxu0 %v2951
    %3249 = vmatpush1.bf16.msra.mxu0 %v2950
    %3250 = vmatprep.subr.bf16.mxu0 0
    %3251 = vmatpush1.bf16.msra.mxu0 0
    %3252 = vmatprep.subr.bf16.mxu0 0
    %3253 = vmatpush1.bf16.msra.mxu0 0
    %3254 = vmatprep.subr.bf16.mxu0 0
    %3255 = vmatpush1.bf16.msra.mxu0 0
    %3256 = vmatprep.mubr.bf16.mxu0 %v3136
    %3257 = vmatmul.mubr.bf16.gmra.mrb[0].mxu0 %v2227
    %v3258 = vpop.f32.mrb[0].mxu0
    %v3259 = vadd.f32 %v3216, %v3258
    %v3260 = vpop.f32.mrb[0].mxu0
    %v3261 = vadd.f32 %v3218, %v3260
    %v3262 = vpop.f32.mrb[0].mxu0
    %v3263 = vadd.f32 %v3220, %v3262
    %v3264 = vpop.f32.mrb[0].mxu0
    %v3265 = vadd.f32 %v3222, %v3264
    %3266 = vdwg.mxu0
    %3267 = vmatprep.subr.bf16.mxu0 %v2777
    %3268 = vmatpush1.bf16.msra.mxu0 %v2776
    %3269 = vmatprep.subr.bf16.mxu0 %v2781
    %3270 = vmatpush1.bf16.msra.mxu0 %v2780
    %3271 = vmatprep.subr.bf16.mxu0 %v2785
    %3272 = vmatpush1.bf16.msra.mxu0 %v2784
    %3273 = vmatprep.subr.bf16.mxu0 %v2789
    %3274 = vmatpush1.bf16.msra.mxu0 %v2788
    %3275 = vmatprep.subr.bf16.mxu0 %v2793
    %3276 = vmatpush1.bf16.msra.mxu0 %v2792
    %3277 = vmatprep.subr.bf16.mxu0 %v2797
    %3278 = vmatpush1.bf16.msra.mxu0 %v2796
    %3279 = vmatprep.subr.bf16.mxu0 %v2801
    %3280 = vmatpush1.bf16.msra.mxu0 %v2800
    %3281 = vmatprep.subr.bf16.mxu0 %v2805
    %3282 = vmatpush1.bf16.msra.mxu0 %v2804
    %3283 = vmatprep.subr.bf16.mxu0 %v2809
    %3284 = vmatpush1.bf16.msra.mxu0 %v2808
    %3285 = vmatprep.subr.bf16.mxu0 %v2813
    %3286 = vmatpush1.bf16.msra.mxu0 %v2812
    %3287 = vmatprep.subr.bf16.mxu0 %v2817
    %3288 = vmatpush1.bf16.msra.mxu0 %v2816
    %3289 = vmatprep.subr.bf16.mxu0 %v2821
    %3290 = vmatpush1.bf16.msra.mxu0 %v2820
    %3291 = vmatprep.subr.bf16.mxu0 %v2825
    %3292 = vmatpush1.bf16.msra.mxu0 %v2824
    %3293 = vmatprep.subr.bf16.mxu0 %v2829
    %3294 = vmatpush1.bf16.msra.mxu0 %v2828
    %3295 = vmatprep.subr.bf16.mxu0 %v2833
    %3296 = vmatpush1.bf16.msra.mxu0 %v2832
    %3297 = vmatprep.subr.bf16.mxu0 %v2837
    %3298 = vmatpush1.bf16.msra.mxu0 %v2836
    %3299 = vmatprep.mubr.bf16.mxu0 %v2224
    %3300 = vmatmul.mubr.bf16.gmra.mrb[0].mxu0 %v2223
    %v3301 = vpop.f32.mrb[0].mxu0
    %v3302 = vadd.f32 0.0, %v3301
    %v3303 = vpop.f32.mrb[0].mxu0
    %v3304 = vadd.f32 0.0, %v3303
    %v3305 = vpop.f32.mrb[0].mxu0
    %v3306 = vadd.f32 0.0, %v3305
    %v3307 = vpop.f32.mrb[0].mxu0
    %v3308 = vadd.f32 0.0, %v3307
    %3309 = vdwg.mxu0
    %3310 = vmatprep.subr.bf16.mxu0 %v2841
    %3311 = vmatpush1.bf16.msra.mxu0 %v2840
    %3312 = vmatprep.subr.bf16.mxu0 %v2845
    %3313 = vmatpush1.bf16.msra.mxu0 %v2844
    %3314 = vmatprep.subr.bf16.mxu0 %v2849
    %3315 = vmatpush1.bf16.msra.mxu0 %v2848
    %3316 = vmatprep.subr.bf16.mxu0 %v2853
    %3317 = vmatpush1.bf16.msra.mxu0 %v2852
    %3318 = vmatprep.subr.bf16.mxu0 %v2857
    %3319 = vmatpush1.bf16.msra.mxu0 %v2856
    %3320 = vmatprep.subr.bf16.mxu0 %v2861
    %3321 = vmatpush1.bf16.msra.mxu0 %v2860
    %3322 = vmatprep.subr.bf16.mxu0 %v2865
    %3323 = vmatpush1.bf16.msra.mxu0 %v2864
    %3324 = vmatprep.subr.bf16.mxu0 %v2869
    %3325 = vmatpush1.bf16.msra.mxu0 %v2868
    %3326 = vmatprep.subr.bf16.mxu0 %v2873
    %3327 = vmatpush1.bf16.msra.mxu0 %v2872
    %3328 = vmatprep.subr.bf16.mxu0 %v2877
    %3329 = vmatpush1.bf16.msra.mxu0 %v2876
    %3330 = vmatprep.subr.bf16.mxu0 %v2881
    %3331 = vmatpush1.bf16.msra.mxu0 %v2880
    %3332 = vmatprep.subr.bf16.mxu0 %v2885
    %3333 = vmatpush1.bf16.msra.mxu0 %v2884
    %3334 = vmatprep.subr.bf16.mxu0 %v2889
    %3335 = vmatpush1.bf16.msra.mxu0 %v2888
    %3336 = vmatprep.subr.bf16.mxu0 %v2893
    %3337 = vmatpush1.bf16.msra.mxu0 %v2892
    %3338 = vmatprep.subr.bf16.mxu0 %v2897
    %3339 = vmatpush1.bf16.msra.mxu0 %v2896
    %3340 = vmatprep.subr.bf16.mxu0 %v2901
    %3341 = vmatpush1.bf16.msra.mxu0 %v2900
    %3342 = vmatprep.mubr.bf16.mxu0 %v2226
    %3343 = vmatmul.mubr.bf16.gmra.mrb[0].mxu0 %v2225
    %v3344 = vpop.f32.mrb[0].mxu0
    %v3345 = vadd.f32 %v3302, %v3344
    %v3346 = vpop.f32.mrb[0].mxu0
    %v3347 = vadd.f32 %v3304, %v3346
    %v3348 = vpop.f32.mrb[0].mxu0
    %v3349 = vadd.f32 %v3306, %v3348
    %v3350 = vpop.f32.mrb[0].mxu0
    %v3351 = vadd.f32 %v3308, %v3350
    %3352 = vdwg.mxu0
    %3353 = vmatprep.subr.bf16.mxu0 %v2905
    %3354 = vmatpush1.bf16.msra.mxu0 %v2904
    %3355 = vmatprep.subr.bf16.mxu0 %v2909
    %3356 = vmatpush1.bf16.msra.mxu0 %v2908
    %3357 = vmatprep.subr.bf16.mxu0 %v2913
    %3358 = vmatpush1.bf16.msra.mxu0 %v2912
    %3359 = vmatprep.subr.bf16.mxu0 %v2917
    %3360 = vmatpush1.bf16.msra.mxu0 %v2916
    %3361 = vmatprep.subr.bf16.mxu0 %v2921
    %3362 = vmatpush1.bf16.msra.mxu0 %v2920
    %3363 = vmatprep.subr.bf16.mxu0 %v2925
    %3364 = vmatpush1.bf16.msra.mxu0 %v2924
    %3365 = vmatprep.subr.bf16.mxu0 %v2929
    %3366 = vmatpush1.bf16.msra.mxu0 %v2928
    %3367 = vmatprep.subr.bf16.mxu0 %v2933
    %3368 = vmatpush1.bf16.msra.mxu0 %v2932
    %3369 = vmatprep.subr.bf16.mxu0 %v2937
    %3370 = vmatpush1.bf16.msra.mxu0 %v2936
    %3371 = vmatprep.subr.bf16.mxu0 %v2941
    %3372 = vmatpush1.bf16.msra.mxu0 %v2940
    %3373 = vmatprep.subr.bf16.mxu0 %v2945
    %3374 = vmatpush1.bf16.msra.mxu0 %v2944
    %3375 = vmatprep.subr.bf16.mxu0 %v2949
    %3376 = vmatpush1.bf16.msra.mxu0 %v2948
    %3377 = vmatprep.subr.bf16.mxu0 %v2953
    %3378 = vmatpush1.bf16.msra.mxu0 %v2952
    %3379 = vmatprep.subr.bf16.mxu0 0
    %3380 = vmatpush1.bf16.msra.mxu0 0
    %3381 = vmatprep.subr.bf16.mxu0 0
    %3382 = vmatpush1.bf16.msra.mxu0 0
    %3383 = vmatprep.subr.bf16.mxu0 0
    %3384 = vmatpush1.bf16.msra.mxu0 0
    %3385 = vmatprep.mubr.bf16.mxu0 %v3136
    %3386 = vmatmul.mubr.bf16.gmra.mrb[0].mxu0 %v2227
    %v3387 = vpop.f32.mrb[0].mxu0
    %v3388 = vadd.f32 %v3345, %v3387
    %v3389 = vpop.f32.mrb[0].mxu0
    %v3390 = vadd.f32 %v3347, %v3389
    %v3391 = vpop.f32.mrb[0].mxu0
    %v3392 = vadd.f32 %v3349, %v3391
    %v3393 = vpop.f32.mrb[0].mxu0
    %v3394 = vadd.f32 %v3351, %v3393
    %3395 = vdwg.mxu0
    %v3396 = vmax.f32 %v3259, 0.0
    %v3397 = vmax.f32 %v3261, 0.0
    %v3398 = vmax.f32 %v3388, 0.0
    %v3399 = vmax.f32 %v3390, 0.0
    %v3400 = vmax.f32 %v3263, 0.0
    %v3401 = vmax.f32 %v3265, 0.0
    %v3402 = vmax.f32 %v3392, 0.0
    %v3403 = vmax.f32 %v3394, 0.0
    %v3404 = vpack.c.bf16 %v3400, %v3396
    %v3405 = vpack.c.bf16 %v3401, %v3397
    %v3406 = vpack.c.bf16 %v3402, %v3398
    %v3407 = vpack.c.bf16 %v3403, %v3399
    %v3408 = vld [vmem:[%s4] sm:$0xff]
    %v3409 = vld [vmem:[%s4 + $0x8] sm:$0xff]
    %v3410 = vld [vmem:[%s4 + $0x10] sm:$0xff]
    %v3411 = vld [vmem:[%s4 + $0x18] sm:$0xff]
    %v3412 = vld [vmem:[%s4 + $0x20] sm:$0xff]
    %v3413 = vld [vmem:[%s4 + $0x28] sm:$0xff]
    %v3414 = vld [vmem:[%s4 + $0x30] sm:$0xff]
    %v3415 = vld [vmem:[%s4 + $0x38] sm:$0xff]
    %v3416 = vld [vmem:[%s4 + $0x40] sm:$0xff]
    %v3417 = vld [vmem:[%s4 + $0x48] sm:$0xff]
    %v3418 = vld [vmem:[%s4 + $0x50] sm:$0xff]
    %v3419 = vld [vmem:[%s4 + $0x58] sm:$0xff]
    %v3420 = vld [vmem:[%s4 + $0x60] sm:$0xff]
    %v3421 = vld [vmem:[%s4 + $0x68] sm:$0xff]
    %v3422 = vld [vmem:[%s4 + $0x70] sm:$0xff]
    %v3423 = vld [vmem:[%s4 + $0x78] sm:$0xff]
    %v3424 = vld [vmem:[%s4 + $0x80] sm:$0xff]
    %v3425 = vld [vmem:[%s4 + $0x88] sm:$0xff]
    %v3426 = vld [vmem:[%s4 + $0x90] sm:$0xff]
    %v3427 = vld [vmem:[%s4 + $0x98] sm:$0xff]
    %v3428 = vld [vmem:[%s4 + $0xa0] sm:$0xff]
    %v3429 = vld [vmem:[%s4 + $0xa8] sm:$0xff]
    %v3430 = vld [vmem:[%s4 + $0xb0] sm:$0xff]
    %v3431 = vld [vmem:[%s4 + $0xb8] sm:$0xff]
    %v3432 = vld [vmem:[%s4 + $0xc0] sm:$0xff]
    %v3433 = vld [vmem:[%s4 + $0xc8] sm:$0xff]
    %v3434 = vld [vmem:[%s4 + $0xd0] sm:$0xff]
    %v3435 = vld [vmem:[%s4 + $0xd8] sm:$0xff]
    %v3436 = vld [vmem:[%s4 + $0xe0] sm:$0xff]
    %v3437 = vld [vmem:[%s4 + $0xe8] sm:$0xff]
    %v3438 = vld [vmem:[%s4 + $0xf0] sm:$0xff]
    %v3439 = vld [vmem:[%s4 + $0xf8] sm:$0xff]
    %v3440 = vld [vmem:[%s4 + $0x100] sm:$0xff]
    %v3441 = vld [vmem:[%s4 + $0x108] sm:$0xff]
    %v3442 = vld [vmem:[%s4 + $0x110] sm:$0xff]
    %v3443 = vld [vmem:[%s4 + $0x118] sm:$0xff]
    %v3444 = vld [vmem:[%s4 + $0x120] sm:$0xff]
    %v3445 = vld [vmem:[%s4 + $0x128] sm:$0xff]
    %v3446 = vld [vmem:[%s4 + $0x130] sm:$0xff]
    %v3447 = vld [vmem:[%s4 + $0x138] sm:$0xff]
    %v3448 = vld [vmem:[%s4 + $0x140] sm:$0xff]
    %v3449 = vld [vmem:[%s4 + $0x148] sm:$0xff]
    %v3450 = vld [vmem:[%s4 + $0x150] sm:$0xff]
    %v3451 = vld [vmem:[%s4 + $0x158] sm:$0xff]
    %v3452 = vld [vmem:[%s4 + $0x160] sm:$0xff]
    %v3453 = vld [vmem:[%s4 + $0x168] sm:$0xff]
    %v3454 = vld [vmem:[%s4 + $0x170] sm:$0xff]
    %v3455 = vld [vmem:[%s4 + $0x178] sm:$0xff]
    %v3456 = vld [vmem:[%s4 + $0x180] sm:$0xff]
    %v3457 = vld [vmem:[%s4 + $0x188] sm:$0xff]
    %v3458 = vld [vmem:[%s4 + $0x190] sm:$0xff]
    %v3459 = vld [vmem:[%s4 + $0x198] sm:$0xff]
    %v3460 = vld [vmem:[%s4 + $0x1a0] sm:$0xff]
    %v3461 = vld [vmem:[%s4 + $0x1a8] sm:$0xff]
    %v3462 = vld [vmem:[%s4 + $0x1b0] sm:$0xff]
    %v3463 = vld [vmem:[%s4 + $0x1b8] sm:$0xff]
    %v3464 = vld [vmem:[%s4 + $0x1c0] sm:$0xff]
    %v3465 = vld [vmem:[%s4 + $0x1c8] sm:$0xff]
    %v3466 = vld [vmem:[%s4 + $0x1d0] sm:$0xff]
    %v3467 = vld [vmem:[%s4 + $0x1d8] sm:$0xff]
    %v3468 = vld [vmem:[%s4 + $0x1e0] sm:$0xff]
    %v3469 = vld [vmem:[%s4 + $0x1e8] sm:$0xff]
    %v3470 = vld [vmem:[%s4 + $0x1f0] sm:$0xff]
    %v3471 = vld [vmem:[%s4 + $0x1f8] sm:$0xff]
    %v3536 = vunpack.c.l.b16 %v3408
    %v3537 = vunpack.c.h.b16 %v3408
    %v3538 = vunpack.c.l.b16 %v3409
    %v3539 = vunpack.c.h.b16 %v3409
    %v3540 = vunpack.c.l.b16 %v3410
    %v3541 = vunpack.c.h.b16 %v3410
    %v3542 = vunpack.c.l.b16 %v3411
    %v3543 = vunpack.c.h.b16 %v3411
    %v3544 = vunpack.c.l.b16 %v3412
    %v3545 = vunpack.c.h.b16 %v3412
    %v3546 = vunpack.c.l.b16 %v3413
    %v3547 = vunpack.c.h.b16 %v3413
    %v3548 = vunpack.c.l.b16 %v3414
    %v3549 = vunpack.c.h.b16 %v3414
    %v3550 = vunpack.c.l.b16 %v3415
    %v3551 = vunpack.c.h.b16 %v3415
    %v3552 = vunpack.c.l.b16 %v3416
    %v3553 = vunpack.c.h.b16 %v3416
    %v3554 = vunpack.c.l.b16 %v3417
    %v3555 = vunpack.c.h.b16 %v3417
    %v3556 = vunpack.c.l.b16 %v3418
    %v3557 = vunpack.c.h.b16 %v3418
    %v3558 = vunpack.c.l.b16 %v3419
    %v3559 = vunpack.c.h.b16 %v3419
    %v3560 = vunpack.c.l.b16 %v3420
    %v3561 = vunpack.c.h.b16 %v3420
    %v3562 = vunpack.c.l.b16 %v3421
    %v3563 = vunpack.c.h.b16 %v3421
    %v3564 = vunpack.c.l.b16 %v3422
    %v3565 = vunpack.c.h.b16 %v3422
    %v3566 = vunpack.c.l.b16 %v3423
    %v3567 = vunpack.c.h.b16 %v3423
    %v3568 = vunpack.c.l.b16 %v3424
    %v3569 = vunpack.c.h.b16 %v3424
    %v3570 = vunpack.c.l.b16 %v3425
    %v3571 = vunpack.c.h.b16 %v3425
    %v3572 = vunpack.c.l.b16 %v3426
    %v3573 = vunpack.c.h.b16 %v3426
    %v3574 = vunpack.c.l.b16 %v3427
    %v3575 = vunpack.c.h.b16 %v3427
    %v3576 = vunpack.c.l.b16 %v3428
    %v3577 = vunpack.c.h.b16 %v3428
    %v3578 = vunpack.c.l.b16 %v3429
    %v3579 = vunpack.c.h.b16 %v3429
    %v3580 = vunpack.c.l.b16 %v3430
    %v3581 = vunpack.c.h.b16 %v3430
    %v3582 = vunpack.c.l.b16 %v3431
    %v3583 = vunpack.c.h.b16 %v3431
    %v3584 = vunpack.c.l.b16 %v3432
    %v3585 = vunpack.c.h.b16 %v3432
    %v3586 = vunpack.c.l.b16 %v3433
    %v3587 = vunpack.c.h.b16 %v3433
    %v3588 = vunpack.c.l.b16 %v3434
    %v3589 = vunpack.c.h.b16 %v3434
    %v3590 = vunpack.c.l.b16 %v3435
    %v3591 = vunpack.c.h.b16 %v3435
    %v3592 = vunpack.c.l.b16 %v3436
    %v3593 = vunpack.c.h.b16 %v3436
    %v3594 = vunpack.c.l.b16 %v3437
    %v3595 = vunpack.c.h.b16 %v3437
    %v3596 = vunpack.c.l.b16 %v3438
    %v3597 = vunpack.c.h.b16 %v3438
    %v3598 = vunpack.c.l.b16 %v3439
    %v3599 = vunpack.c.h.b16 %v3439
    %v3600 = vunpack.c.l.b16 %v3440
    %v3601 = vunpack.c.h.b16 %v3440
    %v3602 = vunpack.c.l.b16 %v3441
    %v3603 = vunpack.c.h.b16 %v3441
    %v3604 = vunpack.c.l.b16 %v3442
    %v3605 = vunpack.c.h.b16 %v3442
    %v3606 = vunpack.c.l.b16 %v3443
    %v3607 = vunpack.c.h.b16 %v3443
    %v3608 = vunpack.c.l.b16 %v3444
    %v3609 = vunpack.c.h.b16 %v3444
    %v3610 = vunpack.c.l.b16 %v3445
    %v3611 = vunpack.c.h.b16 %v3445
    %v3612 = vunpack.c.l.b16 %v3446
    %v3613 = vunpack.c.h.b16 %v3446
    %v3614 = vunpack.c.l.b16 %v3447
    %v3615 = vunpack.c.h.b16 %v3447
    %v3616 = vunpack.c.l.b16 %v3448
    %v3617 = vunpack.c.h.b16 %v3448
    %v3618 = vunpack.c.l.b16 %v3449
    %v3619 = vunpack.c.h.b16 %v3449
    %v3620 = vunpack.c.l.b16 %v3450
    %v3621 = vunpack.c.h.b16 %v3450
    %v3622 = vunpack.c.l.b16 %v3451
    %v3623 = vunpack.c.h.b16 %v3451
    %v3624 = vunpack.c.l.b16 %v3452
    %v3625 = vunpack.c.h.b16 %v3452
    %v3626 = vunpack.c.l.b16 %v3453
    %v3627 = vunpack.c.h.b16 %v3453
    %v3628 = vunpack.c.l.b16 %v3454
    %v3629 = vunpack.c.h.b16 %v3454
    %v3630 = vunpack.c.l.b16 %v3455
    %v3631 = vunpack.c.h.b16 %v3455
    %v3632 = vunpack.c.l.b16 %v3456
    %v3633 = vunpack.c.h.b16 %v3456
    %v3634 = vunpack.c.l.b16 %v3457
    %v3635 = vunpack.c.h.b16 %v3457
    %v3636 = vunpack.c.l.b16 %v3458
    %v3637 = vunpack.c.h.b16 %v3458
    %v3638 = vunpack.c.l.b16 %v3459
    %v3639 = vunpack.c.h.b16 %v3459
    %v3640 = vunpack.c.l.b16 %v3460
    %v3641 = vunpack.c.h.b16 %v3460
    %v3642 = vunpack.c.l.b16 %v3461
    %v3643 = vunpack.c.h.b16 %v3461
    %v3644 = vunpack.c.l.b16 %v3462
    %v3645 = vunpack.c.h.b16 %v3462
    %v3646 = vunpack.c.l.b16 %v3463
    %v3647 = vunpack.c.h.b16 %v3463
    %v3648 = vunpack.c.l.b16 %v3464
    %v3649 = vunpack.c.h.b16 %v3464
    %v3650 = vunpack.c.l.b16 %v3465
    %v3651 = vunpack.c.h.b16 %v3465
    %v3652 = vunpack.c.l.b16 %v3466
    %v3653 = vunpack.c.h.b16 %v3466
    %v3654 = vunpack.c.l.b16 %v3467
    %v3655 = vunpack.c.h.b16 %v3467
    %v3656 = vunpack.c.l.b16 %v3468
    %v3657 = vunpack.c.h.b16 %v3468
    %v3658 = vunpack.c.l.b16 %v3469
    %v3659 = vunpack.c.h.b16 %v3469
    %v3660 = vunpack.c.l.b16 %v3470
    %v3661 = vunpack.c.h.b16 %v3470
    %v3662 = vunpack.c.l.b16 %v3471
    %v3663 = vunpack.c.h.b16 %v3471
    %v3664 = vpack.c.b16 %v3538, %v3536
    %v3665 = vpack.c.b16 %v3539, %v3537
    %v3666 = vpack.c.b16 %v3542, %v3540
    %v3667 = vpack.c.b16 %v3543, %v3541
    %v3668 = vpack.c.b16 %v3546, %v3544
    %v3669 = vpack.c.b16 %v3547, %v3545
    %v3670 = vpack.c.b16 %v3550, %v3548
    %v3671 = vpack.c.b16 %v3551, %v3549
    %v3672 = vpack.c.b16 %v3554, %v3552
    %v3673 = vpack.c.b16 %v3555, %v3553
    %v3674 = vpack.c.b16 %v3558, %v3556
    %v3675 = vpack.c.b16 %v3559, %v3557
    %v3676 = vpack.c.b16 %v3562, %v3560
    %v3677 = vpack.c.b16 %v3563, %v3561
    %v3678 = vpack.c.b16 %v3566, %v3564
    %v3679 = vpack.c.b16 %v3567, %v3565
    %v3680 = vpack.c.b16 %v3570, %v3568
    %v3681 = vpack.c.b16 %v3571, %v3569
    %v3682 = vpack.c.b16 %v3574, %v3572
    %v3683 = vpack.c.b16 %v3575, %v3573
    %v3684 = vpack.c.b16 %v3578, %v3576
    %v3685 = vpack.c.b16 %v3579, %v3577
    %v3686 = vpack.c.b16 %v3582, %v3580
    %v3687 = vpack.c.b16 %v3583, %v3581
    %v3688 = vpack.c.b16 %v3586, %v3584
    %v3689 = vpack.c.b16 %v3587, %v3585
    %v3690 = vpack.c.b16 %v3590, %v3588
    %v3691 = vpack.c.b16 %v3591, %v3589
    %v3692 = vpack.c.b16 %v3594, %v3592
    %v3693 = vpack.c.b16 %v3595, %v3593
    %v3694 = vpack.c.b16 %v3598, %v3596
    %v3695 = vpack.c.b16 %v3599, %v3597
    %v3696 = vpack.c.b16 %v3602, %v3600
    %v3697 = vpack.c.b16 %v3603, %v3601
    %v3698 = vpack.c.b16 %v3606, %v3604
    %v3699 = vpack.c.b16 %v3607, %v3605
    %v3700 = vpack.c.b16 %v3610, %v3608
    %v3701 = vpack.c.b16 %v3611, %v3609
    %v3702 = vpack.c.b16 %v3614, %v3612
    %v3703 = vpack.c.b16 %v3615, %v3613
    %v3704 = vpack.c.b16 %v3618, %v3616
    %v3705 = vpack.c.b16 %v3619, %v3617
    %v3706 = vpack.c.b16 %v3622, %v3620
    %v3707 = vpack.c.b16 %v3623, %v3621
    %v3708 = vpack.c.b16 %v3626, %v3624
    %v3709 = vpack.c.b16 %v3627, %v3625
    %v3710 = vpack.c.b16 %v3630, %v3628
    %v3711 = vpack.c.b16 %v3631, %v3629
    %v3712 = vpack.c.b16 %v3634, %v3632
    %v3713 = vpack.c.b16 %v3635, %v3633
    %v3714 = vpack.c.b16 %v3638, %v3636
    %v3715 = vpack.c.b16 %v3639, %v3637
    %v3716 = vpack.c.b16 %v3642, %v3640
    %v3717 = vpack.c.b16 %v3643, %v3641
    %v3718 = vpack.c.b16 %v3646, %v3644
    %v3719 = vpack.c.b16 %v3647, %v3645
    %v3720 = vpack.c.b16 %v3650, %v3648
    %v3721 = vpack.c.b16 %v3651, %v3649
    %v3722 = vpack.c.b16 %v3654, %v3652
    %v3723 = vpack.c.b16 %v3655, %v3653
    %v3724 = vpack.c.b16 %v3658, %v3656
    %v3725 = vpack.c.b16 %v3659, %v3657
    %v3726 = vpack.c.b16 %v3662, %v3660
    %v3727 = vpack.c.b16 %v3663, %v3661
    %3792 = vmatprep.subr.bf16.mxu0 %v3665
    %3793 = vmatpush1.bf16.msra.mxu0 %v3664
    %3794 = vmatprep.subr.bf16.mxu0 %v3667
    %3795 = vmatpush1.bf16.msra.mxu0 %v3666
    %3796 = vmatprep.subr.bf16.mxu0 %v3669
    %3797 = vmatpush1.bf16.msra.mxu0 %v3668
    %3798 = vmatprep.subr.bf16.mxu0 %v3671
    %3799 = vmatpush1.bf16.msra.mxu0 %v3670
    %3800 = vmatprep.subr.bf16.mxu0 %v3673
    %3801 = vmatpush1.bf16.msra.mxu0 %v3672
    %3802 = vmatprep.subr.bf16.mxu0 %v3675
    %3803 = vmatpush1.bf16.msra.mxu0 %v3674
    %3804 = vmatprep.subr.bf16.mxu0 %v3677
    %3805 = vmatpush1.bf16.msra.mxu0 %v3676
    %3806 = vmatprep.subr.bf16.mxu0 %v3679
    %3807 = vmatpush1.bf16.msra.mxu0 %v3678
    %3808 = vmatprep.subr.bf16.mxu0 %v3681
    %3809 = vmatpush1.bf16.msra.mxu0 %v3680
    %3810 = vmatprep.subr.bf16.mxu0 %v3683
    %3811 = vmatpush1.bf16.msra.mxu0 %v3682
    %3812 = vmatprep.subr.bf16.mxu0 %v3685
    %3813 = vmatpush1.bf16.msra.mxu0 %v3684
    %3814 = vmatprep.subr.bf16.mxu0 %v3687
    %3815 = vmatpush1.bf16.msra.mxu0 %v3686
    %3816 = vmatprep.subr.bf16.mxu0 %v3689
    %3817 = vmatpush1.bf16.msra.mxu0 %v3688
    %3818 = vmatprep.subr.bf16.mxu0 %v3691
    %3819 = vmatpush1.bf16.msra.mxu0 %v3690
    %3820 = vmatprep.subr.bf16.mxu0 %v3693
    %3821 = vmatpush1.bf16.msra.mxu0 %v3692
    %3822 = vmatprep.subr.bf16.mxu0 %v3695
    %3823 = vmatpush1.bf16.msra.mxu0 %v3694
    %3824 = vmatprep.mubr.bf16.mxu0 %v3405
    %3825 = vmatmul.mubr.bf16.gmra.mrb[0].mxu0 %v3404
    %v3826 = vpop.f32.mrb[0].mxu0
    %v3827 = vadd.f32 0.0, %v3826
    %v3828 = vpop.f32.mrb[0].mxu0
    %v3829 = vadd.f32 0.0, %v3828
    %v3830 = vpop.f32.mrb[0].mxu0
    %v3831 = vadd.f32 0.0, %v3830
    %v3832 = vpop.f32.mrb[0].mxu0
    %v3833 = vadd.f32 0.0, %v3832
    %3834 = vdwg.mxu0
    %3835 = vmatprep.subr.bf16.mxu0 %v3697
    %3836 = vmatpush1.bf16.msra.mxu0 %v3696
    %3837 = vmatprep.subr.bf16.mxu0 %v3699
    %3838 = vmatpush1.bf16.msra.mxu0 %v3698
    %3839 = vmatprep.subr.bf16.mxu0 %v3701
    %3840 = vmatpush1.bf16.msra.mxu0 %v3700
    %3841 = vmatprep.subr.bf16.mxu0 %v3703
    %3842 = vmatpush1.bf16.msra.mxu0 %v3702
    %3843 = vmatprep.subr.bf16.mxu0 %v3705
    %3844 = vmatpush1.bf16.msra.mxu0 %v3704
    %3845 = vmatprep.subr.bf16.mxu0 %v3707
    %3846 = vmatpush1.bf16.msra.mxu0 %v3706
    %3847 = vmatprep.subr.bf16.mxu0 %v3709
    %3848 = vmatpush1.bf16.msra.mxu0 %v3708
    %3849 = vmatprep.subr.bf16.mxu0 %v3711
    %3850 = vmatpush1.bf16.msra.mxu0 %v3710
    %3851 = vmatprep.subr.bf16.mxu0 %v3713
    %3852 = vmatpush1.bf16.msra.mxu0 %v3712
    %3853 = vmatprep.subr.bf16.mxu0 %v3715
    %3854 = vmatpush1.bf16.msra.mxu0 %v3714
    %3855 = vmatprep.subr.bf16.mxu0 %v3717
    %3856 = vmatpush1.bf16.msra.mxu0 %v3716
    %3857 = vmatprep.subr.bf16.mxu0 %v3719
    %3858 = vmatpush1.bf16.msra.mxu0 %v3718
    %3859 = vmatprep.subr.bf16.mxu0 %v3721
    %3860 = vmatpush1.bf16.msra.mxu0 %v3720
    %3861 = vmatprep.subr.bf16.mxu0 %v3723
    %3862 = vmatpush1.bf16.msra.mxu0 %v3722
    %3863 = vmatprep.subr.bf16.mxu0 %v3725
    %3864 = vmatpush1.bf16.msra.mxu0 %v3724
    %3865 = vmatprep.subr.bf16.mxu0 %v3727
    %3866 = vmatpush1.bf16.msra.mxu0 %v3726
    %3867 = vmatprep.mubr.bf16.mxu0 %v3407
    %3868 = vmatmul.mubr.bf16.gmra.mrb[0].mxu0 %v3406
    %v3869 = vpop.f32.mrb[0].mxu0
    %v3870 = vadd.f32 %v3827, %v3869
    %v3871 = vpop.f32.mrb[0].mxu0
    %v3872 = vadd.f32 %v3829, %v3871
    %v3873 = vpop.f32.mrb[0].mxu0
    %v3874 = vadd.f32 %v3831, %v3873
    %v3875 = vpop.f32.mrb[0].mxu0
    %v3876 = vadd.f32 %v3833, %v3875
    %3877 = vdwg.mxu0
    %v3882 = vcombine.low %v3870, %v3872
    %v3883 = vcombine.high %v3870, %v3872
    %v3885 = vunpack.c.l.s4 1983009808
    %v3886 = vunpack.c.0.s8 %v3885
    %v3887 = vlaneseq
    %v3888 = vshrl.u32 %v3887, 7
    %v3889 = vsub.s32 %v3886, %v3888
    %v3890 = vrot.slane %v3882, %v3889
    %v3892 = vunpack.c.l.s4 1983009808
    %v3893 = vunpack.c.0.s8 %v3892
    %v3894 = vlaneseq
    %v3895 = vshrl.u32 %v3894, 7
    %v3896 = vsub.s32 %v3893, %v3895
    %v3897 = vrot.slane %v3883, %v3896
    %v3898 = vcombine.high %v3890, %v3890
    %v3899 = vcombine.high %v3897, %v3897
    %v3900 = vcombine.low %v3874, %v3876
    %v3901 = vcombine.high %v3874, %v3876
    %v3903 = vunpack.c.l.s4 1983009808
    %v3904 = vunpack.c.0.s8 %v3903
    %v3905 = vlaneseq
    %v3906 = vshrl.u32 %v3905, 7
    %v3907 = vsub.s32 %v3904, %v3906
    %v3908 = vrot.slane %v3900, %v3907
    %v3910 = vunpack.c.l.s4 1983009808
    %v3911 = vunpack.c.0.s8 %v3910
    %v3912 = vlaneseq
    %v3913 = vshrl.u32 %v3912, 7
    %v3914 = vsub.s32 %v3911, %v3913
    %v3915 = vrot.slane %v3901, %v3914
    %v3916 = vcombine.high %v3908, %v3908
    %v3917 = vcombine.high %v3915, %v3915
    %v3919 = vunpack.c.l.s4 1983009808
    %v3920 = vunpack.c.0.s8 %v3919
    %v3921 = vlaneseq
    %v3922 = vshrl.u32 %v3921, 7
    %v3923 = vsub.s32 %v3920, %v3922
    %v3924 = vrot.slane %v3890, %v3923
    %v3925 = vcombine.high %v3924, %v3924
    %v3927 = vunpack.c.l.s4 1983009808
    %v3928 = vunpack.c.0.s8 %v3927
    %v3929 = vlaneseq
    %v3930 = vshrl.u32 %v3929, 7
    %v3931 = vsub.s32 %v3928, %v3930
    %v3932 = vrot.slane %v3898, %v3931
    %v3933 = vcombine.high %v3932, %v3932
    %v3935 = vunpack.c.l.s4 1983009808
    %v3936 = vunpack.c.0.s8 %v3935
    %v3937 = vlaneseq
    %v3938 = vshrl.u32 %v3937, 7
    %v3939 = vsub.s32 %v3936, %v3938
    %v3940 = vrot.slane %v3897, %v3939
    %v3941 = vcombine.high %v3940, %v3940
    %v3943 = vunpack.c.l.s4 1983009808
    %v3944 = vunpack.c.0.s8 %v3943
    %v3945 = vlaneseq
    %v3946 = vshrl.u32 %v3945, 7
    %v3947 = vsub.s32 %v3944, %v3946
    %v3948 = vrot.slane %v3899, %v3947
    %v3949 = vcombine.high %v3948, %v3948
    %v3951 = vunpack.c.l.s4 1983009808
    %v3952 = vunpack.c.0.s8 %v3951
    %v3953 = vlaneseq
    %v3954 = vshrl.u32 %v3953, 7
    %v3955 = vsub.s32 %v3952, %v3954
    %v3956 = vrot.slane %v3908, %v3955
    %v3957 = vcombine.high %v3956, %v3956
    %v3959 = vunpack.c.l.s4 1983009808
    %v3960 = vunpack.c.0.s8 %v3959
    %v3961 = vlaneseq
    %v3962 = vshrl.u32 %v3961, 7
    %v3963 = vsub.s32 %v3960, %v3962
    %v3964 = vrot.slane %v3916, %v3963
    %v3965 = vcombine.high %v3964, %v3964
    %v3967 = vunpack.c.l.s4 1983009808
    %v3968 = vunpack.c.0.s8 %v3967
    %v3969 = vlaneseq
    %v3970 = vshrl.u32 %v3969, 7
    %v3971 = vsub.s32 %v3968, %v3970
    %v3972 = vrot.slane %v3915, %v3971
    %v3973 = vcombine.high %v3972, %v3972
    %v3975 = vunpack.c.l.s4 1983009808
    %v3976 = vunpack.c.0.s8 %v3975
    %v3977 = vlaneseq
    %v3978 = vshrl.u32 %v3977, 7
    %v3979 = vsub.s32 %v3976, %v3978
    %v3980 = vrot.slane %v3917, %v3979
    %v3981 = vcombine.high %v3980, %v3980
    %v3998 = vsel %vm1307, %v3924, 0.0
    %v3999 = vrot.slane %v3998, 4
    %v4000 = vadd.f32 %v3998, %v3999
    %v4001 = vrot.slane %v4000, 2
    %v4002 = vadd.f32 %v4000, %v4001
    %v4003 = vrot.slane %v4002, 1
    %v4004 = vadd.f32 %v4002, %v4003
    %v4005 = vsel %vm1307, %v3925, 0.0
    %v4006 = vrot.slane %v4005, 4
    %v4007 = vadd.f32 %v4005, %v4006
    %v4008 = vrot.slane %v4007, 2
    %v4009 = vadd.f32 %v4007, %v4008
    %v4010 = vrot.slane %v4009, 1
    %v4011 = vadd.f32 %v4009, %v4010
    %v4012 = vsel %vm1307, %v3932, 0.0
    %v4013 = vrot.slane %v4012, 4
    %v4014 = vadd.f32 %v4012, %v4013
    %v4015 = vrot.slane %v4014, 2
    %v4016 = vadd.f32 %v4014, %v4015
    %v4017 = vrot.slane %v4016, 1
    %v4018 = vadd.f32 %v4016, %v4017
    %v4019 = vsel %vm1307, %v3933, 0.0
    %v4020 = vrot.slane %v4019, 4
    %v4021 = vadd.f32 %v4019, %v4020
    %v4022 = vrot.slane %v4021, 2
    %v4023 = vadd.f32 %v4021, %v4022
    %v4024 = vrot.slane %v4023, 1
    %v4025 = vadd.f32 %v4023, %v4024
    %v4026 = vsel %vm1307, %v3940, 0.0
    %v4027 = vrot.slane %v4026, 4
    %v4028 = vadd.f32 %v4026, %v4027
    %v4029 = vrot.slane %v4028, 2
    %v4030 = vadd.f32 %v4028, %v4029
    %v4031 = vrot.slane %v4030, 1
    %v4032 = vadd.f32 %v4030, %v4031
    %v4033 = vsel %vm1307, %v3941, 0.0
    %v4034 = vrot.slane %v4033, 4
    %v4035 = vadd.f32 %v4033, %v4034
    %v4036 = vrot.slane %v4035, 2
    %v4037 = vadd.f32 %v4035, %v4036
    %v4038 = vrot.slane %v4037, 1
    %v4039 = vadd.f32 %v4037, %v4038
    %v4040 = vsel %vm1307, %v3948, 0.0
    %v4041 = vrot.slane %v4040, 4
    %v4042 = vadd.f32 %v4040, %v4041
    %v4043 = vrot.slane %v4042, 2
    %v4044 = vadd.f32 %v4042, %v4043
    %v4045 = vrot.slane %v4044, 1
    %v4046 = vadd.f32 %v4044, %v4045
    %v4047 = vsel %vm1307, %v3949, 0.0
    %v4048 = vrot.slane %v4047, 4
    %v4049 = vadd.f32 %v4047, %v4048
    %v4050 = vrot.slane %v4049, 2
    %v4051 = vadd.f32 %v4049, %v4050
    %v4052 = vrot.slane %v4051, 1
    %v4053 = vadd.f32 %v4051, %v4052
    %v4054 = vsel %vm1307, %v3956, 0.0
    %v4055 = vrot.slane %v4054, 4
    %v4056 = vadd.f32 %v4054, %v4055
    %v4057 = vrot.slane %v4056, 2
    %v4058 = vadd.f32 %v4056, %v4057
    %v4059 = vrot.slane %v4058, 1
    %v4060 = vadd.f32 %v4058, %v4059
    %v4061 = vsel %vm1307, %v3957, 0.0
    %v4062 = vrot.slane %v4061, 4
    %v4063 = vadd.f32 %v4061, %v4062
    %v4064 = vrot.slane %v4063, 2
    %v4065 = vadd.f32 %v4063, %v4064
    %v4066 = vrot.slane %v4065, 1
    %v4067 = vadd.f32 %v4065, %v4066
    %v4068 = vsel %vm1307, %v3964, 0.0
    %v4069 = vrot.slane %v4068, 4
    %v4070 = vadd.f32 %v4068, %v4069
    %v4071 = vrot.slane %v4070, 2
    %v4072 = vadd.f32 %v4070, %v4071
    %v4073 = vrot.slane %v4072, 1
    %v4074 = vadd.f32 %v4072, %v4073
    %v4075 = vsel %vm1307, %v3965, 0.0
    %v4076 = vrot.slane %v4075, 4
    %v4077 = vadd.f32 %v4075, %v4076
    %v4078 = vrot.slane %v4077, 2
    %v4079 = vadd.f32 %v4077, %v4078
    %v4080 = vrot.slane %v4079, 1
    %v4081 = vadd.f32 %v4079, %v4080
    %v4082 = vsel %vm1307, %v3972, 0.0
    %v4083 = vrot.slane %v4082, 4
    %v4084 = vadd.f32 %v4082, %v4083
    %v4085 = vrot.slane %v4084, 2
    %v4086 = vadd.f32 %v4084, %v4085
    %v4087 = vrot.slane %v4086, 1
    %v4088 = vadd.f32 %v4086, %v4087
    %v4089 = vsel %vm1307, %v3973, 0.0
    %v4090 = vrot.slane %v4089, 4
    %v4091 = vadd.f32 %v4089, %v4090
    %v4092 = vrot.slane %v4091, 2
    %v4093 = vadd.f32 %v4091, %v4092
    %v4094 = vrot.slane %v4093, 1
    %v4095 = vadd.f32 %v4093, %v4094
    %v4096 = vsel %vm1307, %v3980, 0.0
    %v4097 = vrot.slane %v4096, 4
    %v4098 = vadd.f32 %v4096, %v4097
    %v4099 = vrot.slane %v4098, 2
    %v4100 = vadd.f32 %v4098, %v4099
    %v4101 = vrot.slane %v4100, 1
    %v4102 = vadd.f32 %v4100, %v4101
    %v4103 = vsel %vm1307, %v3981, 0.0
    %v4104 = vrot.slane %v4103, 4
    %v4105 = vadd.f32 %v4103, %v4104
    %v4106 = vrot.slane %v4105, 2
    %v4107 = vadd.f32 %v4105, %v4106
    %v4108 = vrot.slane %v4107, 1
    %v4109 = vadd.f32 %v4107, %v4108
    %v4110 = vpack.c.bf16 %v4004, %v4004
    %v4111 = vpack.c.bf16 %v4011, %v4011
    %v4112 = vpack.c.bf16 %v4018, %v4018
    %v4113 = vpack.c.bf16 %v4025, %v4025
    %v4114 = vpack.c.bf16 %v4032, %v4032
    %v4115 = vpack.c.bf16 %v4039, %v4039
    %v4116 = vpack.c.bf16 %v4046, %v4046
    %v4117 = vpack.c.bf16 %v4053, %v4053
    %v4118 = vpack.c.bf16 %v4060, %v4060
    %v4119 = vpack.c.bf16 %v4067, %v4067
    %v4120 = vpack.c.bf16 %v4074, %v4074
    %v4121 = vpack.c.bf16 %v4081, %v4081
    %v4122 = vpack.c.bf16 %v4088, %v4088
    %v4123 = vpack.c.bf16 %v4095, %v4095
    %v4124 = vpack.c.bf16 %v4102, %v4102
    %v4125 = vpack.c.bf16 %v4109, %v4109
    %v4142 = vunpack.c.l.b16 %v4110
    %v4143 = vunpack.c.l.b16 %v4111
    %v4144 = vunpack.c.l.b16 %v4112
    %v4145 = vunpack.c.l.b16 %v4113
    %v4146 = vunpack.c.l.b16 %v4114
    %v4147 = vunpack.c.l.b16 %v4115
    %v4148 = vunpack.c.l.b16 %v4116
    %v4149 = vunpack.c.l.b16 %v4117
    %v4150 = vunpack.c.l.b16 %v4118
    %v4151 = vunpack.c.l.b16 %v4119
    %v4152 = vunpack.c.l.b16 %v4120
    %v4153 = vunpack.c.l.b16 %v4121
    %v4154 = vunpack.c.l.b16 %v4122
    %v4155 = vunpack.c.l.b16 %v4123
    %v4156 = vunpack.c.l.b16 %v4124
    %v4157 = vunpack.c.l.b16 %v4125
    %v4158 = vsel %vm1757, %v4144, %v4142
    %v4159 = vsel %vm1759, %v4146, %v4158
    %v4160 = vsel %vm1761, %v4148, %v4159
    %v4161 = vsel %vm1757, %v4145, %v4143
    %v4162 = vsel %vm1759, %v4147, %v4161
    %v4163 = vsel %vm1761, %v4149, %v4162
    %v4164 = vsel %vm1757, %v4152, %v4150
    %v4165 = vsel %vm1759, %v4154, %v4164
    %v4166 = vsel %vm1761, %v4156, %v4165
    %v4167 = vsel %vm1757, %v4153, %v4151
    %v4168 = vsel %vm1759, %v4155, %v4167
    %v4169 = vsel %vm1761, %v4157, %v4168
    %v4170 = vpack.c.b16 %v4160, %v4160
    %v4171 = vpack.c.b16 %v4163, %v4163
    %v4172 = vpack.c.b16 %v4166, %v4166
    %v4173 = vpack.c.b16 %v4169, %v4169
    %v4176 = vunpack.c.l.s4 1934713408
    %v4177 = vunpack.c.0.s8 %v4176
    %v4178 = vlaneseq
    %v4179 = vshrl.u32 %v4178, 7
    %v4180 = vsub.s32 %v4177, %v4179
    %v4181 = vrot.slane %v4170, %v4180
    %v4182 = vcombine.high %v4181, 0
    %v4185 = vunpack.c.l.s4 1934713408
    %v4186 = vunpack.c.0.s8 %v4185
    %v4187 = vlaneseq
    %v4188 = vshrl.u32 %v4187, 7
    %v4189 = vsub.s32 %v4186, %v4188
    %v4190 = vrot.slane %v4172, %v4189
    %v4191 = vcombine.high %v4190, 0
    %v4194 = vunpack.c.l.s4 1934713408
    %v4195 = vunpack.c.0.s8 %v4194
    %v4196 = vlaneseq
    %v4197 = vshrl.u32 %v4196, 7
    %v4198 = vsub.s32 %v4195, %v4197
    %v4199 = vrot.slane %v4171, %v4198
    %v4200 = vcombine.high %v4199, 0
    %v4203 = vunpack.c.l.s4 1934713408
    %v4204 = vunpack.c.0.s8 %v4203
    %v4205 = vlaneseq
    %v4206 = vshrl.u32 %v4205, 7
    %v4207 = vsub.s32 %v4204, %v4206
    %v4208 = vrot.slane %v4173, %v4207
    %v4209 = vcombine.high %v4208, 0
    %v4212 = vpack.i.b16 %v4190, %v4181
    %v4214 = vshrl.u32 %v4181, 16
    %v4215 = vshrl.u32 %v4190, 16
    %v4216 = vpack.i.b16 %v4215, %v4214
    %v4220 = vpack.i.b16 %v4191, %v4182
    %v4222 = vshrl.u32 %v4182, 16
    %v4223 = vshrl.u32 %v4191, 16
    %v4224 = vpack.i.b16 %v4223, %v4222
    %v4228 = vpack.i.b16 %v4208, %v4199
    %v4230 = vshrl.u32 %v4199, 16
    %v4231 = vshrl.u32 %v4208, 16
    %v4232 = vpack.i.b16 %v4231, %v4230
    %v4236 = vpack.i.b16 %v4209, %v4200
    %v4238 = vshrl.u32 %v4200, 16
    %v4239 = vshrl.u32 %v4209, 16
    %v4240 = vpack.i.b16 %v4239, %v4238
    %v4242 = vld [vmem:[#allocation7] sm:$0xf]
    %v4243 = vld [vmem:[#allocation7 + $0x4] sm:$0xf]
    %v4244 = vld [vmem:[#allocation7 + $0x8] sm:$0xf]
    %v4245 = vld [vmem:[#allocation7 + $0xc] sm:$0xf]
    %v4246 = vld [vmem:[#allocation7 + $0x10] sm:$0xf]
    %v4247 = vld [vmem:[#allocation7 + $0x14] sm:$0xf]
    %v4248 = vld [vmem:[#allocation7 + $0x18] sm:$0xf]
    %v4249 = vld [vmem:[#allocation7 + $0x1c] sm:$0xf]
    %v4250 = vld [vmem:[#allocation7 + $0x20] sm:$0xf]
    %v4251 = vld [vmem:[#allocation7 + $0x24] sm:$0xf]
    %v4252 = vld [vmem:[#allocation7 + $0x28] sm:$0xf]
    %v4253 = vld [vmem:[#allocation7 + $0x2c] sm:$0xf]
    %v4254 = vld [vmem:[#allocation7 + $0x30] sm:$0xf]
    %v4255 = vld [vmem:[#allocation7 + $0x34] sm:$0xf]
    %v4256 = vld [vmem:[#allocation7 + $0x38] sm:$0xf]
    %v4257 = vld [vmem:[#allocation7 + $0x3c] sm:$0xf]
    %v4258 = vld [vmem:[#allocation7 + $0x40] sm:$0xf]
    %v4259 = vld [vmem:[#allocation7 + $0x44] sm:$0xf]
    %v4260 = vld [vmem:[#allocation7 + $0x48] sm:$0xf]
    %v4261 = vld [vmem:[#allocation7 + $0x4c] sm:$0xf]
    %v4262 = vld [vmem:[#allocation7 + $0x50] sm:$0xf]
    %v4263 = vld [vmem:[#allocation7 + $0x54] sm:$0xf]
    %v4264 = vld [vmem:[#allocation7 + $0x58] sm:$0xf]
    %v4265 = vld [vmem:[#allocation7 + $0x5c] sm:$0xf]
    %v4266 = vld [vmem:[#allocation7 + $0x60] sm:$0xf]
    %v4267 = vld [vmem:[#allocation7 + $0x64] sm:$0xf]
    %v4268 = vld [vmem:[#allocation7 + $0x68] sm:$0xf]
    %v4269 = vld [vmem:[#allocation7 + $0x6c] sm:$0xf]
    %v4270 = vld [vmem:[#allocation7 + $0x70] sm:$0xf]
    %v4271 = vld [vmem:[#allocation7 + $0x74] sm:$0xf]
    %v4272 = vld [vmem:[#allocation7 + $0x78] sm:$0xf]
    %v4273 = vld [vmem:[#allocation7 + $0x7c] sm:$0xf]
    %v4274 = vld [vmem:[#allocation7 + $0x80] sm:$0xf]
    %v4275 = vld [vmem:[#allocation7 + $0x84] sm:$0xf]
    %v4276 = vld [vmem:[#allocation7 + $0x88] sm:$0xf]
    %v4277 = vld [vmem:[#allocation7 + $0x8c] sm:$0xf]
    %v4278 = vld [vmem:[#allocation7 + $0x90] sm:$0xf]
    %v4279 = vld [vmem:[#allocation7 + $0x94] sm:$0xf]
    %v4280 = vld [vmem:[#allocation7 + $0x98] sm:$0xf]
    %v4281 = vld [vmem:[#allocation7 + $0x9c] sm:$0xf]
    %v4282 = vld [vmem:[#allocation7 + $0xa0] sm:$0xf]
    %v4283 = vld [vmem:[#allocation7 + $0xa4] sm:$0xf]
    %v4284 = vld [vmem:[#allocation7 + $0xa8] sm:$0xf]
    %v4285 = vld [vmem:[#allocation7 + $0xac] sm:$0xf]
    %v4286 = vld [vmem:[#allocation7 + $0xb0] sm:$0xf]
    %v4287 = vld [vmem:[#allocation7 + $0xb4] sm:$0xf]
    %v4288 = vld [vmem:[#allocation7 + $0xb8] sm:$0xf]
    %v4289 = vld [vmem:[#allocation7 + $0xbc] sm:$0xf]
    %v4290 = vld [vmem:[#allocation7 + $0xc0] sm:$0xf]
    %v4291 = vld [vmem:[#allocation7 + $0xc4] sm:$0xf]
    %v4292 = vld [vmem:[#allocation7 + $0xc8] sm:$0xf]
    %v4293 = vld [vmem:[#allocation7 + $0xcc] sm:$0xf]
    %v4294 = vld [vmem:[#allocation7 + $0xd0] sm:$0xf]
    %v4295 = vld [vmem:[#allocation7 + $0xd4] sm:$0xf]
    %v4296 = vld [vmem:[#allocation7 + $0xd8] sm:$0xf]
    %v4297 = vld [vmem:[#allocation7 + $0xdc] sm:$0xf]
    %v4298 = vld [vmem:[#allocation7 + $0xe0] sm:$0xf]
    %v4299 = vld [vmem:[#allocation7 + $0xe4] sm:$0xf]
    %v4300 = vld [vmem:[#allocation7 + $0xe8] sm:$0xf]
    %v4301 = vld [vmem:[#allocation7 + $0xec] sm:$0xf]
    %v4302 = vld [vmem:[#allocation7 + $0xf0] sm:$0xf]
    %v4303 = vld [vmem:[#allocation7 + $0xf4] sm:$0xf]
    %v4304 = vld [vmem:[#allocation7 + $0xf8] sm:$0xf]
    %v4305 = vld [vmem:[#allocation7 + $0xfc] sm:$0xf]
    %v4306 = vld [vmem:[#allocation7 + $0x100] sm:$0xf]
    %v4307 = vld [vmem:[#allocation7 + $0x104] sm:$0xf]
    %v4308 = vld [vmem:[#allocation7 + $0x108] sm:$0xf]
    %v4309 = vld [vmem:[#allocation7 + $0x10c] sm:$0xf]
    %v4310 = vld [vmem:[#allocation7 + $0x110] sm:$0xf]
    %v4311 = vld [vmem:[#allocation7 + $0x114] sm:$0xf]
    %v4312 = vld [vmem:[#allocation7 + $0x118] sm:$0xf]
    %v4313 = vld [vmem:[#allocation7 + $0x11c] sm:$0xf]
    %v4314 = vld [vmem:[#allocation7 + $0x120] sm:$0xf]
    %v4315 = vld [vmem:[#allocation7 + $0x124] sm:$0xf]
    %v4316 = vld [vmem:[#allocation7 + $0x128] sm:$0xf]
    %v4317 = vld [vmem:[#allocation7 + $0x12c] sm:$0xf]
    %v4318 = vld [vmem:[#allocation7 + $0x130] sm:$0xf]
    %v4319 = vld [vmem:[#allocation7 + $0x134] sm:$0xf]
    %v4320 = vld [vmem:[#allocation7 + $0x138] sm:$0xf]
    %v4321 = vld [vmem:[#allocation7 + $0x13c] sm:$0xf]
    %v4322 = vld [vmem:[#allocation7 + $0x140] sm:$0xf]
    %v4323 = vld [vmem:[#allocation7 + $0x144] sm:$0xf]
    %v4324 = vld [vmem:[#allocation7 + $0x148] sm:$0xf]
    %v4325 = vld [vmem:[#allocation7 + $0x14c] sm:$0xf]
    %v4326 = vld [vmem:[#allocation7 + $0x150] sm:$0xf]
    %v4327 = vld [vmem:[#allocation7 + $0x154] sm:$0xf]
    %v4328 = vld [vmem:[#allocation7 + $0x158] sm:$0xf]
    %v4329 = vld [vmem:[#allocation7 + $0x15c] sm:$0xf]
    %v4330 = vld [vmem:[#allocation7 + $0x160] sm:$0xf]
    %v4331 = vld [vmem:[#allocation7 + $0x164] sm:$0xf]
    %v4332 = vld [vmem:[#allocation7 + $0x168] sm:$0xf]
    %v4333 = vld [vmem:[#allocation7 + $0x16c] sm:$0xf]
    %v4334 = vld [vmem:[#allocation7 + $0x170] sm:$0xf]
    %v4335 = vld [vmem:[#allocation7 + $0x174] sm:$0xf]
    %v4336 = vld [vmem:[#allocation7 + $0x178] sm:$0xf]
    %v4337 = vld [vmem:[#allocation7 + $0x17c] sm:$0xf]
    %v4338 = vld [vmem:[#allocation7 + $0x180] sm:$0xf]
    %v4339 = vld [vmem:[#allocation7 + $0x184] sm:$0xf]
    %v4340 = vld [vmem:[#allocation7 + $0x188] sm:$0xf]
    %v4341 = vld [vmem:[#allocation7 + $0x18c] sm:$0xf]
    %v4342 = vld [vmem:[#allocation7 + $0x190] sm:$0xf]
    %v4343 = vld [vmem:[#allocation7 + $0x194] sm:$0xf]
    %v4344 = vld [vmem:[#allocation7 + $0x198] sm:$0xf]
    %v4345 = vld [vmem:[#allocation7 + $0x19c] sm:$0xf]
    %v4346 = vld [vmem:[#allocation7 + $0x1a0] sm:$0xf]
    %v4347 = vld [vmem:[#allocation7 + $0x1a4] sm:$0xf]
    %v4348 = vld [vmem:[#allocation7 + $0x1a8] sm:$0xf]
    %v4349 = vld [vmem:[#allocation7 + $0x1ac] sm:$0xf]
    %v4350 = vld [vmem:[#allocation7 + $0x1b0] sm:$0xf]
    %v4351 = vld [vmem:[#allocation7 + $0x1b4] sm:$0xf]
    %v4352 = vld [vmem:[#allocation7 + $0x1b8] sm:$0xf]
    %v4353 = vld [vmem:[#allocation7 + $0x1bc] sm:$0xf]
    %v4354 = vld [vmem:[#allocation7 + $0x1c0] sm:$0xf]
    %v4355 = vld [vmem:[#allocation7 + $0x1c4] sm:$0xf]
    %v4356 = vld [vmem:[#allocation7 + $0x1c8] sm:$0xf]
    %v4357 = vld [vmem:[#allocation7 + $0x1cc] sm:$0xf]
    %v4358 = vld [vmem:[#allocation7 + $0x1d0] sm:$0xf]
    %v4359 = vld [vmem:[#allocation7 + $0x1d4] sm:$0xf]
    %v4360 = vld [vmem:[#allocation7 + $0x1d8] sm:$0xf]
    %v4361 = vld [vmem:[#allocation7 + $0x1dc] sm:$0xf]
    %v4362 = vld [vmem:[#allocation7 + $0x1e0] sm:$0xf]
    %v4363 = vld [vmem:[#allocation7 + $0x1e4] sm:$0xf]
    %v4364 = vld [vmem:[#allocation7 + $0x1e8] sm:$0xf]
    %v4365 = vld [vmem:[#allocation7 + $0x1ec] sm:$0xf]
    %v4366 = vld [vmem:[#allocation7 + $0x1f0] sm:$0xf]
    %v4367 = vld [vmem:[#allocation7 + $0x1f4] sm:$0xf]
    %v4368 = vld [vmem:[#allocation7 + $0x1f8] sm:$0xf]
    %v4369 = vld [vmem:[#allocation7 + $0x1fc] sm:$0xf]
    %v4498 = vunpack.c.l.b16 %v4242
    %v4499 = vunpack.c.l.b16 %v4243
    %v4500 = vunpack.c.l.b16 %v4244
    %v4501 = vunpack.c.l.b16 %v4245
    %v4502 = vunpack.c.l.b16 %v4246
    %v4503 = vunpack.c.l.b16 %v4247
    %v4504 = vunpack.c.l.b16 %v4248
    %v4505 = vunpack.c.l.b16 %v4249
    %v4506 = vunpack.c.l.b16 %v4250
    %v4507 = vunpack.c.l.b16 %v4251
    %v4508 = vunpack.c.l.b16 %v4252
    %v4509 = vunpack.c.l.b16 %v4253
    %v4510 = vunpack.c.l.b16 %v4254
    %v4511 = vunpack.c.l.b16 %v4255
    %v4512 = vunpack.c.l.b16 %v4256
    %v4513 = vunpack.c.l.b16 %v4257
    %v4514 = vunpack.c.l.b16 %v4258
    %v4515 = vunpack.c.l.b16 %v4259
    %v4516 = vunpack.c.l.b16 %v4260
    %v4517 = vunpack.c.l.b16 %v4261
    %v4518 = vunpack.c.l.b16 %v4262
    %v4519 = vunpack.c.l.b16 %v4263
    %v4520 = vunpack.c.l.b16 %v4264
    %v4521 = vunpack.c.l.b16 %v4265
    %v4522 = vunpack.c.l.b16 %v4266
    %v4523 = vunpack.c.l.b16 %v4267
    %v4524 = vunpack.c.l.b16 %v4268
    %v4525 = vunpack.c.l.b16 %v4269
    %v4526 = vunpack.c.l.b16 %v4270
    %v4527 = vunpack.c.l.b16 %v4271
    %v4528 = vunpack.c.l.b16 %v4272
    %v4529 = vunpack.c.l.b16 %v4273
    %v4530 = vunpack.c.l.b16 %v4274
    %v4531 = vunpack.c.l.b16 %v4275
    %v4532 = vunpack.c.l.b16 %v4276
    %v4533 = vunpack.c.l.b16 %v4277
    %v4534 = vunpack.c.l.b16 %v4278
    %v4535 = vunpack.c.l.b16 %v4279
    %v4536 = vunpack.c.l.b16 %v4280
    %v4537 = vunpack.c.l.b16 %v4281
    %v4538 = vunpack.c.l.b16 %v4282
    %v4539 = vunpack.c.l.b16 %v4283
    %v4540 = vunpack.c.l.b16 %v4284
    %v4541 = vunpack.c.l.b16 %v4285
    %v4542 = vunpack.c.l.b16 %v4286
    %v4543 = vunpack.c.l.b16 %v4287
    %v4544 = vunpack.c.l.b16 %v4288
    %v4545 = vunpack.c.l.b16 %v4289
    %v4546 = vunpack.c.l.b16 %v4290
    %v4547 = vunpack.c.l.b16 %v4291
    %v4548 = vunpack.c.l.b16 %v4292
    %v4549 = vunpack.c.l.b16 %v4293
    %v4550 = vunpack.c.l.b16 %v4294
    %v4551 = vunpack.c.l.b16 %v4295
    %v4552 = vunpack.c.l.b16 %v4296
    %v4553 = vunpack.c.l.b16 %v4297
    %v4554 = vunpack.c.l.b16 %v4298
    %v4555 = vunpack.c.l.b16 %v4299
    %v4556 = vunpack.c.l.b16 %v4300
    %v4557 = vunpack.c.l.b16 %v4301
    %v4558 = vunpack.c.l.b16 %v4302
    %v4559 = vunpack.c.l.b16 %v4303
    %v4560 = vunpack.c.l.b16 %v4304
    %v4561 = vunpack.c.l.b16 %v4305
    %v4562 = vunpack.c.l.b16 %v4306
    %v4563 = vunpack.c.l.b16 %v4307
    %v4564 = vunpack.c.l.b16 %v4308
    %v4565 = vunpack.c.l.b16 %v4309
    %v4566 = vunpack.c.l.b16 %v4310
    %v4567 = vunpack.c.l.b16 %v4311
    %v4568 = vunpack.c.l.b16 %v4312
    %v4569 = vunpack.c.l.b16 %v4313
    %v4570 = vunpack.c.l.b16 %v4314
    %v4571 = vunpack.c.l.b16 %v4315
    %v4572 = vunpack.c.l.b16 %v4316
    %v4573 = vunpack.c.l.b16 %v4317
    %v4574 = vunpack.c.l.b16 %v4318
    %v4575 = vunpack.c.l.b16 %v4319
    %v4576 = vunpack.c.l.b16 %v4320
    %v4577 = vunpack.c.l.b16 %v4321
    %v4578 = vunpack.c.l.b16 %v4322
    %v4579 = vunpack.c.l.b16 %v4323
    %v4580 = vunpack.c.l.b16 %v4324
    %v4581 = vunpack.c.l.b16 %v4325
    %v4582 = vunpack.c.l.b16 %v4326
    %v4583 = vunpack.c.l.b16 %v4327
    %v4584 = vunpack.c.l.b16 %v4328
    %v4585 = vunpack.c.l.b16 %v4329
    %v4586 = vunpack.c.l.b16 %v4330
    %v4587 = vunpack.c.l.b16 %v4331
    %v4588 = vunpack.c.l.b16 %v4332
    %v4589 = vunpack.c.l.b16 %v4333
    %v4590 = vunpack.c.l.b16 %v4334
    %v4591 = vunpack.c.l.b16 %v4335
    %v4592 = vunpack.c.l.b16 %v4336
    %v4593 = vunpack.c.l.b16 %v4337
    %v4594 = vunpack.c.l.b16 %v4338
    %v4595 = vunpack.c.l.b16 %v4339
    %v4596 = vunpack.c.l.b16 %v4340
    %v4597 = vunpack.c.l.b16 %v4341
    %v4598 = vunpack.c.l.b16 %v4342
    %v4599 = vunpack.c.l.b16 %v4343
    %v4600 = vunpack.c.l.b16 %v4344
    %v4601 = vunpack.c.l.b16 %v4345
    %v4602 = vunpack.c.l.b16 %v4346
    %v4603 = vunpack.c.l.b16 %v4347
    %v4604 = vunpack.c.l.b16 %v4348
    %v4605 = vunpack.c.l.b16 %v4349
    %v4606 = vunpack.c.l.b16 %v4350
    %v4607 = vunpack.c.l.b16 %v4351
    %v4608 = vunpack.c.l.b16 %v4352
    %v4609 = vunpack.c.l.b16 %v4353
    %v4610 = vunpack.c.l.b16 %v4354
    %v4611 = vunpack.c.l.b16 %v4355
    %v4612 = vunpack.c.l.b16 %v4356
    %v4613 = vunpack.c.l.b16 %v4357
    %v4614 = vunpack.c.l.b16 %v4358
    %v4615 = vunpack.c.l.b16 %v4359
    %v4616 = vunpack.c.l.b16 %v4360
    %v4617 = vunpack.c.l.b16 %v4361
    %v4618 = vunpack.c.l.b16 %v4362
    %v4619 = vunpack.c.l.b16 %v4363
    %v4620 = vunpack.c.l.b16 %v4364
    %v4621 = vunpack.c.l.b16 %v4365
    %v4622 = vunpack.c.l.b16 %v4366
    %v4623 = vunpack.c.l.b16 %v4367
    %v4624 = vunpack.c.l.b16 %v4368
    %v4625 = vunpack.c.l.b16 %v4369
    %v4626 = vpack.c.b16 %v4499, %v4498
    %v4627 = vpack.c.b16 %v4501, %v4500
    %v4628 = vpack.c.b16 %v4503, %v4502
    %v4629 = vpack.c.b16 %v4505, %v4504
    %v4630 = vpack.c.b16 %v4507, %v4506
    %v4631 = vpack.c.b16 %v4509, %v4508
    %v4632 = vpack.c.b16 %v4511, %v4510
    %v4633 = vpack.c.b16 %v4513, %v4512
    %v4634 = vpack.c.b16 %v4515, %v4514
    %v4635 = vpack.c.b16 %v4517, %v4516
    %v4636 = vpack.c.b16 %v4519, %v4518
    %v4637 = vpack.c.b16 %v4521, %v4520
    %v4638 = vpack.c.b16 %v4523, %v4522
    %v4639 = vpack.c.b16 %v4525, %v4524
    %v4640 = vpack.c.b16 %v4527, %v4526
    %v4641 = vpack.c.b16 %v4529, %v4528
    %v4642 = vpack.c.b16 %v4531, %v4530
    %v4643 = vpack.c.b16 %v4533, %v4532
    %v4644 = vpack.c.b16 %v4535, %v4534
    %v4645 = vpack.c.b16 %v4537, %v4536
    %v4646 = vpack.c.b16 %v4539, %v4538
    %v4647 = vpack.c.b16 %v4541, %v4540
    %v4648 = vpack.c.b16 %v4543, %v4542
    %v4649 = vpack.c.b16 %v4545, %v4544
    %v4650 = vpack.c.b16 %v4547, %v4546
    %v4651 = vpack.c.b16 %v4549, %v4548
    %v4652 = vpack.c.b16 %v4551, %v4550
    %v4653 = vpack.c.b16 %v4553, %v4552
    %v4654 = vpack.c.b16 %v4555, %v4554
    %v4655 = vpack.c.b16 %v4557, %v4556
    %v4656 = vpack.c.b16 %v4559, %v4558
    %v4657 = vpack.c.b16 %v4561, %v4560
    %v4658 = vpack.c.b16 %v4563, %v4562
    %v4659 = vpack.c.b16 %v4565, %v4564
    %v4660 = vpack.c.b16 %v4567, %v4566
    %v4661 = vpack.c.b16 %v4569, %v4568
    %v4662 = vpack.c.b16 %v4571, %v4570
    %v4663 = vpack.c.b16 %v4573, %v4572
    %v4664 = vpack.c.b16 %v4575, %v4574
    %v4665 = vpack.c.b16 %v4577, %v4576
    %v4666 = vpack.c.b16 %v4579, %v4578
    %v4667 = vpack.c.b16 %v4581, %v4580
    %v4668 = vpack.c.b16 %v4583, %v4582
    %v4669 = vpack.c.b16 %v4585, %v4584
    %v4670 = vpack.c.b16 %v4587, %v4586
    %v4671 = vpack.c.b16 %v4589, %v4588
    %v4672 = vpack.c.b16 %v4591, %v4590
    %v4673 = vpack.c.b16 %v4593, %v4592
    %v4674 = vpack.c.b16 %v4595, %v4594
    %v4675 = vpack.c.b16 %v4597, %v4596
    %v4676 = vpack.c.b16 %v4599, %v4598
    %v4677 = vpack.c.b16 %v4601, %v4600
    %v4678 = vpack.c.b16 %v4603, %v4602
    %v4679 = vpack.c.b16 %v4605, %v4604
    %v4680 = vpack.c.b16 %v4607, %v4606
    %v4681 = vpack.c.b16 %v4609, %v4608
    %v4682 = vpack.c.b16 %v4611, %v4610
    %v4683 = vpack.c.b16 %v4613, %v4612
    %v4684 = vpack.c.b16 %v4615, %v4614
    %v4685 = vpack.c.b16 %v4617, %v4616
    %v4686 = vpack.c.b16 %v4619, %v4618
    %v4687 = vpack.c.b16 %v4621, %v4620
    %v4688 = vpack.c.b16 %v4623, %v4622
    %v4689 = vpack.c.b16 %v4625, %v4624
    %4754 = vmatprep.subr.bf16.mxu0 0
    %4755 = vmatpush1.bf16.msra.mxu0 %v4626
    %4756 = vmatprep.subr.bf16.mxu0 0
    %4757 = vmatpush1.bf16.msra.mxu0 %v4627
    %4758 = vmatprep.subr.bf16.mxu0 0
    %4759 = vmatpush1.bf16.msra.mxu0 %v4628
    %4760 = vmatprep.subr.bf16.mxu0 0
    %4761 = vmatpush1.bf16.msra.mxu0 %v4629
    %4762 = vmatprep.subr.bf16.mxu0 0
    %4763 = vmatpush1.bf16.msra.mxu0 %v4630
    %4764 = vmatprep.subr.bf16.mxu0 0
    %4765 = vmatpush1.bf16.msra.mxu0 %v4631
    %4766 = vmatprep.subr.bf16.mxu0 0
    %4767 = vmatpush1.bf16.msra.mxu0 %v4632
    %4768 = vmatprep.subr.bf16.mxu0 0
    %4769 = vmatpush1.bf16.msra.mxu0 %v4633
    %4770 = vmatprep.subr.bf16.mxu0 0
    %4771 = vmatpush1.bf16.msra.mxu0 %v4634
    %4772 = vmatprep.subr.bf16.mxu0 0
    %4773 = vmatpush1.bf16.msra.mxu0 %v4635
    %4774 = vmatprep.subr.bf16.mxu0 0
    %4775 = vmatpush1.bf16.msra.mxu0 %v4636
    %4776 = vmatprep.subr.bf16.mxu0 0
    %4777 = vmatpush1.bf16.msra.mxu0 %v4637
    %4778 = vmatprep.subr.bf16.mxu0 0
    %4779 = vmatpush1.bf16.msra.mxu0 %v4638
    %4780 = vmatprep.subr.bf16.mxu0 0
    %4781 = vmatpush1.bf16.msra.mxu0 %v4639
    %4782 = vmatprep.subr.bf16.mxu0 0
    %4783 = vmatpush1.bf16.msra.mxu0 %v4640
    %4784 = vmatprep.subr.bf16.mxu0 0
    %4785 = vmatpush1.bf16.msra.mxu0 %v4641
    %4786 = vmatprep.mubr.bf16.mxu0 %v4228
    %4787 = vmatmul.mubr.bf16.gmra.mrb[0].mxu0 %v4212
    %v4788 = vpop.f32.mrb[0].mxu0
    %v4789 = vadd.f32 0.0, %v4788
    %v4790 = vpop.f32.mrb[0].mxu0
    %v4791 = vpop.f32.mrb[0].mxu0
    %v4792 = vpop.f32.mrb[0].mxu0
    %4793 = vdwg.mxu0
    %4794 = vmatprep.subr.bf16.mxu0 0
    %4795 = vmatpush1.bf16.msra.mxu0 %v4642
    %4796 = vmatprep.subr.bf16.mxu0 0
    %4797 = vmatpush1.bf16.msra.mxu0 %v4643
    %4798 = vmatprep.subr.bf16.mxu0 0
    %4799 = vmatpush1.bf16.msra.mxu0 %v4644
    %4800 = vmatprep.subr.bf16.mxu0 0
    %4801 = vmatpush1.bf16.msra.mxu0 %v4645
    %4802 = vmatprep.subr.bf16.mxu0 0
    %4803 = vmatpush1.bf16.msra.mxu0 %v4646
    %4804 = vmatprep.subr.bf16.mxu0 0
    %4805 = vmatpush1.bf16.msra.mxu0 %v4647
    %4806 = vmatprep.subr.bf16.mxu0 0
    %4807 = vmatpush1.bf16.msra.mxu0 %v4648
    %4808 = vmatprep.subr.bf16.mxu0 0
    %4809 = vmatpush1.bf16.msra.mxu0 %v4649
    %4810 = vmatprep.subr.bf16.mxu0 0
    %4811 = vmatpush1.bf16.msra.mxu0 %v4650
    %4812 = vmatprep.subr.bf16.mxu0 0
    %4813 = vmatpush1.bf16.msra.mxu0 %v4651
    %4814 = vmatprep.subr.bf16.mxu0 0
    %4815 = vmatpush1.bf16.msra.mxu0 %v4652
    %4816 = vmatprep.subr.bf16.mxu0 0
    %4817 = vmatpush1.bf16.msra.mxu0 %v4653
    %4818 = vmatprep.subr.bf16.mxu0 0
    %4819 = vmatpush1.bf16.msra.mxu0 %v4654
    %4820 = vmatprep.subr.bf16.mxu0 0
    %4821 = vmatpush1.bf16.msra.mxu0 %v4655
    %4822 = vmatprep.subr.bf16.mxu0 0
    %4823 = vmatpush1.bf16.msra.mxu0 %v4656
    %4824 = vmatprep.subr.bf16.mxu0 0
    %4825 = vmatpush1.bf16.msra.mxu0 %v4657
    %4826 = vmatprep.mubr.bf16.mxu0 %v4232
    %4827 = vmatmul.mubr.bf16.gmra.mrb[0].mxu0 %v4216
    %v4828 = vpop.f32.mrb[0].mxu0
    %v4829 = vadd.f32 %v4789, %v4828
    %v4830 = vpop.f32.mrb[0].mxu0
    %v4831 = vpop.f32.mrb[0].mxu0
    %v4832 = vpop.f32.mrb[0].mxu0
    %4833 = vdwg.mxu0
    %4834 = vmatprep.subr.bf16.mxu0 0
    %4835 = vmatpush1.bf16.msra.mxu0 %v4658
    %4836 = vmatprep.subr.bf16.mxu0 0
    %4837 = vmatpush1.bf16.msra.mxu0 %v4659
    %4838 = vmatprep.subr.bf16.mxu0 0
    %4839 = vmatpush1.bf16.msra.mxu0 %v4660
    %4840 = vmatprep.subr.bf16.mxu0 0
    %4841 = vmatpush1.bf16.msra.mxu0 %v4661
    %4842 = vmatprep.subr.bf16.mxu0 0
    %4843 = vmatpush1.bf16.msra.mxu0 %v4662
    %4844 = vmatprep.subr.bf16.mxu0 0
    %4845 = vmatpush1.bf16.msra.mxu0 %v4663
    %4846 = vmatprep.subr.bf16.mxu0 0
    %4847 = vmatpush1.bf16.msra.mxu0 %v4664
    %4848 = vmatprep.subr.bf16.mxu0 0
    %4849 = vmatpush1.bf16.msra.mxu0 %v4665
    %4850 = vmatprep.subr.bf16.mxu0 0
    %4851 = vmatpush1.bf16.msra.mxu0 %v4666
    %4852 = vmatprep.subr.bf16.mxu0 0
    %4853 = vmatpush1.bf16.msra.mxu0 %v4667
    %4854 = vmatprep.subr.bf16.mxu0 0
    %4855 = vmatpush1.bf16.msra.mxu0 %v4668
    %4856 = vmatprep.subr.bf16.mxu0 0
    %4857 = vmatpush1.bf16.msra.mxu0 %v4669
    %4858 = vmatprep.subr.bf16.mxu0 0
    %4859 = vmatpush1.bf16.msra.mxu0 %v4670
    %4860 = vmatprep.subr.bf16.mxu0 0
    %4861 = vmatpush1.bf16.msra.mxu0 %v4671
    %4862 = vmatprep.subr.bf16.mxu0 0
    %4863 = vmatpush1.bf16.msra.mxu0 %v4672
    %4864 = vmatprep.subr.bf16.mxu0 0
    %4865 = vmatpush1.bf16.msra.mxu0 %v4673
    %4866 = vmatprep.mubr.bf16.mxu0 %v4236
    %4867 = vmatmul.mubr.bf16.gmra.mrb[0].mxu0 %v4220
    %v4868 = vpop.f32.mrb[0].mxu0
    %v4869 = vadd.f32 %v4829, %v4868
    %v4870 = vpop.f32.mrb[0].mxu0
    %v4871 = vpop.f32.mrb[0].mxu0
    %v4872 = vpop.f32.mrb[0].mxu0
    %4873 = vdwg.mxu0
    %4874 = vmatprep.subr.bf16.mxu0 0
    %4875 = vmatpush1.bf16.msra.mxu0 %v4674
    %4876 = vmatprep.subr.bf16.mxu0 0
    %4877 = vmatpush1.bf16.msra.mxu0 %v4675
    %4878 = vmatprep.subr.bf16.mxu0 0
    %4879 = vmatpush1.bf16.msra.mxu0 %v4676
    %4880 = vmatprep.subr.bf16.mxu0 0
    %4881 = vmatpush1.bf16.msra.mxu0 %v4677
    %4882 = vmatprep.subr.bf16.mxu0 0
    %4883 = vmatpush1.bf16.msra.mxu0 %v4678
    %4884 = vmatprep.subr.bf16.mxu0 0
    %4885 = vmatpush1.bf16.msra.mxu0 %v4679
    %4886 = vmatprep.subr.bf16.mxu0 0
    %4887 = vmatpush1.bf16.msra.mxu0 %v4680
    %4888 = vmatprep.subr.bf16.mxu0 0
    %4889 = vmatpush1.bf16.msra.mxu0 %v4681
    %4890 = vmatprep.subr.bf16.mxu0 0
    %4891 = vmatpush1.bf16.msra.mxu0 %v4682
    %4892 = vmatprep.subr.bf16.mxu0 0
    %4893 = vmatpush1.bf16.msra.mxu0 %v4683
    %4894 = vmatprep.subr.bf16.mxu0 0
    %4895 = vmatpush1.bf16.msra.mxu0 %v4684
    %4896 = vmatprep.subr.bf16.mxu0 0
    %4897 = vmatpush1.bf16.msra.mxu0 %v4685
    %4898 = vmatprep.subr.bf16.mxu0 0
    %4899 = vmatpush1.bf16.msra.mxu0 %v4686
    %4900 = vmatprep.subr.bf16.mxu0 0
    %4901 = vmatpush1.bf16.msra.mxu0 %v4687
    %4902 = vmatprep.subr.bf16.mxu0 0
    %4903 = vmatpush1.bf16.msra.mxu0 %v4688
    %4904 = vmatprep.subr.bf16.mxu0 0
    %4905 = vmatpush1.bf16.msra.mxu0 %v4689
    %4906 = vmatprep.mubr.bf16.mxu0 %v4240
    %4907 = vmatmul.mubr.bf16.gmra.mrb[0].mxu0 %v4224
    %v4908 = vpop.f32.mrb[0].mxu0
    %v4909 = vadd.f32 %v4869, %v4908
    %v4910 = vpop.f32.mrb[0].mxu0
    %v4911 = vpop.f32.mrb[0].mxu0
    %v4912 = vpop.f32.mrb[0].mxu0
    %4913 = vdwg.mxu0
    %4914 = vst [vmem:[#allocation8] sm:$0x3] %v4909
    // Predicated region
    $region38: #{diehl2015_forward.1} parent=1 // pred_check
      _
    $region39: #{diehl2015_forward.1} parent=1 // pred_check_branch
      %4916 = sbr.rel (0) target = $region41
    $region40: #{diehl2015_forward.1} parent=1 // pred_region
      %s4918 = ssub.s32 32, 32
      %4919 = vsyncadd [#allocation4], %s4918
      %s4921 = sshll.u32 [#allocation8], 4
      %s4922 = int_to_ptr.vmem [resolvable:$true] %s4921
      %4924 = dma.vmem_to_hbm [thread:$0]  %s4922, 32, %s6, [#allocation4]
    $region41: #{diehl2015_forward.1} parent=1 // pred_fallthru
      _
    // Predicated region
    $region42: #{diehl2015_forward.1} parent=1 // pred_check
      _
    $region43: #{diehl2015_forward.1} parent=1 // pred_check_branch
      %4926 = sbr.rel (0) target = $region45
    $region44: #{diehl2015_forward.1} parent=1 // pred_region
      %4927 = dma.done [#allocation4], 32
    $region45: #{diehl2015_forward.1} parent=1 // pred_fallthru
      _
    %4928 = vsyncpa [#allocation3], 1
    %4929 = vsyncpa [#allocation6], 1
    %4930 = vsyncpa [#allocation4], 1

</llo_original>
